<compile_context>
chip_gen: v6e
topology: v6e:2x2x1
jax: 0.10.0
libtpu: 0.0.40
codegen_flags: <defaults>
</compile_context>

<pallas_src>
import math
import functools

import jax
import jax.numpy as jnp
from jax import lax
from jax.experimental import pallas as pl
from jax.experimental.pallas import tpu as pltpu


def _cond_conv_kernel(r_ref, x_ref, w_ref, b_ref, o_ref, xpad_ref, *,
                      num_experts, kh, kw, c_in, c_out_blk, h, w, pad,
                      dilation, wp, out_lanes, total_len, dot_dtype):
    # r_ref   : (B, K)                 routing weights, SMEM (scalar prefetch)
    # x_ref   : (1, c_in, H*W)         flat NCHW activation tile (spatial in lanes)
    # w_ref   : (K, kh*kw, tn, c_in)   expert weights, tap-major
    # b_ref   : (K, tn, 1)             expert biases (column vectors)
    # o_ref   : (1, tn, Ho_full*Wp)    lane-dense output slab (spatial in lanes)
    # xpad_ref: (c_in, total_len)      zero-padded flat image + tap-overrun tail
    b_idx = pl.program_id(0)

    # ---- scatter x into the zero-padded flat scratch; zero halo strips only ----
    if pad == 0:
        xpad_ref[:, 0:h * w] = x_ref[0].astype(xpad_ref.dtype)
    else:
        head = pad * wp + pad                     # top pad rows + first row's left pad
        xpad_ref[:, 0:head] = jnp.zeros((c_in, head), xpad_ref.dtype)
        gap = 2 * pad                             # right pad of row i + left pad of row i+1
        for i in range(h):
            dst = (pad + i) * wp + pad
            xpad_ref[:, dst:dst + w] = x_ref[0, :, i * w:(i + 1) * w].astype(xpad_ref.dtype)
            if i < h - 1:
                xpad_ref[:, dst + w:dst + w + gap] = jnp.zeros((c_in, gap), xpad_ref.dtype)
    tail_start = (pad + h - 1) * wp + pad + w     # bottom pad rows + tap-overrun tail
    if total_len > tail_start:
        xpad_ref[:, tail_start:total_len] = jnp.zeros(
            (c_in, total_len - tail_start), xpad_ref.dtype)

    # ---- streamed expert mix fused with per-tap MXU accumulation ----
    # TODO(synk): when c_in % 128 == 0 a single deep im2col contraction (tile-aligned
    # concat) beats kh*kw accumulating matmuls; add that path for late, wide layers.
    acc = jnp.zeros((c_out_blk, out_lanes), jnp.float32)
    for t in range(kh * kw):
        ki, kj = divmod(t, kw)
        # Per-tap mix keeps the working set at (K+1) * c_out_blk * c_in elements.
        w_tap = jnp.zeros((c_out_blk, c_in), jnp.float32)
        for e in range(num_experts):
            w_tap = w_tap + r_ref[b_idx, e] * w_ref[e, t].astype(jnp.float32)
        off = dilation * (ki * wp + kj)
        rhs = xpad_ref[:, off:off + out_lanes]    # lane-shifted flat view of the image
        acc = acc + jnp.dot(w_tap.astype(dot_dtype), rhs.astype(dot_dtype),
                            preferred_element_type=jnp.float32)

    b_comb = jnp.zeros((c_out_blk, 1), jnp.float32)
    for e in range(num_experts):
        b_comb = b_comb + r_ref[b_idx, e] * b_ref[e].astype(jnp.float32)

    o_ref[0] = (acc + b_comb).astype(o_ref.dtype)


def cond_conv2d(x_nchw, routing, weight, bias=None, *, stride=1, padding=0,
                dilation=1, mxu_dtype=None, c_out_tile=256):
    """CondConv2d forward.

    x_nchw: (B, C_in, H, W); routing: (B, K); weight: (K, C_out, C_in, kh, kw);
    bias: (K, C_out) or None. mxu_dtype: optional matmul input dtype (e.g. jnp.bfloat16
    on v6e/v7x); accumulation stays f32.
    """
    # TODO(synk): groups > 1 and asymmetric padding are not implemented (module default
    # groups=1, symmetric int padding).
    b, c_in, h, w = x_nchw.shape
    k, c_out, c_in_w, kh, kw = weight.shape
    assert c_in_w == c_in, "groups > 1 not supported"

    hp, wp = h + 2 * padding, w + 2 * padding
    ho_full = hp - dilation * (kh - 1)            # stride-1 output height on padded grid
    wo_full = wp - dilation * (kw - 1)
    assert ho_full >= 1 and wo_full >= 1
    ho = (ho_full - 1) // stride + 1
    wo = (wo_full - 1) // stride + 1

    # TODO(synk): for stride > 1 the kernel computes the stride-1 grid and the wrapper
    # subsamples; a strided variant would save ~stride**2 of the matmul work.
    out_lanes = ho_full * wp
    total_len = hp * wp + dilation * (kw - 1)     # + tap-overrun tail (always zero)

    # Optional c_out slab tiling: bounds resident expert-weight/output VMEM on v7x and
    # feeds the second TC at B == 1.  For c_out <= c_out_tile it degenerates to 1 block.
    if c_out > c_out_tile and c_out % c_out_tile == 0:
        tn = c_out_tile
    else:
        tn = c_out
    n_co = c_out // tn

    dot_dtype = jnp.dtype(mxu_dtype) if mxu_dtype is not None else x_nchw.dtype

    # Layout glue only (no activation transpose, no padded HBM copy of x):
    x_flat = x_nchw.reshape(b, c_in, h * w)       # free: NCHW spatial is contiguous
    # (K, C_out, C_in, kh, kw) -> (K, kh*kw, C_out, C_in): tap-major so the streamed mix
    # reads clean leading-dim slabs (no lane-offset slicing even for tiny c_in).
    w_taps = jnp.transpose(weight, (0, 3, 4, 1, 2)).reshape(k, kh * kw, c_out, c_in)
    if bias is None:
        bias = jnp.zeros((k, c_out), dtype=weight.dtype)
    b_col = bias.reshape(k, c_out, 1)
    routing = routing.astype(jnp.float32)

    kernel = functools.partial(
        _cond_conv_kernel, num_experts=k, kh=kh, kw=kw, c_in=c_in, c_out_blk=tn,
        h=h, w=w, pad=padding, dilation=dilation, wp=wp,
        out_lanes=out_lanes, total_len=total_len, dot_dtype=dot_dtype)

    # Explicit VMEM budget (v5e scoped default is only 16 MiB).
    isz = x_nchw.dtype.itemsize
    wsz = weight.dtype.itemsize
    vmem_est = (2 * c_in * h * w * isz                               # x, double-buffered
                + (1 if n_co == 1 else 2) * k * kh * kw * tn * c_in * wsz
                + 2 * k * tn * wsz
                + 2 * tn * out_lanes * isz                           # out, double-buffered
                + c_in * total_len * jnp.dtype(dot_dtype).itemsize   # xpad scratch
                + tn * out_lanes * 4)                                # f32 accumulator
    vmem_limit = int(min(64 * 1024 * 1024, max(16 * 1024 * 1024, int(vmem_est * 1.5))))

    conv_flops = 2 * b * kh * kw * c_out * c_in * out_lanes
    mix_flops = 2 * b * k * kh * kw * c_out * c_in + 2 * b * k * c_out
    bytes_accessed = (x_flat.size * isz + w_taps.size * wsz + b_col.size * wsz
                      + routing.size * 4 + b * c_out * out_lanes * isz)

    # TODO(synk): add Ho-row tiling (with (kh-1)*dilation row halo) for very large
    # feature maps so per-step VMEM stays bounded on v7x.
    def _build(single_buffer_experts):
        mode = {"pipeline_mode": pl.Buffered(1)} if single_buffer_experts else {}
        w_spec = pl.BlockSpec((k, kh * kw, tn, c_in), lambda i, j, r: (0, 0, j, 0), **mode)
        b_spec = pl.BlockSpec((k, tn, 1), lambda i, j, r: (0, j, 0), **mode)
        return pl.pallas_call(
            kernel,
            out_shape=jax.ShapeDtypeStruct((b, c_out, out_lanes), x_nchw.dtype),
            grid_spec=pltpu.PrefetchScalarGridSpec(
                num_scalar_prefetch=1,                      # routing -> SMEM scalars
                grid=(b, n_co),
                in_specs=[
                    pl.BlockSpec((1, c_in, h * w), lambda i, j, r: (i, 0, 0)),
                    w_spec,
                    b_spec,
                ],
                out_specs=pl.BlockSpec((1, tn, out_lanes), lambda i, j, r: (i, j, 0)),
                scratch_shapes=[pltpu.VMEM((c_in, total_len), dot_dtype)],
            ),
            compiler_params=pltpu.CompilerParams(
                dimension_semantics=("parallel", "parallel"),
                vmem_limit_bytes=vmem_limit),
            cost_estimate=pl.CostEstimate(flops=conv_flops + mix_flops,
                                          transcendentals=0,
                                          bytes_accessed=bytes_accessed),
        )(routing, x_flat, w_taps, b_col)

    # Expert tensors have a constant index map when n_co == 1, so the second pipeline
    # buffer is pure VMEM waste -> single-buffer them (per perf review).
    try:
        out_flat = _build(single_buffer_experts=(n_co == 1))
    except Exception:
        # TODO(synk): drop this fallback once pl.Buffered(1) is confirmed on all targets.
        out_flat = _build(single_buffer_experts=False)

    # Pure reshape + narrow column slice (no output transpose): flat index = i*Wp + j.
    out = out_flat.reshape(b, c_out, ho_full, wp)[:, :, ::stride, :wo_full:stride]
    assert out.shape == (b, c_out, ho, wo)
    return out


def _reference(x_nchw, routing, weight, bias, *, stride, padding, dilation):
    # pure-JAX reference mirroring the PyTorch grouped-conv trick
    w_comb = jnp.einsum('be,eoikl->boikl', routing, weight)    # (B, C_out, C_in, kh, kw)
    b_comb = jnp.einsum('be,eo->bo', routing, bias)            # (B, C_out)

    def one(xi, wi, bi):
        y = lax.conv_general_dilated(
            xi[None].astype(jnp.float32), wi.astype(jnp.float32),
            window_strides=(stride, stride),
            padding=[(padding, padding), (padding, padding)],
            rhs_dilation=(dilation, dilation),
            dimension_numbers=('NCHW', 'OIHW', 'NCHW'))[0]
        return y + bi[:, None, None]

    return jax.vmap(one)(x_nchw, w_comb, b_comb)


if __name__ == "__main__":
    # small shapes consistent with the module
    B, C_IN, C_OUT, H, W = 2, 4, 8, 16, 16
    KSIZE, STRIDE, PAD, DIL, EXPERTS = 3, 1, 1, 1, 4

    key = jax.random.PRNGKey(0)
    k_x, k_r, k_w, k_b = jax.random.split(key, 4)

    x = jax.random.normal(k_x, (B, C_IN, H, W), dtype=jnp.float32)
    routing = jax.nn.softmax(
        jax.random.normal(k_r, (B, EXPERTS), dtype=jnp.float32), axis=-1)

    # deterministic kaiming_uniform_(a=sqrt(5)) equivalent init
    fan_in = C_IN * KSIZE * KSIZE
    w_bound = math.sqrt(1.0 / fan_in)
    weight = jax.random.uniform(
        k_w, (EXPERTS, C_OUT, C_IN, KSIZE, KSIZE),
        minval=-w_bound, maxval=w_bound, dtype=jnp.float32)
    b_bound = 1.0 / math.sqrt(fan_in)
    bias = jax.random.uniform(
        k_b, (EXPERTS, C_OUT), minval=-b_bound, maxval=b_bound, dtype=jnp.float32)

    ref = _reference(x, routing, weight, bias,
                     stride=STRIDE, padding=PAD, dilation=DIL)

    # f32 MXU path: tight check against the f32 reference.
    out = cond_conv2d(x, routing, weight, bias,
                      stride=STRIDE, padding=PAD, dilation=DIL)
    out = jax.block_until_ready(out)
    assert out.shape == (B, C_OUT, H, W), out.shape
    assert jnp.allclose(out, ref, atol=1e-4, rtol=1e-4), \
        float(jnp.max(jnp.abs(out - ref)))

    # bf16 MXU path (v6e/v7x peak throughput): inference-grade tolerance.
    out_bf16 = cond_conv2d(x, routing, weight, bias,
                           stride=STRIDE, padding=PAD, dilation=DIL,
                           mxu_dtype=jnp.bfloat16)
    out_bf16 = jax.block_until_ready(out_bf16)
    assert jnp.allclose(out_bf16, ref, atol=5e-2, rtol=5e-2), \
        float(jnp.max(jnp.abs(out_bf16 - ref)))

    print("KERNEL_OK")
</pallas_src>

<mosaic_0001>
module attributes {stable_mosaic.version = 11 : i64} {
  func.func @_cond_conv_kernel(%arg0: i32, %arg1: i32, %arg2: memref<2x4xf32, #tpu.memory_space<smem>>, %arg3: memref<1x4x256xf32, #tpu.memory_space<vmem>>, %arg4: memref<4x9x8x4xf32, #tpu.memory_space<vmem>>, %arg5: memref<4x8x1xf32, #tpu.memory_space<vmem>>, %arg6: memref<1x8x288xf32, #tpu.memory_space<vmem>>, %arg7: memref<4x326xf32, #tpu.memory_space<vmem>>) attributes {dimension_semantics = [#tpu.dimension_semantics<parallel>, #tpu.dimension_semantics<parallel>], iteration_bounds = array<i64: 2, 1>, scalar_prefetch = 1 : i64, scratch_operands = 1 : i64, tpu.core_type = #tpu.core_type<tc>, window_params = [{transform_indices = @transform_0, window_bounds = array<i64: 1, 4, 256>}, {pipeline_mode = #tpu.pipeline_mode<synchronous>, transform_indices = @transform_1, window_bounds = array<i64: 4, 9, 8, 4>}, {pipeline_mode = #tpu.pipeline_mode<synchronous>, transform_indices = @transform_2, window_bounds = array<i64: 4, 8, 1>}, {transform_indices = @transform_3, window_bounds = array<i64: 1, 8, 288>}]} {
    %cst = arith.constant 0.000000e+00 : f32
    %0 = vector.broadcast %cst : f32 to vector<4x19xf32>
    %c0 = arith.constant 0 : index
    %c0_0 = arith.constant 0 : index
    %1 = vector.load %arg7[%c0, %c0_0] : memref<4x326xf32, #tpu.memory_space<vmem>>, vector<4x19xf32>
    tpu.vector_store %arg7[%c0, %c0_0], %0 {strides = array<i32>} : memref<4x326xf32, #tpu.memory_space<vmem>>, vector<4x19xf32>,
    %c0_1 = arith.constant 0 : index
    %c0_2 = arith.constant 0 : index
    %c0_3 = arith.constant 0 : index
    %2 = vector.load %arg3[%c0_1, %c0_2, %c0_3] : memref<1x4x256xf32, #tpu.memory_space<vmem>>, vector<1x4x16xf32>
    %3 = vector.shape_cast %2 : vector<1x4x16xf32> to vector<4x16xf32>
    %c0_4 = arith.constant 0 : index
    %c19 = arith.constant 19 : index
    %4 = vector.load %arg7[%c0_4, %c19] : memref<4x326xf32, #tpu.memory_space<vmem>>, vector<4x16xf32>
    tpu.vector_store %arg7[%c0_4, %c19], %3 {strides = array<i32>} : memref<4x326xf32, #tpu.memory_space<vmem>>, vector<4x16xf32>,
    %cst_5 = arith.constant 0.000000e+00 : f32
    %5 = vector.broadcast %cst_5 : f32 to vector<4x2xf32>
    %c0_6 = arith.constant 0 : index
    %c35 = arith.constant 35 : index
    %6 = vector.load %arg7[%c0_6, %c35] : memref<4x326xf32, #tpu.memory_space<vmem>>, vector<4x2xf32>
    tpu.vector_store %arg7[%c0_6, %c35], %5 {strides = array<i32>} : memref<4x326xf32, #tpu.memory_space<vmem>>, vector<4x2xf32>,
    %c0_7 = arith.constant 0 : index
    %c0_8 = arith.constant 0 : index
    %c16 = arith.constant 16 : index
    %7 = vector.load %arg3[%c0_7, %c0_8, %c16] : memref<1x4x256xf32, #tpu.memory_space<vmem>>, vector<1x4x16xf32>
    %8 = vector.shape_cast %7 : vector<1x4x16xf32> to vector<4x16xf32>
    %c0_9 = arith.constant 0 : index
    %c37 = arith.constant 37 : index
    %9 = vector.load %arg7[%c0_9, %c37] : memref<4x326xf32, #tpu.memory_space<vmem>>, vector<4x16xf32>
    tpu.vector_store %arg7[%c0_9, %c37], %8 {strides = array<i32>} : memref<4x326xf32, #tpu.memory_space<vmem>>, vector<4x16xf32>,
    %cst_10 = arith.constant 0.000000e+00 : f32
    %10 = vector.broadcast %cst_10 : f32 to vector<4x2xf32>
    %c0_11 = arith.constant 0 : index
    %c53 = arith.constant 53 : index
    %11 = vector.load %arg7[%c0_11, %c53] : memref<4x326xf32, #tpu.memory_space<vmem>>, vector<4x2xf32>
    tpu.vector_store %arg7[%c0_11, %c53], %10 {strides = array<i32>} : memref<4x326xf32, #tpu.memory_space<vmem>>, vector<4x2xf32>,
    %c0_12 = arith.constant 0 : index
    %c0_13 = arith.constant 0 : index
    %c32 = arith.constant 32 : index
    %12 = vector.load %arg3[%c0_12, %c0_13, %c32] : memref<1x4x256xf32, #tpu.memory_space<vmem>>, vector<1x4x16xf32>
    %13 = vector.shape_cast %12 : vector<1x4x16xf32> to vector<4x16xf32>
    %c0_14 = arith.constant 0 : index
    %c55 = arith.constant 55 : index
    %14 = vector.load %arg7[%c0_14, %c55] : memref<4x326xf32, #tpu.memory_space<vmem>>, vector<4x16xf32>
    tpu.vector_store %arg7[%c0_14, %c55], %13 {strides = array<i32>} : memref<4x326xf32, #tpu.memory_space<vmem>>, vector<4x16xf32>,
    %cst_15 = arith.constant 0.000000e+00 : f32
    %15 = vector.broadcast %cst_15 : f32 to vector<4x2xf32>
    %c0_16 = arith.constant 0 : index
    %c71 = arith.constant 71 : index
    %16 = vector.load %arg7[%c0_16, %c71] : memref<4x326xf32, #tpu.memory_space<vmem>>, vector<4x2xf32>
    tpu.vector_store %arg7[%c0_16, %c71], %15 {strides = array<i32>} : memref<4x326xf32, #tpu.memory_space<vmem>>, vector<4x2xf32>,
    %c0_17 = arith.constant 0 : index
    %c0_18 = arith.constant 0 : index
    %c48 = arith.constant 48 : index
    %17 = vector.load %arg3[%c0_17, %c0_18, %c48] : memref<1x4x256xf32, #tpu.memory_space<vmem>>, vector<1x4x16xf32>
    %18 = vector.shape_cast %17 : vector<1x4x16xf32> to vector<4x16xf32>
    %c0_19 = arith.constant 0 : index
    %c73 = arith.constant 73 : index
    %19 = vector.load %arg7[%c0_19, %c73] : memref<4x326xf32, #tpu.memory_space<vmem>>, vector<4x16xf32>
    tpu.vector_store %arg7[%c0_19, %c73], %18 {strides = array<i32>} : memref<4x326xf32, #tpu.memory_space<vmem>>, vector<4x16xf32>,
    %cst_20 = arith.constant 0.000000e+00 : f32
    %20 = vector.broadcast %cst_20 : f32 to vector<4x2xf32>
    %c0_21 = arith.constant 0 : index
    %c89 = arith.constant 89 : index
    %21 = vector.load %arg7[%c0_21, %c89] : memref<4x326xf32, #tpu.memory_space<vmem>>, vector<4x2xf32>
    tpu.vector_store %arg7[%c0_21, %c89], %20 {strides = array<i32>} : memref<4x326xf32, #tpu.memory_space<vmem>>, vector<4x2xf32>,
    %c0_22 = arith.constant 0 : index
    %c0_23 = arith.constant 0 : index
    %c64 = arith.constant 64 : index
    %22 = vector.load %arg3[%c0_22, %c0_23, %c64] : memref<1x4x256xf32, #tpu.memory_space<vmem>>, vector<1x4x16xf32>
    %23 = vector.shape_cast %22 : vector<1x4x16xf32> to vector<4x16xf32>
    %c0_24 = arith.constant 0 : index
    %c91 = arith.constant 91 : index
    %24 = vector.load %arg7[%c0_24, %c91] : memref<4x326xf32, #tpu.memory_space<vmem>>, vector<4x16xf32>
    tpu.vector_store %arg7[%c0_24, %c91], %23 {strides = array<i32>} : memref<4x326xf32, #tpu.memory_space<vmem>>, vector<4x16xf32>,
    %cst_25 = arith.constant 0.000000e+00 : f32
    %25 = vector.broadcast %cst_25 : f32 to vector<4x2xf32>
    %c0_26 = arith.constant 0 : index
    %c107 = arith.constant 107 : index
    %26 = vector.load %arg7[%c0_26, %c107] : memref<4x326xf32, #tpu.memory_space<vmem>>, vector<4x2xf32>
    tpu.vector_store %arg7[%c0_26, %c107], %25 {strides = array<i32>} : memref<4x326xf32, #tpu.memory_space<vmem>>, vector<4x2xf32>,
    %c0_27 = arith.constant 0 : index
    %c0_28 = arith.constant 0 : index
    %c80 = arith.constant 80 : index
    %27 = vector.load %arg3[%c0_27, %c0_28, %c80] : memref<1x4x256xf32, #tpu.memory_space<vmem>>, vector<1x4x16xf32>
    %28 = vector.shape_cast %27 : vector<1x4x16xf32> to vector<4x16xf32>
    %c0_29 = arith.constant 0 : index
    %c109 = arith.constant 109 : index
    %29 = vector.load %arg7[%c0_29, %c109] : memref<4x326xf32, #tpu.memory_space<vmem>>, vector<4x16xf32>
    tpu.vector_store %arg7[%c0_29, %c109], %28 {strides = array<i32>} : memref<4x326xf32, #tpu.memory_space<vmem>>, vector<4x16xf32>,
    %cst_30 = arith.constant 0.000000e+00 : f32
    %30 = vector.broadcast %cst_30 : f32 to vector<4x2xf32>
    %c0_31 = arith.constant 0 : index
    %c125 = arith.constant 125 : index
    %31 = vector.load %arg7[%c0_31, %c125] : memref<4x326xf32, #tpu.memory_space<vmem>>, vector<4x2xf32>
    tpu.vector_store %arg7[%c0_31, %c125], %30 {strides = array<i32>} : memref<4x326xf32, #tpu.memory_space<vmem>>, vector<4x2xf32>,
    %c0_32 = arith.constant 0 : index
    %c0_33 = arith.constant 0 : index
    %c96 = arith.constant 96 : index
    %32 = vector.load %arg3[%c0_32, %c0_33, %c96] : memref<1x4x256xf32, #tpu.memory_space<vmem>>, vector<1x4x16xf32>
    %33 = vector.shape_cast %32 : vector<1x4x16xf32> to vector<4x16xf32>
    %c0_34 = arith.constant 0 : index
    %c127 = arith.constant 127 : index
    %34 = vector.load %arg7[%c0_34, %c127] : memref<4x326xf32, #tpu.memory_space<vmem>>, vector<4x16xf32>
    tpu.vector_store %arg7[%c0_34, %c127], %33 {strides = array<i32>} : memref<4x326xf32, #tpu.memory_space<vmem>>, vector<4x16xf32>,
    %cst_35 = arith.constant 0.000000e+00 : f32
    %35 = vector.broadcast %cst_35 : f32 to vector<4x2xf32>
    %c0_36 = arith.constant 0 : index
    %c143 = arith.constant 143 : index
    %36 = vector.load %arg7[%c0_36, %c143] : memref<4x326xf32, #tpu.memory_space<vmem>>, vector<4x2xf32>
    tpu.vector_store %arg7[%c0_36, %c143], %35 {strides = array<i32>} : memref<4x326xf32, #tpu.memory_space<vmem>>, vector<4x2xf32>,
    %c0_37 = arith.constant 0 : index
    %c0_38 = arith.constant 0 : index
    %c112 = arith.constant 112 : index
    %37 = vector.load %arg3[%c0_37, %c0_38, %c112] : memref<1x4x256xf32, #tpu.memory_space<vmem>>, vector<1x4x16xf32>
    %38 = vector.shape_cast %37 : vector<1x4x16xf32> to vector<4x16xf32>
    %c0_39 = arith.constant 0 : index
    %c145 = arith.constant 145 : index
    %39 = vector.load %arg7[%c0_39, %c145] : memref<4x326xf32, #tpu.memory_space<vmem>>, vector<4x16xf32>
    tpu.vector_store %arg7[%c0_39, %c145], %38 {strides = array<i32>} : memref<4x326xf32, #tpu.memory_space<vmem>>, vector<4x16xf32>,
    %cst_40 = arith.constant 0.000000e+00 : f32
    %40 = vector.broadcast %cst_40 : f32 to vector<4x2xf32>
    %c0_41 = arith.constant 0 : index
    %c161 = arith.constant 161 : index
    %41 = vector.load %arg7[%c0_41, %c161] : memref<4x326xf32, #tpu.memory_space<vmem>>, vector<4x2xf32>
    tpu.vector_store %arg7[%c0_41, %c161], %40 {strides = array<i32>} : memref<4x326xf32, #tpu.memory_space<vmem>>, vector<4x2xf32>,
    %c0_42 = arith.constant 0 : index
    %c0_43 = arith.constant 0 : index
    %c128 = arith.constant 128 : index
    %42 = vector.load %arg3[%c0_42, %c0_43, %c128] : memref<1x4x256xf32, #tpu.memory_space<vmem>>, vector<1x4x16xf32>
    %43 = vector.shape_cast %42 : vector<1x4x16xf32> to vector<4x16xf32>
    %c0_44 = arith.constant 0 : index
    %c163 = arith.constant 163 : index
    %44 = vector.load %arg7[%c0_44, %c163] : memref<4x326xf32, #tpu.memory_space<vmem>>, vector<4x16xf32>
    tpu.vector_store %arg7[%c0_44, %c163], %43 {strides = array<i32>} : memref<4x326xf32, #tpu.memory_space<vmem>>, vector<4x16xf32>,
    %cst_45 = arith.constant 0.000000e+00 : f32
    %45 = vector.broadcast %cst_45 : f32 to vector<4x2xf32>
    %c0_46 = arith.constant 0 : index
    %c179 = arith.constant 179 : index
    %46 = vector.load %arg7[%c0_46, %c179] : memref<4x326xf32, #tpu.memory_space<vmem>>, vector<4x2xf32>
    tpu.vector_store %arg7[%c0_46, %c179], %45 {strides = array<i32>} : memref<4x326xf32, #tpu.memory_space<vmem>>, vector<4x2xf32>,
    %c0_47 = arith.constant 0 : index
    %c0_48 = arith.constant 0 : index
    %c144 = arith.constant 144 : index
    %47 = vector.load %arg3[%c0_47, %c0_48, %c144] : memref<1x4x256xf32, #tpu.memory_space<vmem>>, vector<1x4x16xf32>
    %48 = vector.shape_cast %47 : vector<1x4x16xf32> to vector<4x16xf32>
    %c0_49 = arith.constant 0 : index
    %c181 = arith.constant 181 : index
    %49 = vector.load %arg7[%c0_49, %c181] : memref<4x326xf32, #tpu.memory_space<vmem>>, vector<4x16xf32>
    tpu.vector_store %arg7[%c0_49, %c181], %48 {strides = array<i32>} : memref<4x326xf32, #tpu.memory_space<vmem>>, vector<4x16xf32>,
    %cst_50 = arith.constant 0.000000e+00 : f32
    %50 = vector.broadcast %cst_50 : f32 to vector<4x2xf32>
    %c0_51 = arith.constant 0 : index
    %c197 = arith.constant 197 : index
    %51 = vector.load %arg7[%c0_51, %c197] : memref<4x326xf32, #tpu.memory_space<vmem>>, vector<4x2xf32>
    tpu.vector_store %arg7[%c0_51, %c197], %50 {strides = array<i32>} : memref<4x326xf32, #tpu.memory_space<vmem>>, vector<4x2xf32>,
    %c0_52 = arith.constant 0 : index
    %c0_53 = arith.constant 0 : index
    %c160 = arith.constant 160 : index
    %52 = vector.load %arg3[%c0_52, %c0_53, %c160] : memref<1x4x256xf32, #tpu.memory_space<vmem>>, vector<1x4x16xf32>
    %53 = vector.shape_cast %52 : vector<1x4x16xf32> to vector<4x16xf32>
    %c0_54 = arith.constant 0 : index
    %c199 = arith.constant 199 : index
    %54 = vector.load %arg7[%c0_54, %c199] : memref<4x326xf32, #tpu.memory_space<vmem>>, vector<4x16xf32>
    tpu.vector_store %arg7[%c0_54, %c199], %53 {strides = array<i32>} : memref<4x326xf32, #tpu.memory_space<vmem>>, vector<4x16xf32>,
    %cst_55 = arith.constant 0.000000e+00 : f32
    %55 = vector.broadcast %cst_55 : f32 to vector<4x2xf32>
    %c0_56 = arith.constant 0 : index
    %c215 = arith.constant 215 : index
    %56 = vector.load %arg7[%c0_56, %c215] : memref<4x326xf32, #tpu.memory_space<vmem>>, vector<4x2xf32>
    tpu.vector_store %arg7[%c0_56, %c215], %55 {strides = array<i32>} : memref<4x326xf32, #tpu.memory_space<vmem>>, vector<4x2xf32>,
    %c0_57 = arith.constant 0 : index
    %c0_58 = arith.constant 0 : index
    %c176 = arith.constant 176 : index
    %57 = vector.load %arg3[%c0_57, %c0_58, %c176] : memref<1x4x256xf32, #tpu.memory_space<vmem>>, vector<1x4x16xf32>
    %58 = vector.shape_cast %57 : vector<1x4x16xf32> to vector<4x16xf32>
    %c0_59 = arith.constant 0 : index
    %c217 = arith.constant 217 : index
    %59 = vector.load %arg7[%c0_59, %c217] : memref<4x326xf32, #tpu.memory_space<vmem>>, vector<4x16xf32>
    tpu.vector_store %arg7[%c0_59, %c217], %58 {strides = array<i32>} : memref<4x326xf32, #tpu.memory_space<vmem>>, vector<4x16xf32>,
    %cst_60 = arith.constant 0.000000e+00 : f32
    %60 = vector.broadcast %cst_60 : f32 to vector<4x2xf32>
    %c0_61 = arith.constant 0 : index
    %c233 = arith.constant 233 : index
    %61 = vector.load %arg7[%c0_61, %c233] : memref<4x326xf32, #tpu.memory_space<vmem>>, vector<4x2xf32>
    tpu.vector_store %arg7[%c0_61, %c233], %60 {strides = array<i32>} : memref<4x326xf32, #tpu.memory_space<vmem>>, vector<4x2xf32>,
    %c0_62 = arith.constant 0 : index
    %c0_63 = arith.constant 0 : index
    %c192 = arith.constant 192 : index
    %62 = vector.load %arg3[%c0_62, %c0_63, %c192] : memref<1x4x256xf32, #tpu.memory_space<vmem>>, vector<1x4x16xf32>
    %63 = vector.shape_cast %62 : vector<1x4x16xf32> to vector<4x16xf32>
    %c0_64 = arith.constant 0 : index
    %c235 = arith.constant 235 : index
    %64 = vector.load %arg7[%c0_64, %c235] : memref<4x326xf32, #tpu.memory_space<vmem>>, vector<4x16xf32>
    tpu.vector_store %arg7[%c0_64, %c235], %63 {strides = array<i32>} : memref<4x326xf32, #tpu.memory_space<vmem>>, vector<4x16xf32>,
    %cst_65 = arith.constant 0.000000e+00 : f32
    %65 = vector.broadcast %cst_65 : f32 to vector<4x2xf32>
    %c0_66 = arith.constant 0 : index
    %c251 = arith.constant 251 : index
    %66 = vector.load %arg7[%c0_66, %c251] : memref<4x326xf32, #tpu.memory_space<vmem>>, vector<4x2xf32>
    tpu.vector_store %arg7[%c0_66, %c251], %65 {strides = array<i32>} : memref<4x326xf32, #tpu.memory_space<vmem>>, vector<4x2xf32>,
    %c0_67 = arith.constant 0 : index
    %c0_68 = arith.constant 0 : index
    %c208 = arith.constant 208 : index
    %67 = vector.load %arg3[%c0_67, %c0_68, %c208] : memref<1x4x256xf32, #tpu.memory_space<vmem>>, vector<1x4x16xf32>
    %68 = vector.shape_cast %67 : vector<1x4x16xf32> to vector<4x16xf32>
    %c0_69 = arith.constant 0 : index
    %c253 = arith.constant 253 : index
    %69 = vector.load %arg7[%c0_69, %c253] : memref<4x326xf32, #tpu.memory_space<vmem>>, vector<4x16xf32>
    tpu.vector_store %arg7[%c0_69, %c253], %68 {strides = array<i32>} : memref<4x326xf32, #tpu.memory_space<vmem>>, vector<4x16xf32>,
    %cst_70 = arith.constant 0.000000e+00 : f32
    %70 = vector.broadcast %cst_70 : f32 to vector<4x2xf32>
    %c0_71 = arith.constant 0 : index
    %c269 = arith.constant 269 : index
    %71 = vector.load %arg7[%c0_71, %c269] : memref<4x326xf32, #tpu.memory_space<vmem>>, vector<4x2xf32>
    tpu.vector_store %arg7[%c0_71, %c269], %70 {strides = array<i32>} : memref<4x326xf32, #tpu.memory_space<vmem>>, vector<4x2xf32>,
    %c0_72 = arith.constant 0 : index
    %c0_73 = arith.constant 0 : index
    %c224 = arith.constant 224 : index
    %72 = vector.load %arg3[%c0_72, %c0_73, %c224] : memref<1x4x256xf32, #tpu.memory_space<vmem>>, vector<1x4x16xf32>
    %73 = vector.shape_cast %72 : vector<1x4x16xf32> to vector<4x16xf32>
    %c0_74 = arith.constant 0 : index
    %c271 = arith.constant 271 : index
    %74 = vector.load %arg7[%c0_74, %c271] : memref<4x326xf32, #tpu.memory_space<vmem>>, vector<4x16xf32>
    tpu.vector_store %arg7[%c0_74, %c271], %73 {strides = array<i32>} : memref<4x326xf32, #tpu.memory_space<vmem>>, vector<4x16xf32>,
    %cst_75 = arith.constant 0.000000e+00 : f32
    %75 = vector.broadcast %cst_75 : f32 to vector<4x2xf32>
    %c0_76 = arith.constant 0 : index
    %c287 = arith.constant 287 : index
    %76 = vector.load %arg7[%c0_76, %c287] : memref<4x326xf32, #tpu.memory_space<vmem>>, vector<4x2xf32>
    tpu.vector_store %arg7[%c0_76, %c287], %75 {strides = array<i32>} : memref<4x326xf32, #tpu.memory_space<vmem>>, vector<4x2xf32>,
    %c0_77 = arith.constant 0 : index
    %c0_78 = arith.constant 0 : index
    %c240 = arith.constant 240 : index
    %77 = vector.load %arg3[%c0_77, %c0_78, %c240] : memref<1x4x256xf32, #tpu.memory_space<vmem>>, vector<1x4x16xf32>
    %78 = vector.shape_cast %77 : vector<1x4x16xf32> to vector<4x16xf32>
    %c0_79 = arith.constant 0 : index
    %c289 = arith.constant 289 : index
    %79 = vector.load %arg7[%c0_79, %c289] : memref<4x326xf32, #tpu.memory_space<vmem>>, vector<4x16xf32>
    tpu.vector_store %arg7[%c0_79, %c289], %78 {strides = array<i32>} : memref<4x326xf32, #tpu.memory_space<vmem>>, vector<4x16xf32>,
    %cst_80 = arith.constant 0.000000e+00 : f32
    %80 = vector.broadcast %cst_80 : f32 to vector<4x21xf32>
    %c0_81 = arith.constant 0 : index
    %c305 = arith.constant 305 : index
    %81 = vector.load %arg7[%c0_81, %c305] : memref<4x326xf32, #tpu.memory_space<vmem>>, vector<4x21xf32>
    tpu.vector_store %arg7[%c0_81, %c305], %80 {strides = array<i32>} : memref<4x326xf32, #tpu.memory_space<vmem>>, vector<4x21xf32>,
    %cst_82 = arith.constant 0.000000e+00 : f32
    %82 = vector.broadcast %cst_82 : f32 to vector<8x288xf32>
    %cst_83 = arith.constant 0.000000e+00 : f32
    %83 = vector.broadcast %cst_83 : f32 to vector<8x4xf32>
    %84 = arith.index_cast %arg0 : i32 to index
    %c0_84 = arith.constant 0 : index
    %85 = memref.load %arg2[%84, %c0_84] : memref<2x4xf32, #tpu.memory_space<smem>>
    %c0_85 = arith.constant 0 : index
    %c0_86 = arith.constant 0 : index
    %c0_87 = arith.constant 0 : index
    %c0_88 = arith.constant 0 : index
    %86 = vector.load %arg4[%c0_85, %c0_86, %c0_87, %c0_88] : memref<4x9x8x4xf32, #tpu.memory_space<vmem>>, vector<1x1x8x4xf32>
    %87 = vector.shape_cast %86 : vector<1x1x8x4xf32> to vector<8x4xf32>
    %88 = vector.broadcast %85 : f32 to vector<8x4xf32>
    %89 = arith.mulf %88, %87 : vector<8x4xf32>
    %90 = arith.addf %83, %89 : vector<8x4xf32>
    %91 = arith.index_cast %arg0 : i32 to index
    %c1 = arith.constant 1 : index
    %92 = memref.load %arg2[%91, %c1] : memref<2x4xf32, #tpu.memory_space<smem>>
    %c1_89 = arith.constant 1 : index
    %c0_90 = arith.constant 0 : index
    %c0_91 = arith.constant 0 : index
    %c0_92 = arith.constant 0 : index
    %93 = vector.load %arg4[%c1_89, %c0_90, %c0_91, %c0_92] : memref<4x9x8x4xf32, #tpu.memory_space<vmem>>, vector<1x1x8x4xf32>
    %94 = vector.shape_cast %93 : vector<1x1x8x4xf32> to vector<8x4xf32>
    %95 = vector.broadcast %92 : f32 to vector<8x4xf32>
    %96 = arith.mulf %95, %94 : vector<8x4xf32>
    %97 = arith.addf %90, %96 : vector<8x4xf32>
    %98 = arith.index_cast %arg0 : i32 to index
    %c2 = arith.constant 2 : index
    %99 = memref.load %arg2[%98, %c2] : memref<2x4xf32, #tpu.memory_space<smem>>
    %c2_93 = arith.constant 2 : index
    %c0_94 = arith.constant 0 : index
    %c0_95 = arith.constant 0 : index
    %c0_96 = arith.constant 0 : index
    %100 = vector.load %arg4[%c2_93, %c0_94, %c0_95, %c0_96] : memref<4x9x8x4xf32, #tpu.memory_space<vmem>>, vector<1x1x8x4xf32>
    %101 = vector.shape_cast %100 : vector<1x1x8x4xf32> to vector<8x4xf32>
    %102 = vector.broadcast %99 : f32 to vector<8x4xf32>
    %103 = arith.mulf %102, %101 : vector<8x4xf32>
    %104 = arith.addf %97, %103 : vector<8x4xf32>
    %105 = arith.index_cast %arg0 : i32 to index
    %c3 = arith.constant 3 : index
    %106 = memref.load %arg2[%105, %c3] : memref<2x4xf32, #tpu.memory_space<smem>>
    %c3_97 = arith.constant 3 : index
    %c0_98 = arith.constant 0 : index
    %c0_99 = arith.constant 0 : index
    %c0_100 = arith.constant 0 : index
    %107 = vector.load %arg4[%c3_97, %c0_98, %c0_99, %c0_100] : memref<4x9x8x4xf32, #tpu.memory_space<vmem>>, vector<1x1x8x4xf32>
    %108 = vector.shape_cast %107 : vector<1x1x8x4xf32> to vector<8x4xf32>
    %109 = vector.broadcast %106 : f32 to vector<8x4xf32>
    %110 = arith.mulf %109, %108 : vector<8x4xf32>
    %111 = arith.addf %104, %110 : vector<8x4xf32>
    %c0_101 = arith.constant 0 : index
    %c0_102 = arith.constant 0 : index
    %112 = vector.load %arg7[%c0_101, %c0_102] : memref<4x326xf32, #tpu.memory_space<vmem>>, vector<4x288xf32>
    %cst_103 = arith.constant dense<0.000000e+00> : vector<8x288xf32>
    %113 = tpu.matmul %111, %112, %cst_103 {dimension_numbers = #tpu.dot_dimension_numbers<[1], [0], [0], [1], [0, 0, 1, 1], [], []>} : vector<8x4xf32>, vector<4x288xf32>, vector<8x288xf32> -> vector<8x288xf32>
    %114 = arith.addf %82, %113 : vector<8x288xf32>
    %cst_104 = arith.constant 0.000000e+00 : f32
    %115 = vector.broadcast %cst_104 : f32 to vector<8x4xf32>
    %116 = arith.index_cast %arg0 : i32 to index
    %c0_105 = arith.constant 0 : index
    %117 = memref.load %arg2[%116, %c0_105] : memref<2x4xf32, #tpu.memory_space<smem>>
    %c0_106 = arith.constant 0 : index
    %c1_107 = arith.constant 1 : index
    %c0_108 = arith.constant 0 : index
    %c0_109 = arith.constant 0 : index
    %118 = vector.load %arg4[%c0_106, %c1_107, %c0_108, %c0_109] : memref<4x9x8x4xf32, #tpu.memory_space<vmem>>, vector<1x1x8x4xf32>
    %119 = vector.shape_cast %118 : vector<1x1x8x4xf32> to vector<8x4xf32>
    %120 = vector.broadcast %117 : f32 to vector<8x4xf32>
    %121 = arith.mulf %120, %119 : vector<8x4xf32>
    %122 = arith.addf %115, %121 : vector<8x4xf32>
    %123 = arith.index_cast %arg0 : i32 to index
    %c1_110 = arith.constant 1 : index
    %124 = memref.load %arg2[%123, %c1_110] : memref<2x4xf32, #tpu.memory_space<smem>>
    %c1_111 = arith.constant 1 : index
    %c1_112 = arith.constant 1 : index
    %c0_113 = arith.constant 0 : index
    %c0_114 = arith.constant 0 : index
    %125 = vector.load %arg4[%c1_111, %c1_112, %c0_113, %c0_114] : memref<4x9x8x4xf32, #tpu.memory_space<vmem>>, vector<1x1x8x4xf32>
    %126 = vector.shape_cast %125 : vector<1x1x8x4xf32> to vector<8x4xf32>
    %127 = vector.broadcast %124 : f32 to vector<8x4xf32>
    %128 = arith.mulf %127, %126 : vector<8x4xf32>
    %129 = arith.addf %122, %128 : vector<8x4xf32>
    %130 = arith.index_cast %arg0 : i32 to index
    %c2_115 = arith.constant 2 : index
    %131 = memref.load %arg2[%130, %c2_115] : memref<2x4xf32, #tpu.memory_space<smem>>
    %c2_116 = arith.constant 2 : index
    %c1_117 = arith.constant 1 : index
    %c0_118 = arith.constant 0 : index
    %c0_119 = arith.constant 0 : index
    %132 = vector.load %arg4[%c2_116, %c1_117, %c0_118, %c0_119] : memref<4x9x8x4xf32, #tpu.memory_space<vmem>>, vector<1x1x8x4xf32>
    %133 = vector.shape_cast %132 : vector<1x1x8x4xf32> to vector<8x4xf32>
    %134 = vector.broadcast %131 : f32 to vector<8x4xf32>
    %135 = arith.mulf %134, %133 : vector<8x4xf32>
    %136 = arith.addf %129, %135 : vector<8x4xf32>
    %137 = arith.index_cast %arg0 : i32 to index
    %c3_120 = arith.constant 3 : index
    %138 = memref.load %arg2[%137, %c3_120] : memref<2x4xf32, #tpu.memory_space<smem>>
    %c3_121 = arith.constant 3 : index
    %c1_122 = arith.constant 1 : index
    %c0_123 = arith.constant 0 : index
    %c0_124 = arith.constant 0 : index
    %139 = vector.load %arg4[%c3_121, %c1_122, %c0_123, %c0_124] : memref<4x9x8x4xf32, #tpu.memory_space<vmem>>, vector<1x1x8x4xf32>
    %140 = vector.shape_cast %139 : vector<1x1x8x4xf32> to vector<8x4xf32>
    %141 = vector.broadcast %138 : f32 to vector<8x4xf32>
    %142 = arith.mulf %141, %140 : vector<8x4xf32>
    %143 = arith.addf %136, %142 : vector<8x4xf32>
    %c0_125 = arith.constant 0 : index
    %c1_126 = arith.constant 1 : index
    %144 = vector.load %arg7[%c0_125, %c1_126] : memref<4x326xf32, #tpu.memory_space<vmem>>, vector<4x288xf32>
    %cst_127 = arith.constant dense<0.000000e+00> : vector<8x288xf32>
    %145 = tpu.matmul %143, %144, %cst_127 {dimension_numbers = #tpu.dot_dimension_numbers<[1], [0], [0], [1], [0, 0, 1, 1], [], []>} : vector<8x4xf32>, vector<4x288xf32>, vector<8x288xf32> -> vector<8x288xf32>
    %146 = arith.addf %114, %145 : vector<8x288xf32>
    %cst_128 = arith.constant 0.000000e+00 : f32
    %147 = vector.broadcast %cst_128 : f32 to vector<8x4xf32>
    %148 = arith.index_cast %arg0 : i32 to index
    %c0_129 = arith.constant 0 : index
    %149 = memref.load %arg2[%148, %c0_129] : memref<2x4xf32, #tpu.memory_space<smem>>
    %c0_130 = arith.constant 0 : index
    %c2_131 = arith.constant 2 : index
    %c0_132 = arith.constant 0 : index
    %c0_133 = arith.constant 0 : index
    %150 = vector.load %arg4[%c0_130, %c2_131, %c0_132, %c0_133] : memref<4x9x8x4xf32, #tpu.memory_space<vmem>>, vector<1x1x8x4xf32>
    %151 = vector.shape_cast %150 : vector<1x1x8x4xf32> to vector<8x4xf32>
    %152 = vector.broadcast %149 : f32 to vector<8x4xf32>
    %153 = arith.mulf %152, %151 : vector<8x4xf32>
    %154 = arith.addf %147, %153 : vector<8x4xf32>
    %155 = arith.index_cast %arg0 : i32 to index
    %c1_134 = arith.constant 1 : index
    %156 = memref.load %arg2[%155, %c1_134] : memref<2x4xf32, #tpu.memory_space<smem>>
    %c1_135 = arith.constant 1 : index
    %c2_136 = arith.constant 2 : index
    %c0_137 = arith.constant 0 : index
    %c0_138 = arith.constant 0 : index
    %157 = vector.load %arg4[%c1_135, %c2_136, %c0_137, %c0_138] : memref<4x9x8x4xf32, #tpu.memory_space<vmem>>, vector<1x1x8x4xf32>
    %158 = vector.shape_cast %157 : vector<1x1x8x4xf32> to vector<8x4xf32>
    %159 = vector.broadcast %156 : f32 to vector<8x4xf32>
    %160 = arith.mulf %159, %158 : vector<8x4xf32>
    %161 = arith.addf %154, %160 : vector<8x4xf32>
    %162 = arith.index_cast %arg0 : i32 to index
    %c2_139 = arith.constant 2 : index
    %163 = memref.load %arg2[%162, %c2_139] : memref<2x4xf32, #tpu.memory_space<smem>>
    %c2_140 = arith.constant 2 : index
    %c2_141 = arith.constant 2 : index
    %c0_142 = arith.constant 0 : index
    %c0_143 = arith.constant 0 : index
    %164 = vector.load %arg4[%c2_140, %c2_141, %c0_142, %c0_143] : memref<4x9x8x4xf32, #tpu.memory_space<vmem>>, vector<1x1x8x4xf32>
    %165 = vector.shape_cast %164 : vector<1x1x8x4xf32> to vector<8x4xf32>
    %166 = vector.broadcast %163 : f32 to vector<8x4xf32>
    %167 = arith.mulf %166, %165 : vector<8x4xf32>
    %168 = arith.addf %161, %167 : vector<8x4xf32>
    %169 = arith.index_cast %arg0 : i32 to index
    %c3_144 = arith.constant 3 : index
    %170 = memref.load %arg2[%169, %c3_144] : memref<2x4xf32, #tpu.memory_space<smem>>
    %c3_145 = arith.constant 3 : index
    %c2_146 = arith.constant 2 : index
    %c0_147 = arith.constant 0 : index
    %c0_148 = arith.constant 0 : index
    %171 = vector.load %arg4[%c3_145, %c2_146, %c0_147, %c0_148] : memref<4x9x8x4xf32, #tpu.memory_space<vmem>>, vector<1x1x8x4xf32>
    %172 = vector.shape_cast %171 : vector<1x1x8x4xf32> to vector<8x4xf32>
    %173 = vector.broadcast %170 : f32 to vector<8x4xf32>
    %174 = arith.mulf %173, %172 : vector<8x4xf32>
    %175 = arith.addf %168, %174 : vector<8x4xf32>
    %c0_149 = arith.constant 0 : index
    %c2_150 = arith.constant 2 : index
    %176 = vector.load %arg7[%c0_149, %c2_150] : memref<4x326xf32, #tpu.memory_space<vmem>>, vector<4x288xf32>
    %cst_151 = arith.constant dense<0.000000e+00> : vector<8x288xf32>
    %177 = tpu.matmul %175, %176, %cst_151 {dimension_numbers = #tpu.dot_dimension_numbers<[1], [0], [0], [1], [0, 0, 1, 1], [], []>} : vector<8x4xf32>, vector<4x288xf32>, vector<8x288xf32> -> vector<8x288xf32>
    %178 = arith.addf %146, %177 : vector<8x288xf32>
    %cst_152 = arith.constant 0.000000e+00 : f32
    %179 = vector.broadcast %cst_152 : f32 to vector<8x4xf32>
    %180 = arith.index_cast %arg0 : i32 to index
    %c0_153 = arith.constant 0 : index
    %181 = memref.load %arg2[%180, %c0_153] : memref<2x4xf32, #tpu.memory_space<smem>>
    %c0_154 = arith.constant 0 : index
    %c3_155 = arith.constant 3 : index
    %c0_156 = arith.constant 0 : index
    %c0_157 = arith.constant 0 : index
    %182 = vector.load %arg4[%c0_154, %c3_155, %c0_156, %c0_157] : memref<4x9x8x4xf32, #tpu.memory_space<vmem>>, vector<1x1x8x4xf32>
    %183 = vector.shape_cast %182 : vector<1x1x8x4xf32> to vector<8x4xf32>
    %184 = vector.broadcast %181 : f32 to vector<8x4xf32>
    %185 = arith.mulf %184, %183 : vector<8x4xf32>
    %186 = arith.addf %179, %185 : vector<8x4xf32>
    %187 = arith.index_cast %arg0 : i32 to index
    %c1_158 = arith.constant 1 : index
    %188 = memref.load %arg2[%187, %c1_158] : memref<2x4xf32, #tpu.memory_space<smem>>
    %c1_159 = arith.constant 1 : index
    %c3_160 = arith.constant 3 : index
    %c0_161 = arith.constant 0 : index
    %c0_162 = arith.constant 0 : index
    %189 = vector.load %arg4[%c1_159, %c3_160, %c0_161, %c0_162] : memref<4x9x8x4xf32, #tpu.memory_space<vmem>>, vector<1x1x8x4xf32>
    %190 = vector.shape_cast %189 : vector<1x1x8x4xf32> to vector<8x4xf32>
    %191 = vector.broadcast %188 : f32 to vector<8x4xf32>
    %192 = arith.mulf %191, %190 : vector<8x4xf32>
    %193 = arith.addf %186, %192 : vector<8x4xf32>
    %194 = arith.index_cast %arg0 : i32 to index
    %c2_163 = arith.constant 2 : index
    %195 = memref.load %arg2[%194, %c2_163] : memref<2x4xf32, #tpu.memory_space<smem>>
    %c2_164 = arith.constant 2 : index
    %c3_165 = arith.constant 3 : index
    %c0_166 = arith.constant 0 : index
    %c0_167 = arith.constant 0 : index
    %196 = vector.load %arg4[%c2_164, %c3_165, %c0_166, %c0_167] : memref<4x9x8x4xf32, #tpu.memory_space<vmem>>, vector<1x1x8x4xf32>
    %197 = vector.shape_cast %196 : vector<1x1x8x4xf32> to vector<8x4xf32>
    %198 = vector.broadcast %195 : f32 to vector<8x4xf32>
    %199 = arith.mulf %198, %197 : vector<8x4xf32>
    %200 = arith.addf %193, %199 : vector<8x4xf32>
    %201 = arith.index_cast %arg0 : i32 to index
    %c3_168 = arith.constant 3 : index
    %202 = memref.load %arg2[%201, %c3_168] : memref<2x4xf32, #tpu.memory_space<smem>>
    %c3_169 = arith.constant 3 : index
    %c3_170 = arith.constant 3 : index
    %c0_171 = arith.constant 0 : index
    %c0_172 = arith.constant 0 : index
    %203 = vector.load %arg4[%c3_169, %c3_170, %c0_171, %c0_172] : memref<4x9x8x4xf32, #tpu.memory_space<vmem>>, vector<1x1x8x4xf32>
    %204 = vector.shape_cast %203 : vector<1x1x8x4xf32> to vector<8x4xf32>
    %205 = vector.broadcast %202 : f32 to vector<8x4xf32>
    %206 = arith.mulf %205, %204 : vector<8x4xf32>
    %207 = arith.addf %200, %206 : vector<8x4xf32>
    %c0_173 = arith.constant 0 : index
    %c18 = arith.constant 18 : index
    %208 = vector.load %arg7[%c0_173, %c18] : memref<4x326xf32, #tpu.memory_space<vmem>>, vector<4x288xf32>
    %cst_174 = arith.constant dense<0.000000e+00> : vector<8x288xf32>
    %209 = tpu.matmul %207, %208, %cst_174 {dimension_numbers = #tpu.dot_dimension_numbers<[1], [0], [0], [1], [0, 0, 1, 1], [], []>} : vector<8x4xf32>, vector<4x288xf32>, vector<8x288xf32> -> vector<8x288xf32>
    %210 = arith.addf %178, %209 : vector<8x288xf32>
    %cst_175 = arith.constant 0.000000e+00 : f32
    %211 = vector.broadcast %cst_175 : f32 to vector<8x4xf32>
    %212 = arith.index_cast %arg0 : i32 to index
    %c0_176 = arith.constant 0 : index
    %213 = memref.load %arg2[%212, %c0_176] : memref<2x4xf32, #tpu.memory_space<smem>>
    %c0_177 = arith.constant 0 : index
    %c4 = arith.constant 4 : index
    %c0_178 = arith.constant 0 : index
    %c0_179 = arith.constant 0 : index
    %214 = vector.load %arg4[%c0_177, %c4, %c0_178, %c0_179] : memref<4x9x8x4xf32, #tpu.memory_space<vmem>>, vector<1x1x8x4xf32>
    %215 = vector.shape_cast %214 : vector<1x1x8x4xf32> to vector<8x4xf32>
    %216 = vector.broadcast %213 : f32 to vector<8x4xf32>
    %217 = arith.mulf %216, %215 : vector<8x4xf32>
    %218 = arith.addf %211, %217 : vector<8x4xf32>
    %219 = arith.index_cast %arg0 : i32 to index
    %c1_180 = arith.constant 1 : index
    %220 = memref.load %arg2[%219, %c1_180] : memref<2x4xf32, #tpu.memory_space<smem>>
    %c1_181 = arith.constant 1 : index
    %c4_182 = arith.constant 4 : index
    %c0_183 = arith.constant 0 : index
    %c0_184 = arith.constant 0 : index
    %221 = vector.load %arg4[%c1_181, %c4_182, %c0_183, %c0_184] : memref<4x9x8x4xf32, #tpu.memory_space<vmem>>, vector<1x1x8x4xf32>
    %222 = vector.shape_cast %221 : vector<1x1x8x4xf32> to vector<8x4xf32>
    %223 = vector.broadcast %220 : f32 to vector<8x4xf32>
    %224 = arith.mulf %223, %222 : vector<8x4xf32>
    %225 = arith.addf %218, %224 : vector<8x4xf32>
    %226 = arith.index_cast %arg0 : i32 to index
    %c2_185 = arith.constant 2 : index
    %227 = memref.load %arg2[%226, %c2_185] : memref<2x4xf32, #tpu.memory_space<smem>>
    %c2_186 = arith.constant 2 : index
    %c4_187 = arith.constant 4 : index
    %c0_188 = arith.constant 0 : index
    %c0_189 = arith.constant 0 : index
    %228 = vector.load %arg4[%c2_186, %c4_187, %c0_188, %c0_189] : memref<4x9x8x4xf32, #tpu.memory_space<vmem>>, vector<1x1x8x4xf32>
    %229 = vector.shape_cast %228 : vector<1x1x8x4xf32> to vector<8x4xf32>
    %230 = vector.broadcast %227 : f32 to vector<8x4xf32>
    %231 = arith.mulf %230, %229 : vector<8x4xf32>
    %232 = arith.addf %225, %231 : vector<8x4xf32>
    %233 = arith.index_cast %arg0 : i32 to index
    %c3_190 = arith.constant 3 : index
    %234 = memref.load %arg2[%233, %c3_190] : memref<2x4xf32, #tpu.memory_space<smem>>
    %c3_191 = arith.constant 3 : index
    %c4_192 = arith.constant 4 : index
    %c0_193 = arith.constant 0 : index
    %c0_194 = arith.constant 0 : index
    %235 = vector.load %arg4[%c3_191, %c4_192, %c0_193, %c0_194] : memref<4x9x8x4xf32, #tpu.memory_space<vmem>>, vector<1x1x8x4xf32>
    %236 = vector.shape_cast %235 : vector<1x1x8x4xf32> to vector<8x4xf32>
    %237 = vector.broadcast %234 : f32 to vector<8x4xf32>
    %238 = arith.mulf %237, %236 : vector<8x4xf32>
    %239 = arith.addf %232, %238 : vector<8x4xf32>
    %c0_195 = arith.constant 0 : index
    %c19_196 = arith.constant 19 : index
    %240 = vector.load %arg7[%c0_195, %c19_196] : memref<4x326xf32, #tpu.memory_space<vmem>>, vector<4x288xf32>
    %cst_197 = arith.constant dense<0.000000e+00> : vector<8x288xf32>
    %241 = tpu.matmul %239, %240, %cst_197 {dimension_numbers = #tpu.dot_dimension_numbers<[1], [0], [0], [1], [0, 0, 1, 1], [], []>} : vector<8x4xf32>, vector<4x288xf32>, vector<8x288xf32> -> vector<8x288xf32>
    %242 = arith.addf %210, %241 : vector<8x288xf32>
    %cst_198 = arith.constant 0.000000e+00 : f32
    %243 = vector.broadcast %cst_198 : f32 to vector<8x4xf32>
    %244 = arith.index_cast %arg0 : i32 to index
    %c0_199 = arith.constant 0 : index
    %245 = memref.load %arg2[%244, %c0_199] : memref<2x4xf32, #tpu.memory_space<smem>>
    %c0_200 = arith.constant 0 : index
    %c5 = arith.constant 5 : index
    %c0_201 = arith.constant 0 : index
    %c0_202 = arith.constant 0 : index
    %246 = vector.load %arg4[%c0_200, %c5, %c0_201, %c0_202] : memref<4x9x8x4xf32, #tpu.memory_space<vmem>>, vector<1x1x8x4xf32>
    %247 = vector.shape_cast %246 : vector<1x1x8x4xf32> to vector<8x4xf32>
    %248 = vector.broadcast %245 : f32 to vector<8x4xf32>
    %249 = arith.mulf %248, %247 : vector<8x4xf32>
    %250 = arith.addf %243, %249 : vector<8x4xf32>
    %251 = arith.index_cast %arg0 : i32 to index
    %c1_203 = arith.constant 1 : index
    %252 = memref.load %arg2[%251, %c1_203] : memref<2x4xf32, #tpu.memory_space<smem>>
    %c1_204 = arith.constant 1 : index
    %c5_205 = arith.constant 5 : index
    %c0_206 = arith.constant 0 : index
    %c0_207 = arith.constant 0 : index
    %253 = vector.load %arg4[%c1_204, %c5_205, %c0_206, %c0_207] : memref<4x9x8x4xf32, #tpu.memory_space<vmem>>, vector<1x1x8x4xf32>
    %254 = vector.shape_cast %253 : vector<1x1x8x4xf32> to vector<8x4xf32>
    %255 = vector.broadcast %252 : f32 to vector<8x4xf32>
    %256 = arith.mulf %255, %254 : vector<8x4xf32>
    %257 = arith.addf %250, %256 : vector<8x4xf32>
    %258 = arith.index_cast %arg0 : i32 to index
    %c2_208 = arith.constant 2 : index
    %259 = memref.load %arg2[%258, %c2_208] : memref<2x4xf32, #tpu.memory_space<smem>>
    %c2_209 = arith.constant 2 : index
    %c5_210 = arith.constant 5 : index
    %c0_211 = arith.constant 0 : index
    %c0_212 = arith.constant 0 : index
    %260 = vector.load %arg4[%c2_209, %c5_210, %c0_211, %c0_212] : memref<4x9x8x4xf32, #tpu.memory_space<vmem>>, vector<1x1x8x4xf32>
    %261 = vector.shape_cast %260 : vector<1x1x8x4xf32> to vector<8x4xf32>
    %262 = vector.broadcast %259 : f32 to vector<8x4xf32>
    %263 = arith.mulf %262, %261 : vector<8x4xf32>
    %264 = arith.addf %257, %263 : vector<8x4xf32>
    %265 = arith.index_cast %arg0 : i32 to index
    %c3_213 = arith.constant 3 : index
    %266 = memref.load %arg2[%265, %c3_213] : memref<2x4xf32, #tpu.memory_space<smem>>
    %c3_214 = arith.constant 3 : index
    %c5_215 = arith.constant 5 : index
    %c0_216 = arith.constant 0 : index
    %c0_217 = arith.constant 0 : index
    %267 = vector.load %arg4[%c3_214, %c5_215, %c0_216, %c0_217] : memref<4x9x8x4xf32, #tpu.memory_space<vmem>>, vector<1x1x8x4xf32>
    %268 = vector.shape_cast %267 : vector<1x1x8x4xf32> to vector<8x4xf32>
    %269 = vector.broadcast %266 : f32 to vector<8x4xf32>
    %270 = arith.mulf %269, %268 : vector<8x4xf32>
    %271 = arith.addf %264, %270 : vector<8x4xf32>
    %c0_218 = arith.constant 0 : index
    %c20 = arith.constant 20 : index
    %272 = vector.load %arg7[%c0_218, %c20] : memref<4x326xf32, #tpu.memory_space<vmem>>, vector<4x288xf32>
    %cst_219 = arith.constant dense<0.000000e+00> : vector<8x288xf32>
    %273 = tpu.matmul %271, %272, %cst_219 {dimension_numbers = #tpu.dot_dimension_numbers<[1], [0], [0], [1], [0, 0, 1, 1], [], []>} : vector<8x4xf32>, vector<4x288xf32>, vector<8x288xf32> -> vector<8x288xf32>
    %274 = arith.addf %242, %273 : vector<8x288xf32>
    %cst_220 = arith.constant 0.000000e+00 : f32
    %275 = vector.broadcast %cst_220 : f32 to vector<8x4xf32>
    %276 = arith.index_cast %arg0 : i32 to index
    %c0_221 = arith.constant 0 : index
    %277 = memref.load %arg2[%276, %c0_221] : memref<2x4xf32, #tpu.memory_space<smem>>
    %c0_222 = arith.constant 0 : index
    %c6 = arith.constant 6 : index
    %c0_223 = arith.constant 0 : index
    %c0_224 = arith.constant 0 : index
    %278 = vector.load %arg4[%c0_222, %c6, %c0_223, %c0_224] : memref<4x9x8x4xf32, #tpu.memory_space<vmem>>, vector<1x1x8x4xf32>
    %279 = vector.shape_cast %278 : vector<1x1x8x4xf32> to vector<8x4xf32>
    %280 = vector.broadcast %277 : f32 to vector<8x4xf32>
    %281 = arith.mulf %280, %279 : vector<8x4xf32>
    %282 = arith.addf %275, %281 : vector<8x4xf32>
    %283 = arith.index_cast %arg0 : i32 to index
    %c1_225 = arith.constant 1 : index
    %284 = memref.load %arg2[%283, %c1_225] : memref<2x4xf32, #tpu.memory_space<smem>>
    %c1_226 = arith.constant 1 : index
    %c6_227 = arith.constant 6 : index
    %c0_228 = arith.constant 0 : index
    %c0_229 = arith.constant 0 : index
    %285 = vector.load %arg4[%c1_226, %c6_227, %c0_228, %c0_229] : memref<4x9x8x4xf32, #tpu.memory_space<vmem>>, vector<1x1x8x4xf32>
    %286 = vector.shape_cast %285 : vector<1x1x8x4xf32> to vector<8x4xf32>
    %287 = vector.broadcast %284 : f32 to vector<8x4xf32>
    %288 = arith.mulf %287, %286 : vector<8x4xf32>
    %289 = arith.addf %282, %288 : vector<8x4xf32>
    %290 = arith.index_cast %arg0 : i32 to index
    %c2_230 = arith.constant 2 : index
    %291 = memref.load %arg2[%290, %c2_230] : memref<2x4xf32, #tpu.memory_space<smem>>
    %c2_231 = arith.constant 2 : index
    %c6_232 = arith.constant 6 : index
    %c0_233 = arith.constant 0 : index
    %c0_234 = arith.constant 0 : index
    %292 = vector.load %arg4[%c2_231, %c6_232, %c0_233, %c0_234] : memref<4x9x8x4xf32, #tpu.memory_space<vmem>>, vector<1x1x8x4xf32>
    %293 = vector.shape_cast %292 : vector<1x1x8x4xf32> to vector<8x4xf32>
    %294 = vector.broadcast %291 : f32 to vector<8x4xf32>
    %295 = arith.mulf %294, %293 : vector<8x4xf32>
    %296 = arith.addf %289, %295 : vector<8x4xf32>
    %297 = arith.index_cast %arg0 : i32 to index
    %c3_235 = arith.constant 3 : index
    %298 = memref.load %arg2[%297, %c3_235] : memref<2x4xf32, #tpu.memory_space<smem>>
    %c3_236 = arith.constant 3 : index
    %c6_237 = arith.constant 6 : index
    %c0_238 = arith.constant 0 : index
    %c0_239 = arith.constant 0 : index
    %299 = vector.load %arg4[%c3_236, %c6_237, %c0_238, %c0_239] : memref<4x9x8x4xf32, #tpu.memory_space<vmem>>, vector<1x1x8x4xf32>
    %300 = vector.shape_cast %299 : vector<1x1x8x4xf32> to vector<8x4xf32>
    %301 = vector.broadcast %298 : f32 to vector<8x4xf32>
    %302 = arith.mulf %301, %300 : vector<8x4xf32>
    %303 = arith.addf %296, %302 : vector<8x4xf32>
    %c0_240 = arith.constant 0 : index
    %c36 = arith.constant 36 : index
    %304 = vector.load %arg7[%c0_240, %c36] : memref<4x326xf32, #tpu.memory_space<vmem>>, vector<4x288xf32>
    %cst_241 = arith.constant dense<0.000000e+00> : vector<8x288xf32>
    %305 = tpu.matmul %303, %304, %cst_241 {dimension_numbers = #tpu.dot_dimension_numbers<[1], [0], [0], [1], [0, 0, 1, 1], [], []>} : vector<8x4xf32>, vector<4x288xf32>, vector<8x288xf32> -> vector<8x288xf32>
    %306 = arith.addf %274, %305 : vector<8x288xf32>
    %cst_242 = arith.constant 0.000000e+00 : f32
    %307 = vector.broadcast %cst_242 : f32 to vector<8x4xf32>
    %308 = arith.index_cast %arg0 : i32 to index
    %c0_243 = arith.constant 0 : index
    %309 = memref.load %arg2[%308, %c0_243] : memref<2x4xf32, #tpu.memory_space<smem>>
    %c0_244 = arith.constant 0 : index
    %c7 = arith.constant 7 : index
    %c0_245 = arith.constant 0 : index
    %c0_246 = arith.constant 0 : index
    %310 = vector.load %arg4[%c0_244, %c7, %c0_245, %c0_246] : memref<4x9x8x4xf32, #tpu.memory_space<vmem>>, vector<1x1x8x4xf32>
    %311 = vector.shape_cast %310 : vector<1x1x8x4xf32> to vector<8x4xf32>
    %312 = vector.broadcast %309 : f32 to vector<8x4xf32>
    %313 = arith.mulf %312, %311 : vector<8x4xf32>
    %314 = arith.addf %307, %313 : vector<8x4xf32>
    %315 = arith.index_cast %arg0 : i32 to index
    %c1_247 = arith.constant 1 : index
    %316 = memref.load %arg2[%315, %c1_247] : memref<2x4xf32, #tpu.memory_space<smem>>
    %c1_248 = arith.constant 1 : index
    %c7_249 = arith.constant 7 : index
    %c0_250 = arith.constant 0 : index
    %c0_251 = arith.constant 0 : index
    %317 = vector.load %arg4[%c1_248, %c7_249, %c0_250, %c0_251] : memref<4x9x8x4xf32, #tpu.memory_space<vmem>>, vector<1x1x8x4xf32>
    %318 = vector.shape_cast %317 : vector<1x1x8x4xf32> to vector<8x4xf32>
    %319 = vector.broadcast %316 : f32 to vector<8x4xf32>
    %320 = arith.mulf %319, %318 : vector<8x4xf32>
    %321 = arith.addf %314, %320 : vector<8x4xf32>
    %322 = arith.index_cast %arg0 : i32 to index
    %c2_252 = arith.constant 2 : index
    %323 = memref.load %arg2[%322, %c2_252] : memref<2x4xf32, #tpu.memory_space<smem>>
    %c2_253 = arith.constant 2 : index
    %c7_254 = arith.constant 7 : index
    %c0_255 = arith.constant 0 : index
    %c0_256 = arith.constant 0 : index
    %324 = vector.load %arg4[%c2_253, %c7_254, %c0_255, %c0_256] : memref<4x9x8x4xf32, #tpu.memory_space<vmem>>, vector<1x1x8x4xf32>
    %325 = vector.shape_cast %324 : vector<1x1x8x4xf32> to vector<8x4xf32>
    %326 = vector.broadcast %323 : f32 to vector<8x4xf32>
    %327 = arith.mulf %326, %325 : vector<8x4xf32>
    %328 = arith.addf %321, %327 : vector<8x4xf32>
    %329 = arith.index_cast %arg0 : i32 to index
    %c3_257 = arith.constant 3 : index
    %330 = memref.load %arg2[%329, %c3_257] : memref<2x4xf32, #tpu.memory_space<smem>>
    %c3_258 = arith.constant 3 : index
    %c7_259 = arith.constant 7 : index
    %c0_260 = arith.constant 0 : index
    %c0_261 = arith.constant 0 : index
    %331 = vector.load %arg4[%c3_258, %c7_259, %c0_260, %c0_261] : memref<4x9x8x4xf32, #tpu.memory_space<vmem>>, vector<1x1x8x4xf32>
    %332 = vector.shape_cast %331 : vector<1x1x8x4xf32> to vector<8x4xf32>
    %333 = vector.broadcast %330 : f32 to vector<8x4xf32>
    %334 = arith.mulf %333, %332 : vector<8x4xf32>
    %335 = arith.addf %328, %334 : vector<8x4xf32>
    %c0_262 = arith.constant 0 : index
    %c37_263 = arith.constant 37 : index
    %336 = vector.load %arg7[%c0_262, %c37_263] : memref<4x326xf32, #tpu.memory_space<vmem>>, vector<4x288xf32>
    %cst_264 = arith.constant dense<0.000000e+00> : vector<8x288xf32>
    %337 = tpu.matmul %335, %336, %cst_264 {dimension_numbers = #tpu.dot_dimension_numbers<[1], [0], [0], [1], [0, 0, 1, 1], [], []>} : vector<8x4xf32>, vector<4x288xf32>, vector<8x288xf32> -> vector<8x288xf32>
    %338 = arith.addf %306, %337 : vector<8x288xf32>
    %cst_265 = arith.constant 0.000000e+00 : f32
    %339 = vector.broadcast %cst_265 : f32 to vector<8x4xf32>
    %340 = arith.index_cast %arg0 : i32 to index
    %c0_266 = arith.constant 0 : index
    %341 = memref.load %arg2[%340, %c0_266] : memref<2x4xf32, #tpu.memory_space<smem>>
    %c0_267 = arith.constant 0 : index
    %c8 = arith.constant 8 : index
    %c0_268 = arith.constant 0 : index
    %c0_269 = arith.constant 0 : index
    %342 = vector.load %arg4[%c0_267, %c8, %c0_268, %c0_269] : memref<4x9x8x4xf32, #tpu.memory_space<vmem>>, vector<1x1x8x4xf32>
    %343 = vector.shape_cast %342 : vector<1x1x8x4xf32> to vector<8x4xf32>
    %344 = vector.broadcast %341 : f32 to vector<8x4xf32>
    %345 = arith.mulf %344, %343 : vector<8x4xf32>
    %346 = arith.addf %339, %345 : vector<8x4xf32>
    %347 = arith.index_cast %arg0 : i32 to index
    %c1_270 = arith.constant 1 : index
    %348 = memref.load %arg2[%347, %c1_270] : memref<2x4xf32, #tpu.memory_space<smem>>
    %c1_271 = arith.constant 1 : index
    %c8_272 = arith.constant 8 : index
    %c0_273 = arith.constant 0 : index
    %c0_274 = arith.constant 0 : index
    %349 = vector.load %arg4[%c1_271, %c8_272, %c0_273, %c0_274] : memref<4x9x8x4xf32, #tpu.memory_space<vmem>>, vector<1x1x8x4xf32>
    %350 = vector.shape_cast %349 : vector<1x1x8x4xf32> to vector<8x4xf32>
    %351 = vector.broadcast %348 : f32 to vector<8x4xf32>
    %352 = arith.mulf %351, %350 : vector<8x4xf32>
    %353 = arith.addf %346, %352 : vector<8x4xf32>
    %354 = arith.index_cast %arg0 : i32 to index
    %c2_275 = arith.constant 2 : index
    %355 = memref.load %arg2[%354, %c2_275] : memref<2x4xf32, #tpu.memory_space<smem>>
    %c2_276 = arith.constant 2 : index
    %c8_277 = arith.constant 8 : index
    %c0_278 = arith.constant 0 : index
    %c0_279 = arith.constant 0 : index
    %356 = vector.load %arg4[%c2_276, %c8_277, %c0_278, %c0_279] : memref<4x9x8x4xf32, #tpu.memory_space<vmem>>, vector<1x1x8x4xf32>
    %357 = vector.shape_cast %356 : vector<1x1x8x4xf32> to vector<8x4xf32>
    %358 = vector.broadcast %355 : f32 to vector<8x4xf32>
    %359 = arith.mulf %358, %357 : vector<8x4xf32>
    %360 = arith.addf %353, %359 : vector<8x4xf32>
    %361 = arith.index_cast %arg0 : i32 to index
    %c3_280 = arith.constant 3 : index
    %362 = memref.load %arg2[%361, %c3_280] : memref<2x4xf32, #tpu.memory_space<smem>>
    %c3_281 = arith.constant 3 : index
    %c8_282 = arith.constant 8 : index
    %c0_283 = arith.constant 0 : index
    %c0_284 = arith.constant 0 : index
    %363 = vector.load %arg4[%c3_281, %c8_282, %c0_283, %c0_284] : memref<4x9x8x4xf32, #tpu.memory_space<vmem>>, vector<1x1x8x4xf32>
    %364 = vector.shape_cast %363 : vector<1x1x8x4xf32> to vector<8x4xf32>
    %365 = vector.broadcast %362 : f32 to vector<8x4xf32>
    %366 = arith.mulf %365, %364 : vector<8x4xf32>
    %367 = arith.addf %360, %366 : vector<8x4xf32>
    %c0_285 = arith.constant 0 : index
    %c38 = arith.constant 38 : index
    %368 = vector.load %arg7[%c0_285, %c38] : memref<4x326xf32, #tpu.memory_space<vmem>>, vector<4x288xf32>
    %cst_286 = arith.constant dense<0.000000e+00> : vector<8x288xf32>
    %369 = tpu.matmul %367, %368, %cst_286 {dimension_numbers = #tpu.dot_dimension_numbers<[1], [0], [0], [1], [0, 0, 1, 1], [], []>} : vector<8x4xf32>, vector<4x288xf32>, vector<8x288xf32> -> vector<8x288xf32>
    %370 = arith.addf %338, %369 : vector<8x288xf32>
    %cst_287 = arith.constant 0.000000e+00 : f32
    %371 = vector.broadcast %cst_287 : f32 to vector<8x1xf32>
    %372 = arith.index_cast %arg0 : i32 to index
    %c0_288 = arith.constant 0 : index
    %373 = memref.load %arg2[%372, %c0_288] : memref<2x4xf32, #tpu.memory_space<smem>>
    %c0_289 = arith.constant 0 : index
    %c0_290 = arith.constant 0 : index
    %c0_291 = arith.constant 0 : index
    %374 = vector.load %arg5[%c0_289, %c0_290, %c0_291] : memref<4x8x1xf32, #tpu.memory_space<vmem>>, vector<1x8x1xf32>
    %375 = vector.shape_cast %374 : vector<1x8x1xf32> to vector<8x1xf32>
    %376 = vector.broadcast %373 : f32 to vector<8x1xf32>
    %377 = arith.mulf %376, %375 : vector<8x1xf32>
    %378 = arith.addf %371, %377 : vector<8x1xf32>
    %379 = arith.index_cast %arg0 : i32 to index
    %c1_292 = arith.constant 1 : index
    %380 = memref.load %arg2[%379, %c1_292] : memref<2x4xf32, #tpu.memory_space<smem>>
    %c1_293 = arith.constant 1 : index
    %c0_294 = arith.constant 0 : index
    %c0_295 = arith.constant 0 : index
    %381 = vector.load %arg5[%c1_293, %c0_294, %c0_295] : memref<4x8x1xf32, #tpu.memory_space<vmem>>, vector<1x8x1xf32>
    %382 = vector.shape_cast %381 : vector<1x8x1xf32> to vector<8x1xf32>
    %383 = vector.broadcast %380 : f32 to vector<8x1xf32>
    %384 = arith.mulf %383, %382 : vector<8x1xf32>
    %385 = arith.addf %378, %384 : vector<8x1xf32>
    %386 = arith.index_cast %arg0 : i32 to index
    %c2_296 = arith.constant 2 : index
    %387 = memref.load %arg2[%386, %c2_296] : memref<2x4xf32, #tpu.memory_space<smem>>
    %c2_297 = arith.constant 2 : index
    %c0_298 = arith.constant 0 : index
    %c0_299 = arith.constant 0 : index
    %388 = vector.load %arg5[%c2_297, %c0_298, %c0_299] : memref<4x8x1xf32, #tpu.memory_space<vmem>>, vector<1x8x1xf32>
    %389 = vector.shape_cast %388 : vector<1x8x1xf32> to vector<8x1xf32>
    %390 = vector.broadcast %387 : f32 to vector<8x1xf32>
    %391 = arith.mulf %390, %389 : vector<8x1xf32>
    %392 = arith.addf %385, %391 : vector<8x1xf32>
    %393 = arith.index_cast %arg0 : i32 to index
    %c3_300 = arith.constant 3 : index
    %394 = memref.load %arg2[%393, %c3_300] : memref<2x4xf32, #tpu.memory_space<smem>>
    %c3_301 = arith.constant 3 : index
    %c0_302 = arith.constant 0 : index
    %c0_303 = arith.constant 0 : index
    %395 = vector.load %arg5[%c3_301, %c0_302, %c0_303] : memref<4x8x1xf32, #tpu.memory_space<vmem>>, vector<1x8x1xf32>
    %396 = vector.shape_cast %395 : vector<1x8x1xf32> to vector<8x1xf32>
    %397 = vector.broadcast %394 : f32 to vector<8x1xf32>
    %398 = arith.mulf %397, %396 : vector<8x1xf32>
    %399 = arith.addf %392, %398 : vector<8x1xf32>
    %400 = vector.broadcast %399 : vector<8x1xf32> to vector<8x288xf32>
    %401 = arith.addf %370, %400 : vector<8x288xf32>
    %c0_304 = arith.constant 0 : index
    %c0_305 = arith.constant 0 : index
    %c0_306 = arith.constant 0 : index
    %402 = vector.load %arg6[%c0_304, %c0_305, %c0_306] : memref<1x8x288xf32, #tpu.memory_space<vmem>>, vector<1x8x288xf32>
    %403 = vector.shape_cast %402 : vector<1x8x288xf32> to vector<8x288xf32>
    %404 = vector.shape_cast %401 : vector<8x288xf32> to vector<1x8x288xf32>
    tpu.vector_store %arg6[%c0_304, %c0_305, %c0_306], %404 {strides = array<i32>} : memref<1x8x288xf32, #tpu.memory_space<vmem>>, vector<1x8x288xf32>,
    return
  }
  func.func @transform_0(%arg0: i32, %arg1: i32, %arg2: memref<2x4xf32, #tpu.memory_space<smem>>) -> (i32, i32, i32) {
    %c0_i32 = arith.constant 0 : i32
    %c0_i32_0 = arith.constant 0 : i32
    %c0_i32_1 = arith.constant 0 : i32
    return %arg0, %c0_i32, %c0_i32_0 : i32, i32, i32
  }
  func.func @transform_1(%arg0: i32, %arg1: i32, %arg2: memref<2x4xf32, #tpu.memory_space<smem>>) -> (i32, i32, i32, i32) {
    %c0_i32 = arith.constant 0 : i32
    %c0_i32_0 = arith.constant 0 : i32
    %c0_i32_1 = arith.constant 0 : i32
    %c0_i32_2 = arith.constant 0 : i32
    return %c0_i32, %c0_i32_0, %arg1, %c0_i32_1 : i32, i32, i32, i32
  }
  func.func @transform_2(%arg0: i32, %arg1: i32, %arg2: memref<2x4xf32, #tpu.memory_space<smem>>) -> (i32, i32, i32) {
    %c0_i32 = arith.constant 0 : i32
    %c0_i32_0 = arith.constant 0 : i32
    %c0_i32_1 = arith.constant 0 : i32
    return %c0_i32, %arg1, %c0_i32_0 : i32, i32, i32
  }
  func.func @transform_3(%arg0: i32, %arg1: i32, %arg2: memref<2x4xf32, #tpu.memory_space<smem>>) -> (i32, i32, i32) {
    %c0_i32 = arith.constant 0 : i32
    %c0_i32_0 = arith.constant 0 : i32
    return %arg0, %arg1, %c0_i32 : i32, i32, i32
  }
}

module attributes {stable_mosaic.version = 11 : i64} {
  func.func @_cond_conv_kernel(%arg0: i32, %arg1: i32, %arg2: memref<2x4xf32, #tpu.memory_space<smem>>, %arg3: memref<1x4x256xf32, #tpu.memory_space<vmem>>, %arg4: memref<4x9x8x4xf32, #tpu.memory_space<vmem>>, %arg5: memref<4x8x1xf32, #tpu.memory_space<vmem>>, %arg6: memref<1x8x288xf32, #tpu.memory_space<vmem>>, %arg7: memref<4x326xf32, #tpu.memory_space<vmem>>) attributes {dimension_semantics = [#tpu.dimension_semantics<parallel>, #tpu.dimension_semantics<parallel>], iteration_bounds = array<i64: 2, 1>, scalar_prefetch = 1 : i64, scratch_operands = 1 : i64, tpu.core_type = #tpu.core_type<tc>, window_params = [{transform_indices = @transform_0, window_bounds = array<i64: 1, 4, 256>}, {transform_indices = @transform_1, window_bounds = array<i64: 4, 9, 8, 4>}, {transform_indices = @transform_2, window_bounds = array<i64: 4, 8, 1>}, {transform_indices = @transform_3, window_bounds = array<i64: 1, 8, 288>}]} {
    %cst = arith.constant 0.000000e+00 : f32
    %0 = vector.broadcast %cst : f32 to vector<4x19xf32>
    %c0 = arith.constant 0 : index
    %c0_0 = arith.constant 0 : index
    %1 = vector.load %arg7[%c0, %c0_0] : memref<4x326xf32, #tpu.memory_space<vmem>>, vector<4x19xf32>
    tpu.vector_store %arg7[%c0, %c0_0], %0 {strides = array<i32>} : memref<4x326xf32, #tpu.memory_space<vmem>>, vector<4x19xf32>,
    %c0_1 = arith.constant 0 : index
    %c0_2 = arith.constant 0 : index
    %c0_3 = arith.constant 0 : index
    %2 = vector.load %arg3[%c0_1, %c0_2, %c0_3] : memref<1x4x256xf32, #tpu.memory_space<vmem>>, vector<1x4x16xf32>
    %3 = vector.shape_cast %2 : vector<1x4x16xf32> to vector<4x16xf32>
    %c0_4 = arith.constant 0 : index
    %c19 = arith.constant 19 : index
    %4 = vector.load %arg7[%c0_4, %c19] : memref<4x326xf32, #tpu.memory_space<vmem>>, vector<4x16xf32>
    tpu.vector_store %arg7[%c0_4, %c19], %3 {strides = array<i32>} : memref<4x326xf32, #tpu.memory_space<vmem>>, vector<4x16xf32>,
    %cst_5 = arith.constant 0.000000e+00 : f32
    %5 = vector.broadcast %cst_5 : f32 to vector<4x2xf32>
    %c0_6 = arith.constant 0 : index
    %c35 = arith.constant 35 : index
    %6 = vector.load %arg7[%c0_6, %c35] : memref<4x326xf32, #tpu.memory_space<vmem>>, vector<4x2xf32>
    tpu.vector_store %arg7[%c0_6, %c35], %5 {strides = array<i32>} : memref<4x326xf32, #tpu.memory_space<vmem>>, vector<4x2xf32>,
    %c0_7 = arith.constant 0 : index
    %c0_8 = arith.constant 0 : index
    %c16 = arith.constant 16 : index
    %7 = vector.load %arg3[%c0_7, %c0_8, %c16] : memref<1x4x256xf32, #tpu.memory_space<vmem>>, vector<1x4x16xf32>
    %8 = vector.shape_cast %7 : vector<1x4x16xf32> to vector<4x16xf32>
    %c0_9 = arith.constant 0 : index
    %c37 = arith.constant 37 : index
    %9 = vector.load %arg7[%c0_9, %c37] : memref<4x326xf32, #tpu.memory_space<vmem>>, vector<4x16xf32>
    tpu.vector_store %arg7[%c0_9, %c37], %8 {strides = array<i32>} : memref<4x326xf32, #tpu.memory_space<vmem>>, vector<4x16xf32>,
    %cst_10 = arith.constant 0.000000e+00 : f32
    %10 = vector.broadcast %cst_10 : f32 to vector<4x2xf32>
    %c0_11 = arith.constant 0 : index
    %c53 = arith.constant 53 : index
    %11 = vector.load %arg7[%c0_11, %c53] : memref<4x326xf32, #tpu.memory_space<vmem>>, vector<4x2xf32>
    tpu.vector_store %arg7[%c0_11, %c53], %10 {strides = array<i32>} : memref<4x326xf32, #tpu.memory_space<vmem>>, vector<4x2xf32>,
    %c0_12 = arith.constant 0 : index
    %c0_13 = arith.constant 0 : index
    %c32 = arith.constant 32 : index
    %12 = vector.load %arg3[%c0_12, %c0_13, %c32] : memref<1x4x256xf32, #tpu.memory_space<vmem>>, vector<1x4x16xf32>
    %13 = vector.shape_cast %12 : vector<1x4x16xf32> to vector<4x16xf32>
    %c0_14 = arith.constant 0 : index
    %c55 = arith.constant 55 : index
    %14 = vector.load %arg7[%c0_14, %c55] : memref<4x326xf32, #tpu.memory_space<vmem>>, vector<4x16xf32>
    tpu.vector_store %arg7[%c0_14, %c55], %13 {strides = array<i32>} : memref<4x326xf32, #tpu.memory_space<vmem>>, vector<4x16xf32>,
    %cst_15 = arith.constant 0.000000e+00 : f32
    %15 = vector.broadcast %cst_15 : f32 to vector<4x2xf32>
    %c0_16 = arith.constant 0 : index
    %c71 = arith.constant 71 : index
    %16 = vector.load %arg7[%c0_16, %c71] : memref<4x326xf32, #tpu.memory_space<vmem>>, vector<4x2xf32>
    tpu.vector_store %arg7[%c0_16, %c71], %15 {strides = array<i32>} : memref<4x326xf32, #tpu.memory_space<vmem>>, vector<4x2xf32>,
    %c0_17 = arith.constant 0 : index
    %c0_18 = arith.constant 0 : index
    %c48 = arith.constant 48 : index
    %17 = vector.load %arg3[%c0_17, %c0_18, %c48] : memref<1x4x256xf32, #tpu.memory_space<vmem>>, vector<1x4x16xf32>
    %18 = vector.shape_cast %17 : vector<1x4x16xf32> to vector<4x16xf32>
    %c0_19 = arith.constant 0 : index
    %c73 = arith.constant 73 : index
    %19 = vector.load %arg7[%c0_19, %c73] : memref<4x326xf32, #tpu.memory_space<vmem>>, vector<4x16xf32>
    tpu.vector_store %arg7[%c0_19, %c73], %18 {strides = array<i32>} : memref<4x326xf32, #tpu.memory_space<vmem>>, vector<4x16xf32>,
    %cst_20 = arith.constant 0.000000e+00 : f32
    %20 = vector.broadcast %cst_20 : f32 to vector<4x2xf32>
    %c0_21 = arith.constant 0 : index
    %c89 = arith.constant 89 : index
    %21 = vector.load %arg7[%c0_21, %c89] : memref<4x326xf32, #tpu.memory_space<vmem>>, vector<4x2xf32>
    tpu.vector_store %arg7[%c0_21, %c89], %20 {strides = array<i32>} : memref<4x326xf32, #tpu.memory_space<vmem>>, vector<4x2xf32>,
    %c0_22 = arith.constant 0 : index
    %c0_23 = arith.constant 0 : index
    %c64 = arith.constant 64 : index
    %22 = vector.load %arg3[%c0_22, %c0_23, %c64] : memref<1x4x256xf32, #tpu.memory_space<vmem>>, vector<1x4x16xf32>
    %23 = vector.shape_cast %22 : vector<1x4x16xf32> to vector<4x16xf32>
    %c0_24 = arith.constant 0 : index
    %c91 = arith.constant 91 : index
    %24 = vector.load %arg7[%c0_24, %c91] : memref<4x326xf32, #tpu.memory_space<vmem>>, vector<4x16xf32>
    tpu.vector_store %arg7[%c0_24, %c91], %23 {strides = array<i32>} : memref<4x326xf32, #tpu.memory_space<vmem>>, vector<4x16xf32>,
    %cst_25 = arith.constant 0.000000e+00 : f32
    %25 = vector.broadcast %cst_25 : f32 to vector<4x2xf32>
    %c0_26 = arith.constant 0 : index
    %c107 = arith.constant 107 : index
    %26 = vector.load %arg7[%c0_26, %c107] : memref<4x326xf32, #tpu.memory_space<vmem>>, vector<4x2xf32>
    tpu.vector_store %arg7[%c0_26, %c107], %25 {strides = array<i32>} : memref<4x326xf32, #tpu.memory_space<vmem>>, vector<4x2xf32>,
    %c0_27 = arith.constant 0 : index
    %c0_28 = arith.constant 0 : index
    %c80 = arith.constant 80 : index
    %27 = vector.load %arg3[%c0_27, %c0_28, %c80] : memref<1x4x256xf32, #tpu.memory_space<vmem>>, vector<1x4x16xf32>
    %28 = vector.shape_cast %27 : vector<1x4x16xf32> to vector<4x16xf32>
    %c0_29 = arith.constant 0 : index
    %c109 = arith.constant 109 : index
    %29 = vector.load %arg7[%c0_29, %c109] : memref<4x326xf32, #tpu.memory_space<vmem>>, vector<4x16xf32>
    tpu.vector_store %arg7[%c0_29, %c109], %28 {strides = array<i32>} : memref<4x326xf32, #tpu.memory_space<vmem>>, vector<4x16xf32>,
    %cst_30 = arith.constant 0.000000e+00 : f32
    %30 = vector.broadcast %cst_30 : f32 to vector<4x2xf32>
    %c0_31 = arith.constant 0 : index
    %c125 = arith.constant 125 : index
    %31 = vector.load %arg7[%c0_31, %c125] : memref<4x326xf32, #tpu.memory_space<vmem>>, vector<4x2xf32>
    tpu.vector_store %arg7[%c0_31, %c125], %30 {strides = array<i32>} : memref<4x326xf32, #tpu.memory_space<vmem>>, vector<4x2xf32>,
    %c0_32 = arith.constant 0 : index
    %c0_33 = arith.constant 0 : index
    %c96 = arith.constant 96 : index
    %32 = vector.load %arg3[%c0_32, %c0_33, %c96] : memref<1x4x256xf32, #tpu.memory_space<vmem>>, vector<1x4x16xf32>
    %33 = vector.shape_cast %32 : vector<1x4x16xf32> to vector<4x16xf32>
    %c0_34 = arith.constant 0 : index
    %c127 = arith.constant 127 : index
    %34 = vector.load %arg7[%c0_34, %c127] : memref<4x326xf32, #tpu.memory_space<vmem>>, vector<4x16xf32>
    tpu.vector_store %arg7[%c0_34, %c127], %33 {strides = array<i32>} : memref<4x326xf32, #tpu.memory_space<vmem>>, vector<4x16xf32>,
    %cst_35 = arith.constant 0.000000e+00 : f32
    %35 = vector.broadcast %cst_35 : f32 to vector<4x2xf32>
    %c0_36 = arith.constant 0 : index
    %c143 = arith.constant 143 : index
    %36 = vector.load %arg7[%c0_36, %c143] : memref<4x326xf32, #tpu.memory_space<vmem>>, vector<4x2xf32>
    tpu.vector_store %arg7[%c0_36, %c143], %35 {strides = array<i32>} : memref<4x326xf32, #tpu.memory_space<vmem>>, vector<4x2xf32>,
    %c0_37 = arith.constant 0 : index
    %c0_38 = arith.constant 0 : index
    %c112 = arith.constant 112 : index
    %37 = vector.load %arg3[%c0_37, %c0_38, %c112] : memref<1x4x256xf32, #tpu.memory_space<vmem>>, vector<1x4x16xf32>
    %38 = vector.shape_cast %37 : vector<1x4x16xf32> to vector<4x16xf32>
    %c0_39 = arith.constant 0 : index
    %c145 = arith.constant 145 : index
    %39 = vector.load %arg7[%c0_39, %c145] : memref<4x326xf32, #tpu.memory_space<vmem>>, vector<4x16xf32>
    tpu.vector_store %arg7[%c0_39, %c145], %38 {strides = array<i32>} : memref<4x326xf32, #tpu.memory_space<vmem>>, vector<4x16xf32>,
    %cst_40 = arith.constant 0.000000e+00 : f32
    %40 = vector.broadcast %cst_40 : f32 to vector<4x2xf32>
    %c0_41 = arith.constant 0 : index
    %c161 = arith.constant 161 : index
    %41 = vector.load %arg7[%c0_41, %c161] : memref<4x326xf32, #tpu.memory_space<vmem>>, vector<4x2xf32>
    tpu.vector_store %arg7[%c0_41, %c161], %40 {strides = array<i32>} : memref<4x326xf32, #tpu.memory_space<vmem>>, vector<4x2xf32>,
    %c0_42 = arith.constant 0 : index
    %c0_43 = arith.constant 0 : index
    %c128 = arith.constant 128 : index
    %42 = vector.load %arg3[%c0_42, %c0_43, %c128] : memref<1x4x256xf32, #tpu.memory_space<vmem>>, vector<1x4x16xf32>
    %43 = vector.shape_cast %42 : vector<1x4x16xf32> to vector<4x16xf32>
    %c0_44 = arith.constant 0 : index
    %c163 = arith.constant 163 : index
    %44 = vector.load %arg7[%c0_44, %c163] : memref<4x326xf32, #tpu.memory_space<vmem>>, vector<4x16xf32>
    tpu.vector_store %arg7[%c0_44, %c163], %43 {strides = array<i32>} : memref<4x326xf32, #tpu.memory_space<vmem>>, vector<4x16xf32>,
    %cst_45 = arith.constant 0.000000e+00 : f32
    %45 = vector.broadcast %cst_45 : f32 to vector<4x2xf32>
    %c0_46 = arith.constant 0 : index
    %c179 = arith.constant 179 : index
    %46 = vector.load %arg7[%c0_46, %c179] : memref<4x326xf32, #tpu.memory_space<vmem>>, vector<4x2xf32>
    tpu.vector_store %arg7[%c0_46, %c179], %45 {strides = array<i32>} : memref<4x326xf32, #tpu.memory_space<vmem>>, vector<4x2xf32>,
    %c0_47 = arith.constant 0 : index
    %c0_48 = arith.constant 0 : index
    %c144 = arith.constant 144 : index
    %47 = vector.load %arg3[%c0_47, %c0_48, %c144] : memref<1x4x256xf32, #tpu.memory_space<vmem>>, vector<1x4x16xf32>
    %48 = vector.shape_cast %47 : vector<1x4x16xf32> to vector<4x16xf32>
    %c0_49 = arith.constant 0 : index
    %c181 = arith.constant 181 : index
    %49 = vector.load %arg7[%c0_49, %c181] : memref<4x326xf32, #tpu.memory_space<vmem>>, vector<4x16xf32>
    tpu.vector_store %arg7[%c0_49, %c181], %48 {strides = array<i32>} : memref<4x326xf32, #tpu.memory_space<vmem>>, vector<4x16xf32>,
    %cst_50 = arith.constant 0.000000e+00 : f32
    %50 = vector.broadcast %cst_50 : f32 to vector<4x2xf32>
    %c0_51 = arith.constant 0 : index
    %c197 = arith.constant 197 : index
    %51 = vector.load %arg7[%c0_51, %c197] : memref<4x326xf32, #tpu.memory_space<vmem>>, vector<4x2xf32>
    tpu.vector_store %arg7[%c0_51, %c197], %50 {strides = array<i32>} : memref<4x326xf32, #tpu.memory_space<vmem>>, vector<4x2xf32>,
    %c0_52 = arith.constant 0 : index
    %c0_53 = arith.constant 0 : index
    %c160 = arith.constant 160 : index
    %52 = vector.load %arg3[%c0_52, %c0_53, %c160] : memref<1x4x256xf32, #tpu.memory_space<vmem>>, vector<1x4x16xf32>
    %53 = vector.shape_cast %52 : vector<1x4x16xf32> to vector<4x16xf32>
    %c0_54 = arith.constant 0 : index
    %c199 = arith.constant 199 : index
    %54 = vector.load %arg7[%c0_54, %c199] : memref<4x326xf32, #tpu.memory_space<vmem>>, vector<4x16xf32>
    tpu.vector_store %arg7[%c0_54, %c199], %53 {strides = array<i32>} : memref<4x326xf32, #tpu.memory_space<vmem>>, vector<4x16xf32>,
    %cst_55 = arith.constant 0.000000e+00 : f32
    %55 = vector.broadcast %cst_55 : f32 to vector<4x2xf32>
    %c0_56 = arith.constant 0 : index
    %c215 = arith.constant 215 : index
    %56 = vector.load %arg7[%c0_56, %c215] : memref<4x326xf32, #tpu.memory_space<vmem>>, vector<4x2xf32>
    tpu.vector_store %arg7[%c0_56, %c215], %55 {strides = array<i32>} : memref<4x326xf32, #tpu.memory_space<vmem>>, vector<4x2xf32>,
    %c0_57 = arith.constant 0 : index
    %c0_58 = arith.constant 0 : index
    %c176 = arith.constant 176 : index
    %57 = vector.load %arg3[%c0_57, %c0_58, %c176] : memref<1x4x256xf32, #tpu.memory_space<vmem>>, vector<1x4x16xf32>
    %58 = vector.shape_cast %57 : vector<1x4x16xf32> to vector<4x16xf32>
    %c0_59 = arith.constant 0 : index
    %c217 = arith.constant 217 : index
    %59 = vector.load %arg7[%c0_59, %c217] : memref<4x326xf32, #tpu.memory_space<vmem>>, vector<4x16xf32>
    tpu.vector_store %arg7[%c0_59, %c217], %58 {strides = array<i32>} : memref<4x326xf32, #tpu.memory_space<vmem>>, vector<4x16xf32>,
    %cst_60 = arith.constant 0.000000e+00 : f32
    %60 = vector.broadcast %cst_60 : f32 to vector<4x2xf32>
    %c0_61 = arith.constant 0 : index
    %c233 = arith.constant 233 : index
    %61 = vector.load %arg7[%c0_61, %c233] : memref<4x326xf32, #tpu.memory_space<vmem>>, vector<4x2xf32>
    tpu.vector_store %arg7[%c0_61, %c233], %60 {strides = array<i32>} : memref<4x326xf32, #tpu.memory_space<vmem>>, vector<4x2xf32>,
    %c0_62 = arith.constant 0 : index
    %c0_63 = arith.constant 0 : index
    %c192 = arith.constant 192 : index
    %62 = vector.load %arg3[%c0_62, %c0_63, %c192] : memref<1x4x256xf32, #tpu.memory_space<vmem>>, vector<1x4x16xf32>
    %63 = vector.shape_cast %62 : vector<1x4x16xf32> to vector<4x16xf32>
    %c0_64 = arith.constant 0 : index
    %c235 = arith.constant 235 : index
    %64 = vector.load %arg7[%c0_64, %c235] : memref<4x326xf32, #tpu.memory_space<vmem>>, vector<4x16xf32>
    tpu.vector_store %arg7[%c0_64, %c235], %63 {strides = array<i32>} : memref<4x326xf32, #tpu.memory_space<vmem>>, vector<4x16xf32>,
    %cst_65 = arith.constant 0.000000e+00 : f32
    %65 = vector.broadcast %cst_65 : f32 to vector<4x2xf32>
    %c0_66 = arith.constant 0 : index
    %c251 = arith.constant 251 : index
    %66 = vector.load %arg7[%c0_66, %c251] : memref<4x326xf32, #tpu.memory_space<vmem>>, vector<4x2xf32>
    tpu.vector_store %arg7[%c0_66, %c251], %65 {strides = array<i32>} : memref<4x326xf32, #tpu.memory_space<vmem>>, vector<4x2xf32>,
    %c0_67 = arith.constant 0 : index
    %c0_68 = arith.constant 0 : index
    %c208 = arith.constant 208 : index
    %67 = vector.load %arg3[%c0_67, %c0_68, %c208] : memref<1x4x256xf32, #tpu.memory_space<vmem>>, vector<1x4x16xf32>
    %68 = vector.shape_cast %67 : vector<1x4x16xf32> to vector<4x16xf32>
    %c0_69 = arith.constant 0 : index
    %c253 = arith.constant 253 : index
    %69 = vector.load %arg7[%c0_69, %c253] : memref<4x326xf32, #tpu.memory_space<vmem>>, vector<4x16xf32>
    tpu.vector_store %arg7[%c0_69, %c253], %68 {strides = array<i32>} : memref<4x326xf32, #tpu.memory_space<vmem>>, vector<4x16xf32>,
    %cst_70 = arith.constant 0.000000e+00 : f32
    %70 = vector.broadcast %cst_70 : f32 to vector<4x2xf32>
    %c0_71 = arith.constant 0 : index
    %c269 = arith.constant 269 : index
    %71 = vector.load %arg7[%c0_71, %c269] : memref<4x326xf32, #tpu.memory_space<vmem>>, vector<4x2xf32>
    tpu.vector_store %arg7[%c0_71, %c269], %70 {strides = array<i32>} : memref<4x326xf32, #tpu.memory_space<vmem>>, vector<4x2xf32>,
    %c0_72 = arith.constant 0 : index
    %c0_73 = arith.constant 0 : index
    %c224 = arith.constant 224 : index
    %72 = vector.load %arg3[%c0_72, %c0_73, %c224] : memref<1x4x256xf32, #tpu.memory_space<vmem>>, vector<1x4x16xf32>
    %73 = vector.shape_cast %72 : vector<1x4x16xf32> to vector<4x16xf32>
    %c0_74 = arith.constant 0 : index
    %c271 = arith.constant 271 : index
    %74 = vector.load %arg7[%c0_74, %c271] : memref<4x326xf32, #tpu.memory_space<vmem>>, vector<4x16xf32>
    tpu.vector_store %arg7[%c0_74, %c271], %73 {strides = array<i32>} : memref<4x326xf32, #tpu.memory_space<vmem>>, vector<4x16xf32>,
    %cst_75 = arith.constant 0.000000e+00 : f32
    %75 = vector.broadcast %cst_75 : f32 to vector<4x2xf32>
    %c0_76 = arith.constant 0 : index
    %c287 = arith.constant 287 : index
    %76 = vector.load %arg7[%c0_76, %c287] : memref<4x326xf32, #tpu.memory_space<vmem>>, vector<4x2xf32>
    tpu.vector_store %arg7[%c0_76, %c287], %75 {strides = array<i32>} : memref<4x326xf32, #tpu.memory_space<vmem>>, vector<4x2xf32>,
    %c0_77 = arith.constant 0 : index
    %c0_78 = arith.constant 0 : index
    %c240 = arith.constant 240 : index
    %77 = vector.load %arg3[%c0_77, %c0_78, %c240] : memref<1x4x256xf32, #tpu.memory_space<vmem>>, vector<1x4x16xf32>
    %78 = vector.shape_cast %77 : vector<1x4x16xf32> to vector<4x16xf32>
    %c0_79 = arith.constant 0 : index
    %c289 = arith.constant 289 : index
    %79 = vector.load %arg7[%c0_79, %c289] : memref<4x326xf32, #tpu.memory_space<vmem>>, vector<4x16xf32>
    tpu.vector_store %arg7[%c0_79, %c289], %78 {strides = array<i32>} : memref<4x326xf32, #tpu.memory_space<vmem>>, vector<4x16xf32>,
    %cst_80 = arith.constant 0.000000e+00 : f32
    %80 = vector.broadcast %cst_80 : f32 to vector<4x21xf32>
    %c0_81 = arith.constant 0 : index
    %c305 = arith.constant 305 : index
    %81 = vector.load %arg7[%c0_81, %c305] : memref<4x326xf32, #tpu.memory_space<vmem>>, vector<4x21xf32>
    tpu.vector_store %arg7[%c0_81, %c305], %80 {strides = array<i32>} : memref<4x326xf32, #tpu.memory_space<vmem>>, vector<4x21xf32>,
    %cst_82 = arith.constant 0.000000e+00 : f32
    %82 = vector.broadcast %cst_82 : f32 to vector<8x288xf32>
    %cst_83 = arith.constant 0.000000e+00 : f32
    %83 = vector.broadcast %cst_83 : f32 to vector<8x4xf32>
    %84 = arith.index_cast %arg0 : i32 to index
    %c0_84 = arith.constant 0 : index
    %85 = memref.load %arg2[%84, %c0_84] : memref<2x4xf32, #tpu.memory_space<smem>>
    %c0_85 = arith.constant 0 : index
    %c0_86 = arith.constant 0 : index
    %c0_87 = arith.constant 0 : index
    %c0_88 = arith.constant 0 : index
    %86 = vector.load %arg4[%c0_85, %c0_86, %c0_87, %c0_88] : memref<4x9x8x4xf32, #tpu.memory_space<vmem>>, vector<1x1x8x4xf32>
    %87 = vector.shape_cast %86 : vector<1x1x8x4xf32> to vector<8x4xf32>
    %88 = vector.broadcast %85 : f32 to vector<8x4xf32>
    %89 = arith.mulf %88, %87 : vector<8x4xf32>
    %90 = arith.addf %83, %89 : vector<8x4xf32>
    %91 = arith.index_cast %arg0 : i32 to index
    %c1 = arith.constant 1 : index
    %92 = memref.load %arg2[%91, %c1] : memref<2x4xf32, #tpu.memory_space<smem>>
    %c1_89 = arith.constant 1 : index
    %c0_90 = arith.constant 0 : index
    %c0_91 = arith.constant 0 : index
    %c0_92 = arith.constant 0 : index
    %93 = vector.load %arg4[%c1_89, %c0_90, %c0_91, %c0_92] : memref<4x9x8x4xf32, #tpu.memory_space<vmem>>, vector<1x1x8x4xf32>
    %94 = vector.shape_cast %93 : vector<1x1x8x4xf32> to vector<8x4xf32>
    %95 = vector.broadcast %92 : f32 to vector<8x4xf32>
    %96 = arith.mulf %95, %94 : vector<8x4xf32>
    %97 = arith.addf %90, %96 : vector<8x4xf32>
    %98 = arith.index_cast %arg0 : i32 to index
    %c2 = arith.constant 2 : index
    %99 = memref.load %arg2[%98, %c2] : memref<2x4xf32, #tpu.memory_space<smem>>
    %c2_93 = arith.constant 2 : index
    %c0_94 = arith.constant 0 : index
    %c0_95 = arith.constant 0 : index
    %c0_96 = arith.constant 0 : index
    %100 = vector.load %arg4[%c2_93, %c0_94, %c0_95, %c0_96] : memref<4x9x8x4xf32, #tpu.memory_space<vmem>>, vector<1x1x8x4xf32>
    %101 = vector.shape_cast %100 : vector<1x1x8x4xf32> to vector<8x4xf32>
    %102 = vector.broadcast %99 : f32 to vector<8x4xf32>
    %103 = arith.mulf %102, %101 : vector<8x4xf32>
    %104 = arith.addf %97, %103 : vector<8x4xf32>
    %105 = arith.index_cast %arg0 : i32 to index
    %c3 = arith.constant 3 : index
    %106 = memref.load %arg2[%105, %c3] : memref<2x4xf32, #tpu.memory_space<smem>>
    %c3_97 = arith.constant 3 : index
    %c0_98 = arith.constant 0 : index
    %c0_99 = arith.constant 0 : index
    %c0_100 = arith.constant 0 : index
    %107 = vector.load %arg4[%c3_97, %c0_98, %c0_99, %c0_100] : memref<4x9x8x4xf32, #tpu.memory_space<vmem>>, vector<1x1x8x4xf32>
    %108 = vector.shape_cast %107 : vector<1x1x8x4xf32> to vector<8x4xf32>
    %109 = vector.broadcast %106 : f32 to vector<8x4xf32>
    %110 = arith.mulf %109, %108 : vector<8x4xf32>
    %111 = arith.addf %104, %110 : vector<8x4xf32>
    %c0_101 = arith.constant 0 : index
    %c0_102 = arith.constant 0 : index
    %112 = vector.load %arg7[%c0_101, %c0_102] : memref<4x326xf32, #tpu.memory_space<vmem>>, vector<4x288xf32>
    %cst_103 = arith.constant dense<0.000000e+00> : vector<8x288xf32>
    %113 = tpu.matmul %111, %112, %cst_103 {dimension_numbers = #tpu.dot_dimension_numbers<[1], [0], [0], [1], [0, 0, 1, 1], [], []>} : vector<8x4xf32>, vector<4x288xf32>, vector<8x288xf32> -> vector<8x288xf32>
    %114 = arith.addf %82, %113 : vector<8x288xf32>
    %cst_104 = arith.constant 0.000000e+00 : f32
    %115 = vector.broadcast %cst_104 : f32 to vector<8x4xf32>
    %116 = arith.index_cast %arg0 : i32 to index
    %c0_105 = arith.constant 0 : index
    %117 = memref.load %arg2[%116, %c0_105] : memref<2x4xf32, #tpu.memory_space<smem>>
    %c0_106 = arith.constant 0 : index
    %c1_107 = arith.constant 1 : index
    %c0_108 = arith.constant 0 : index
    %c0_109 = arith.constant 0 : index
    %118 = vector.load %arg4[%c0_106, %c1_107, %c0_108, %c0_109] : memref<4x9x8x4xf32, #tpu.memory_space<vmem>>, vector<1x1x8x4xf32>
    %119 = vector.shape_cast %118 : vector<1x1x8x4xf32> to vector<8x4xf32>
    %120 = vector.broadcast %117 : f32 to vector<8x4xf32>
    %121 = arith.mulf %120, %119 : vector<8x4xf32>
    %122 = arith.addf %115, %121 : vector<8x4xf32>
    %123 = arith.index_cast %arg0 : i32 to index
    %c1_110 = arith.constant 1 : index
    %124 = memref.load %arg2[%123, %c1_110] : memref<2x4xf32, #tpu.memory_space<smem>>
    %c1_111 = arith.constant 1 : index
    %c1_112 = arith.constant 1 : index
    %c0_113 = arith.constant 0 : index
    %c0_114 = arith.constant 0 : index
    %125 = vector.load %arg4[%c1_111, %c1_112, %c0_113, %c0_114] : memref<4x9x8x4xf32, #tpu.memory_space<vmem>>, vector<1x1x8x4xf32>
    %126 = vector.shape_cast %125 : vector<1x1x8x4xf32> to vector<8x4xf32>
    %127 = vector.broadcast %124 : f32 to vector<8x4xf32>
    %128 = arith.mulf %127, %126 : vector<8x4xf32>
    %129 = arith.addf %122, %128 : vector<8x4xf32>
    %130 = arith.index_cast %arg0 : i32 to index
    %c2_115 = arith.constant 2 : index
    %131 = memref.load %arg2[%130, %c2_115] : memref<2x4xf32, #tpu.memory_space<smem>>
    %c2_116 = arith.constant 2 : index
    %c1_117 = arith.constant 1 : index
    %c0_118 = arith.constant 0 : index
    %c0_119 = arith.constant 0 : index
    %132 = vector.load %arg4[%c2_116, %c1_117, %c0_118, %c0_119] : memref<4x9x8x4xf32, #tpu.memory_space<vmem>>, vector<1x1x8x4xf32>
    %133 = vector.shape_cast %132 : vector<1x1x8x4xf32> to vector<8x4xf32>
    %134 = vector.broadcast %131 : f32 to vector<8x4xf32>
    %135 = arith.mulf %134, %133 : vector<8x4xf32>
    %136 = arith.addf %129, %135 : vector<8x4xf32>
    %137 = arith.index_cast %arg0 : i32 to index
    %c3_120 = arith.constant 3 : index
    %138 = memref.load %arg2[%137, %c3_120] : memref<2x4xf32, #tpu.memory_space<smem>>
    %c3_121 = arith.constant 3 : index
    %c1_122 = arith.constant 1 : index
    %c0_123 = arith.constant 0 : index
    %c0_124 = arith.constant 0 : index
    %139 = vector.load %arg4[%c3_121, %c1_122, %c0_123, %c0_124] : memref<4x9x8x4xf32, #tpu.memory_space<vmem>>, vector<1x1x8x4xf32>
    %140 = vector.shape_cast %139 : vector<1x1x8x4xf32> to vector<8x4xf32>
    %141 = vector.broadcast %138 : f32 to vector<8x4xf32>
    %142 = arith.mulf %141, %140 : vector<8x4xf32>
    %143 = arith.addf %136, %142 : vector<8x4xf32>
    %c0_125 = arith.constant 0 : index
    %c1_126 = arith.constant 1 : index
    %144 = vector.load %arg7[%c0_125, %c1_126] : memref<4x326xf32, #tpu.memory_space<vmem>>, vector<4x288xf32>
    %cst_127 = arith.constant dense<0.000000e+00> : vector<8x288xf32>
    %145 = tpu.matmul %143, %144, %cst_127 {dimension_numbers = #tpu.dot_dimension_numbers<[1], [0], [0], [1], [0, 0, 1, 1], [], []>} : vector<8x4xf32>, vector<4x288xf32>, vector<8x288xf32> -> vector<8x288xf32>
    %146 = arith.addf %114, %145 : vector<8x288xf32>
    %cst_128 = arith.constant 0.000000e+00 : f32
    %147 = vector.broadcast %cst_128 : f32 to vector<8x4xf32>
    %148 = arith.index_cast %arg0 : i32 to index
    %c0_129 = arith.constant 0 : index
    %149 = memref.load %arg2[%148, %c0_129] : memref<2x4xf32, #tpu.memory_space<smem>>
    %c0_130 = arith.constant 0 : index
    %c2_131 = arith.constant 2 : index
    %c0_132 = arith.constant 0 : index
    %c0_133 = arith.constant 0 : index
    %150 = vector.load %arg4[%c0_130, %c2_131, %c0_132, %c0_133] : memref<4x9x8x4xf32, #tpu.memory_space<vmem>>, vector<1x1x8x4xf32>
    %151 = vector.shape_cast %150 : vector<1x1x8x4xf32> to vector<8x4xf32>
    %152 = vector.broadcast %149 : f32 to vector<8x4xf32>
    %153 = arith.mulf %152, %151 : vector<8x4xf32>
    %154 = arith.addf %147, %153 : vector<8x4xf32>
    %155 = arith.index_cast %arg0 : i32 to index
    %c1_134 = arith.constant 1 : index
    %156 = memref.load %arg2[%155, %c1_134] : memref<2x4xf32, #tpu.memory_space<smem>>
    %c1_135 = arith.constant 1 : index
    %c2_136 = arith.constant 2 : index
    %c0_137 = arith.constant 0 : index
    %c0_138 = arith.constant 0 : index
    %157 = vector.load %arg4[%c1_135, %c2_136, %c0_137, %c0_138] : memref<4x9x8x4xf32, #tpu.memory_space<vmem>>, vector<1x1x8x4xf32>
    %158 = vector.shape_cast %157 : vector<1x1x8x4xf32> to vector<8x4xf32>
    %159 = vector.broadcast %156 : f32 to vector<8x4xf32>
    %160 = arith.mulf %159, %158 : vector<8x4xf32>
    %161 = arith.addf %154, %160 : vector<8x4xf32>
    %162 = arith.index_cast %arg0 : i32 to index
    %c2_139 = arith.constant 2 : index
    %163 = memref.load %arg2[%162, %c2_139] : memref<2x4xf32, #tpu.memory_space<smem>>
    %c2_140 = arith.constant 2 : index
    %c2_141 = arith.constant 2 : index
    %c0_142 = arith.constant 0 : index
    %c0_143 = arith.constant 0 : index
    %164 = vector.load %arg4[%c2_140, %c2_141, %c0_142, %c0_143] : memref<4x9x8x4xf32, #tpu.memory_space<vmem>>, vector<1x1x8x4xf32>
    %165 = vector.shape_cast %164 : vector<1x1x8x4xf32> to vector<8x4xf32>
    %166 = vector.broadcast %163 : f32 to vector<8x4xf32>
    %167 = arith.mulf %166, %165 : vector<8x4xf32>
    %168 = arith.addf %161, %167 : vector<8x4xf32>
    %169 = arith.index_cast %arg0 : i32 to index
    %c3_144 = arith.constant 3 : index
    %170 = memref.load %arg2[%169, %c3_144] : memref<2x4xf32, #tpu.memory_space<smem>>
    %c3_145 = arith.constant 3 : index
    %c2_146 = arith.constant 2 : index
    %c0_147 = arith.constant 0 : index
    %c0_148 = arith.constant 0 : index
    %171 = vector.load %arg4[%c3_145, %c2_146, %c0_147, %c0_148] : memref<4x9x8x4xf32, #tpu.memory_space<vmem>>, vector<1x1x8x4xf32>
    %172 = vector.shape_cast %171 : vector<1x1x8x4xf32> to vector<8x4xf32>
    %173 = vector.broadcast %170 : f32 to vector<8x4xf32>
    %174 = arith.mulf %173, %172 : vector<8x4xf32>
    %175 = arith.addf %168, %174 : vector<8x4xf32>
    %c0_149 = arith.constant 0 : index
    %c2_150 = arith.constant 2 : index
    %176 = vector.load %arg7[%c0_149, %c2_150] : memref<4x326xf32, #tpu.memory_space<vmem>>, vector<4x288xf32>
    %cst_151 = arith.constant dense<0.000000e+00> : vector<8x288xf32>
    %177 = tpu.matmul %175, %176, %cst_151 {dimension_numbers = #tpu.dot_dimension_numbers<[1], [0], [0], [1], [0, 0, 1, 1], [], []>} : vector<8x4xf32>, vector<4x288xf32>, vector<8x288xf32> -> vector<8x288xf32>
    %178 = arith.addf %146, %177 : vector<8x288xf32>
    %cst_152 = arith.constant 0.000000e+00 : f32
    %179 = vector.broadcast %cst_152 : f32 to vector<8x4xf32>
    %180 = arith.index_cast %arg0 : i32 to index
    %c0_153 = arith.constant 0 : index
    %181 = memref.load %arg2[%180, %c0_153] : memref<2x4xf32, #tpu.memory_space<smem>>
    %c0_154 = arith.constant 0 : index
    %c3_155 = arith.constant 3 : index
    %c0_156 = arith.constant 0 : index
    %c0_157 = arith.constant 0 : index
    %182 = vector.load %arg4[%c0_154, %c3_155, %c0_156, %c0_157] : memref<4x9x8x4xf32, #tpu.memory_space<vmem>>, vector<1x1x8x4xf32>
    %183 = vector.shape_cast %182 : vector<1x1x8x4xf32> to vector<8x4xf32>
    %184 = vector.broadcast %181 : f32 to vector<8x4xf32>
    %185 = arith.mulf %184, %183 : vector<8x4xf32>
    %186 = arith.addf %179, %185 : vector<8x4xf32>
    %187 = arith.index_cast %arg0 : i32 to index
    %c1_158 = arith.constant 1 : index
    %188 = memref.load %arg2[%187, %c1_158] : memref<2x4xf32, #tpu.memory_space<smem>>
    %c1_159 = arith.constant 1 : index
    %c3_160 = arith.constant 3 : index
    %c0_161 = arith.constant 0 : index
    %c0_162 = arith.constant 0 : index
    %189 = vector.load %arg4[%c1_159, %c3_160, %c0_161, %c0_162] : memref<4x9x8x4xf32, #tpu.memory_space<vmem>>, vector<1x1x8x4xf32>
    %190 = vector.shape_cast %189 : vector<1x1x8x4xf32> to vector<8x4xf32>
    %191 = vector.broadcast %188 : f32 to vector<8x4xf32>
    %192 = arith.mulf %191, %190 : vector<8x4xf32>
    %193 = arith.addf %186, %192 : vector<8x4xf32>
    %194 = arith.index_cast %arg0 : i32 to index
    %c2_163 = arith.constant 2 : index
    %195 = memref.load %arg2[%194, %c2_163] : memref<2x4xf32, #tpu.memory_space<smem>>
    %c2_164 = arith.constant 2 : index
    %c3_165 = arith.constant 3 : index
    %c0_166 = arith.constant 0 : index
    %c0_167 = arith.constant 0 : index
    %196 = vector.load %arg4[%c2_164, %c3_165, %c0_166, %c0_167] : memref<4x9x8x4xf32, #tpu.memory_space<vmem>>, vector<1x1x8x4xf32>
    %197 = vector.shape_cast %196 : vector<1x1x8x4xf32> to vector<8x4xf32>
    %198 = vector.broadcast %195 : f32 to vector<8x4xf32>
    %199 = arith.mulf %198, %197 : vector<8x4xf32>
    %200 = arith.addf %193, %199 : vector<8x4xf32>
    %201 = arith.index_cast %arg0 : i32 to index
    %c3_168 = arith.constant 3 : index
    %202 = memref.load %arg2[%201, %c3_168] : memref<2x4xf32, #tpu.memory_space<smem>>
    %c3_169 = arith.constant 3 : index
    %c3_170 = arith.constant 3 : index
    %c0_171 = arith.constant 0 : index
    %c0_172 = arith.constant 0 : index
    %203 = vector.load %arg4[%c3_169, %c3_170, %c0_171, %c0_172] : memref<4x9x8x4xf32, #tpu.memory_space<vmem>>, vector<1x1x8x4xf32>
    %204 = vector.shape_cast %203 : vector<1x1x8x4xf32> to vector<8x4xf32>
    %205 = vector.broadcast %202 : f32 to vector<8x4xf32>
    %206 = arith.mulf %205, %204 : vector<8x4xf32>
    %207 = arith.addf %200, %206 : vector<8x4xf32>
    %c0_173 = arith.constant 0 : index
    %c18 = arith.constant 18 : index
    %208 = vector.load %arg7[%c0_173, %c18] : memref<4x326xf32, #tpu.memory_space<vmem>>, vector<4x288xf32>
    %cst_174 = arith.constant dense<0.000000e+00> : vector<8x288xf32>
    %209 = tpu.matmul %207, %208, %cst_174 {dimension_numbers = #tpu.dot_dimension_numbers<[1], [0], [0], [1], [0, 0, 1, 1], [], []>} : vector<8x4xf32>, vector<4x288xf32>, vector<8x288xf32> -> vector<8x288xf32>
    %210 = arith.addf %178, %209 : vector<8x288xf32>
    %cst_175 = arith.constant 0.000000e+00 : f32
    %211 = vector.broadcast %cst_175 : f32 to vector<8x4xf32>
    %212 = arith.index_cast %arg0 : i32 to index
    %c0_176 = arith.constant 0 : index
    %213 = memref.load %arg2[%212, %c0_176] : memref<2x4xf32, #tpu.memory_space<smem>>
    %c0_177 = arith.constant 0 : index
    %c4 = arith.constant 4 : index
    %c0_178 = arith.constant 0 : index
    %c0_179 = arith.constant 0 : index
    %214 = vector.load %arg4[%c0_177, %c4, %c0_178, %c0_179] : memref<4x9x8x4xf32, #tpu.memory_space<vmem>>, vector<1x1x8x4xf32>
    %215 = vector.shape_cast %214 : vector<1x1x8x4xf32> to vector<8x4xf32>
    %216 = vector.broadcast %213 : f32 to vector<8x4xf32>
    %217 = arith.mulf %216, %215 : vector<8x4xf32>
    %218 = arith.addf %211, %217 : vector<8x4xf32>
    %219 = arith.index_cast %arg0 : i32 to index
    %c1_180 = arith.constant 1 : index
    %220 = memref.load %arg2[%219, %c1_180] : memref<2x4xf32, #tpu.memory_space<smem>>
    %c1_181 = arith.constant 1 : index
    %c4_182 = arith.constant 4 : index
    %c0_183 = arith.constant 0 : index
    %c0_184 = arith.constant 0 : index
    %221 = vector.load %arg4[%c1_181, %c4_182, %c0_183, %c0_184] : memref<4x9x8x4xf32, #tpu.memory_space<vmem>>, vector<1x1x8x4xf32>
    %222 = vector.shape_cast %221 : vector<1x1x8x4xf32> to vector<8x4xf32>
    %223 = vector.broadcast %220 : f32 to vector<8x4xf32>
    %224 = arith.mulf %223, %222 : vector<8x4xf32>
    %225 = arith.addf %218, %224 : vector<8x4xf32>
    %226 = arith.index_cast %arg0 : i32 to index
    %c2_185 = arith.constant 2 : index
    %227 = memref.load %arg2[%226, %c2_185] : memref<2x4xf32, #tpu.memory_space<smem>>
    %c2_186 = arith.constant 2 : index
    %c4_187 = arith.constant 4 : index
    %c0_188 = arith.constant 0 : index
    %c0_189 = arith.constant 0 : index
    %228 = vector.load %arg4[%c2_186, %c4_187, %c0_188, %c0_189] : memref<4x9x8x4xf32, #tpu.memory_space<vmem>>, vector<1x1x8x4xf32>
    %229 = vector.shape_cast %228 : vector<1x1x8x4xf32> to vector<8x4xf32>
    %230 = vector.broadcast %227 : f32 to vector<8x4xf32>
    %231 = arith.mulf %230, %229 : vector<8x4xf32>
    %232 = arith.addf %225, %231 : vector<8x4xf32>
    %233 = arith.index_cast %arg0 : i32 to index
    %c3_190 = arith.constant 3 : index
    %234 = memref.load %arg2[%233, %c3_190] : memref<2x4xf32, #tpu.memory_space<smem>>
    %c3_191 = arith.constant 3 : index
    %c4_192 = arith.constant 4 : index
    %c0_193 = arith.constant 0 : index
    %c0_194 = arith.constant 0 : index
    %235 = vector.load %arg4[%c3_191, %c4_192, %c0_193, %c0_194] : memref<4x9x8x4xf32, #tpu.memory_space<vmem>>, vector<1x1x8x4xf32>
    %236 = vector.shape_cast %235 : vector<1x1x8x4xf32> to vector<8x4xf32>
    %237 = vector.broadcast %234 : f32 to vector<8x4xf32>
    %238 = arith.mulf %237, %236 : vector<8x4xf32>
    %239 = arith.addf %232, %238 : vector<8x4xf32>
    %c0_195 = arith.constant 0 : index
    %c19_196 = arith.constant 19 : index
    %240 = vector.load %arg7[%c0_195, %c19_196] : memref<4x326xf32, #tpu.memory_space<vmem>>, vector<4x288xf32>
    %cst_197 = arith.constant dense<0.000000e+00> : vector<8x288xf32>
    %241 = tpu.matmul %239, %240, %cst_197 {dimension_numbers = #tpu.dot_dimension_numbers<[1], [0], [0], [1], [0, 0, 1, 1], [], []>} : vector<8x4xf32>, vector<4x288xf32>, vector<8x288xf32> -> vector<8x288xf32>
    %242 = arith.addf %210, %241 : vector<8x288xf32>
    %cst_198 = arith.constant 0.000000e+00 : f32
    %243 = vector.broadcast %cst_198 : f32 to vector<8x4xf32>
    %244 = arith.index_cast %arg0 : i32 to index
    %c0_199 = arith.constant 0 : index
    %245 = memref.load %arg2[%244, %c0_199] : memref<2x4xf32, #tpu.memory_space<smem>>
    %c0_200 = arith.constant 0 : index
    %c5 = arith.constant 5 : index
    %c0_201 = arith.constant 0 : index
    %c0_202 = arith.constant 0 : index
    %246 = vector.load %arg4[%c0_200, %c5, %c0_201, %c0_202] : memref<4x9x8x4xf32, #tpu.memory_space<vmem>>, vector<1x1x8x4xf32>
    %247 = vector.shape_cast %246 : vector<1x1x8x4xf32> to vector<8x4xf32>
    %248 = vector.broadcast %245 : f32 to vector<8x4xf32>
    %249 = arith.mulf %248, %247 : vector<8x4xf32>
    %250 = arith.addf %243, %249 : vector<8x4xf32>
    %251 = arith.index_cast %arg0 : i32 to index
    %c1_203 = arith.constant 1 : index
    %252 = memref.load %arg2[%251, %c1_203] : memref<2x4xf32, #tpu.memory_space<smem>>
    %c1_204 = arith.constant 1 : index
    %c5_205 = arith.constant 5 : index
    %c0_206 = arith.constant 0 : index
    %c0_207 = arith.constant 0 : index
    %253 = vector.load %arg4[%c1_204, %c5_205, %c0_206, %c0_207] : memref<4x9x8x4xf32, #tpu.memory_space<vmem>>, vector<1x1x8x4xf32>
    %254 = vector.shape_cast %253 : vector<1x1x8x4xf32> to vector<8x4xf32>
    %255 = vector.broadcast %252 : f32 to vector<8x4xf32>
    %256 = arith.mulf %255, %254 : vector<8x4xf32>
    %257 = arith.addf %250, %256 : vector<8x4xf32>
    %258 = arith.index_cast %arg0 : i32 to index
    %c2_208 = arith.constant 2 : index
    %259 = memref.load %arg2[%258, %c2_208] : memref<2x4xf32, #tpu.memory_space<smem>>
    %c2_209 = arith.constant 2 : index
    %c5_210 = arith.constant 5 : index
    %c0_211 = arith.constant 0 : index
    %c0_212 = arith.constant 0 : index
    %260 = vector.load %arg4[%c2_209, %c5_210, %c0_211, %c0_212] : memref<4x9x8x4xf32, #tpu.memory_space<vmem>>, vector<1x1x8x4xf32>
    %261 = vector.shape_cast %260 : vector<1x1x8x4xf32> to vector<8x4xf32>
    %262 = vector.broadcast %259 : f32 to vector<8x4xf32>
    %263 = arith.mulf %262, %261 : vector<8x4xf32>
    %264 = arith.addf %257, %263 : vector<8x4xf32>
    %265 = arith.index_cast %arg0 : i32 to index
    %c3_213 = arith.constant 3 : index
    %266 = memref.load %arg2[%265, %c3_213] : memref<2x4xf32, #tpu.memory_space<smem>>
    %c3_214 = arith.constant 3 : index
    %c5_215 = arith.constant 5 : index
    %c0_216 = arith.constant 0 : index
    %c0_217 = arith.constant 0 : index
    %267 = vector.load %arg4[%c3_214, %c5_215, %c0_216, %c0_217] : memref<4x9x8x4xf32, #tpu.memory_space<vmem>>, vector<1x1x8x4xf32>
    %268 = vector.shape_cast %267 : vector<1x1x8x4xf32> to vector<8x4xf32>
    %269 = vector.broadcast %266 : f32 to vector<8x4xf32>
    %270 = arith.mulf %269, %268 : vector<8x4xf32>
    %271 = arith.addf %264, %270 : vector<8x4xf32>
    %c0_218 = arith.constant 0 : index
    %c20 = arith.constant 20 : index
    %272 = vector.load %arg7[%c0_218, %c20] : memref<4x326xf32, #tpu.memory_space<vmem>>, vector<4x288xf32>
    %cst_219 = arith.constant dense<0.000000e+00> : vector<8x288xf32>
    %273 = tpu.matmul %271, %272, %cst_219 {dimension_numbers = #tpu.dot_dimension_numbers<[1], [0], [0], [1], [0, 0, 1, 1], [], []>} : vector<8x4xf32>, vector<4x288xf32>, vector<8x288xf32> -> vector<8x288xf32>
    %274 = arith.addf %242, %273 : vector<8x288xf32>
    %cst_220 = arith.constant 0.000000e+00 : f32
    %275 = vector.broadcast %cst_220 : f32 to vector<8x4xf32>
    %276 = arith.index_cast %arg0 : i32 to index
    %c0_221 = arith.constant 0 : index
    %277 = memref.load %arg2[%276, %c0_221] : memref<2x4xf32, #tpu.memory_space<smem>>
    %c0_222 = arith.constant 0 : index
    %c6 = arith.constant 6 : index
    %c0_223 = arith.constant 0 : index
    %c0_224 = arith.constant 0 : index
    %278 = vector.load %arg4[%c0_222, %c6, %c0_223, %c0_224] : memref<4x9x8x4xf32, #tpu.memory_space<vmem>>, vector<1x1x8x4xf32>
    %279 = vector.shape_cast %278 : vector<1x1x8x4xf32> to vector<8x4xf32>
    %280 = vector.broadcast %277 : f32 to vector<8x4xf32>
    %281 = arith.mulf %280, %279 : vector<8x4xf32>
    %282 = arith.addf %275, %281 : vector<8x4xf32>
    %283 = arith.index_cast %arg0 : i32 to index
    %c1_225 = arith.constant 1 : index
    %284 = memref.load %arg2[%283, %c1_225] : memref<2x4xf32, #tpu.memory_space<smem>>
    %c1_226 = arith.constant 1 : index
    %c6_227 = arith.constant 6 : index
    %c0_228 = arith.constant 0 : index
    %c0_229 = arith.constant 0 : index
    %285 = vector.load %arg4[%c1_226, %c6_227, %c0_228, %c0_229] : memref<4x9x8x4xf32, #tpu.memory_space<vmem>>, vector<1x1x8x4xf32>
    %286 = vector.shape_cast %285 : vector<1x1x8x4xf32> to vector<8x4xf32>
    %287 = vector.broadcast %284 : f32 to vector<8x4xf32>
    %288 = arith.mulf %287, %286 : vector<8x4xf32>
    %289 = arith.addf %282, %288 : vector<8x4xf32>
    %290 = arith.index_cast %arg0 : i32 to index
    %c2_230 = arith.constant 2 : index
    %291 = memref.load %arg2[%290, %c2_230] : memref<2x4xf32, #tpu.memory_space<smem>>
    %c2_231 = arith.constant 2 : index
    %c6_232 = arith.constant 6 : index
    %c0_233 = arith.constant 0 : index
    %c0_234 = arith.constant 0 : index
    %292 = vector.load %arg4[%c2_231, %c6_232, %c0_233, %c0_234] : memref<4x9x8x4xf32, #tpu.memory_space<vmem>>, vector<1x1x8x4xf32>
    %293 = vector.shape_cast %292 : vector<1x1x8x4xf32> to vector<8x4xf32>
    %294 = vector.broadcast %291 : f32 to vector<8x4xf32>
    %295 = arith.mulf %294, %293 : vector<8x4xf32>
    %296 = arith.addf %289, %295 : vector<8x4xf32>
    %297 = arith.index_cast %arg0 : i32 to index
    %c3_235 = arith.constant 3 : index
    %298 = memref.load %arg2[%297, %c3_235] : memref<2x4xf32, #tpu.memory_space<smem>>
    %c3_236 = arith.constant 3 : index
    %c6_237 = arith.constant 6 : index
    %c0_238 = arith.constant 0 : index
    %c0_239 = arith.constant 0 : index
    %299 = vector.load %arg4[%c3_236, %c6_237, %c0_238, %c0_239] : memref<4x9x8x4xf32, #tpu.memory_space<vmem>>, vector<1x1x8x4xf32>
    %300 = vector.shape_cast %299 : vector<1x1x8x4xf32> to vector<8x4xf32>
    %301 = vector.broadcast %298 : f32 to vector<8x4xf32>
    %302 = arith.mulf %301, %300 : vector<8x4xf32>
    %303 = arith.addf %296, %302 : vector<8x4xf32>
    %c0_240 = arith.constant 0 : index
    %c36 = arith.constant 36 : index
    %304 = vector.load %arg7[%c0_240, %c36] : memref<4x326xf32, #tpu.memory_space<vmem>>, vector<4x288xf32>
    %cst_241 = arith.constant dense<0.000000e+00> : vector<8x288xf32>
    %305 = tpu.matmul %303, %304, %cst_241 {dimension_numbers = #tpu.dot_dimension_numbers<[1], [0], [0], [1], [0, 0, 1, 1], [], []>} : vector<8x4xf32>, vector<4x288xf32>, vector<8x288xf32> -> vector<8x288xf32>
    %306 = arith.addf %274, %305 : vector<8x288xf32>
    %cst_242 = arith.constant 0.000000e+00 : f32
    %307 = vector.broadcast %cst_242 : f32 to vector<8x4xf32>
    %308 = arith.index_cast %arg0 : i32 to index
    %c0_243 = arith.constant 0 : index
    %309 = memref.load %arg2[%308, %c0_243] : memref<2x4xf32, #tpu.memory_space<smem>>
    %c0_244 = arith.constant 0 : index
    %c7 = arith.constant 7 : index
    %c0_245 = arith.constant 0 : index
    %c0_246 = arith.constant 0 : index
    %310 = vector.load %arg4[%c0_244, %c7, %c0_245, %c0_246] : memref<4x9x8x4xf32, #tpu.memory_space<vmem>>, vector<1x1x8x4xf32>
    %311 = vector.shape_cast %310 : vector<1x1x8x4xf32> to vector<8x4xf32>
    %312 = vector.broadcast %309 : f32 to vector<8x4xf32>
    %313 = arith.mulf %312, %311 : vector<8x4xf32>
    %314 = arith.addf %307, %313 : vector<8x4xf32>
    %315 = arith.index_cast %arg0 : i32 to index
    %c1_247 = arith.constant 1 : index
    %316 = memref.load %arg2[%315, %c1_247] : memref<2x4xf32, #tpu.memory_space<smem>>
    %c1_248 = arith.constant 1 : index
    %c7_249 = arith.constant 7 : index
    %c0_250 = arith.constant 0 : index
    %c0_251 = arith.constant 0 : index
    %317 = vector.load %arg4[%c1_248, %c7_249, %c0_250, %c0_251] : memref<4x9x8x4xf32, #tpu.memory_space<vmem>>, vector<1x1x8x4xf32>
    %318 = vector.shape_cast %317 : vector<1x1x8x4xf32> to vector<8x4xf32>
    %319 = vector.broadcast %316 : f32 to vector<8x4xf32>
    %320 = arith.mulf %319, %318 : vector<8x4xf32>
    %321 = arith.addf %314, %320 : vector<8x4xf32>
    %322 = arith.index_cast %arg0 : i32 to index
    %c2_252 = arith.constant 2 : index
    %323 = memref.load %arg2[%322, %c2_252] : memref<2x4xf32, #tpu.memory_space<smem>>
    %c2_253 = arith.constant 2 : index
    %c7_254 = arith.constant 7 : index
    %c0_255 = arith.constant 0 : index
    %c0_256 = arith.constant 0 : index
    %324 = vector.load %arg4[%c2_253, %c7_254, %c0_255, %c0_256] : memref<4x9x8x4xf32, #tpu.memory_space<vmem>>, vector<1x1x8x4xf32>
    %325 = vector.shape_cast %324 : vector<1x1x8x4xf32> to vector<8x4xf32>
    %326 = vector.broadcast %323 : f32 to vector<8x4xf32>
    %327 = arith.mulf %326, %325 : vector<8x4xf32>
    %328 = arith.addf %321, %327 : vector<8x4xf32>
    %329 = arith.index_cast %arg0 : i32 to index
    %c3_257 = arith.constant 3 : index
    %330 = memref.load %arg2[%329, %c3_257] : memref<2x4xf32, #tpu.memory_space<smem>>
    %c3_258 = arith.constant 3 : index
    %c7_259 = arith.constant 7 : index
    %c0_260 = arith.constant 0 : index
    %c0_261 = arith.constant 0 : index
    %331 = vector.load %arg4[%c3_258, %c7_259, %c0_260, %c0_261] : memref<4x9x8x4xf32, #tpu.memory_space<vmem>>, vector<1x1x8x4xf32>
    %332 = vector.shape_cast %331 : vector<1x1x8x4xf32> to vector<8x4xf32>
    %333 = vector.broadcast %330 : f32 to vector<8x4xf32>
    %334 = arith.mulf %333, %332 : vector<8x4xf32>
    %335 = arith.addf %328, %334 : vector<8x4xf32>
    %c0_262 = arith.constant 0 : index
    %c37_263 = arith.constant 37 : index
    %336 = vector.load %arg7[%c0_262, %c37_263] : memref<4x326xf32, #tpu.memory_space<vmem>>, vector<4x288xf32>
    %cst_264 = arith.constant dense<0.000000e+00> : vector<8x288xf32>
    %337 = tpu.matmul %335, %336, %cst_264 {dimension_numbers = #tpu.dot_dimension_numbers<[1], [0], [0], [1], [0, 0, 1, 1], [], []>} : vector<8x4xf32>, vector<4x288xf32>, vector<8x288xf32> -> vector<8x288xf32>
    %338 = arith.addf %306, %337 : vector<8x288xf32>
    %cst_265 = arith.constant 0.000000e+00 : f32
    %339 = vector.broadcast %cst_265 : f32 to vector<8x4xf32>
    %340 = arith.index_cast %arg0 : i32 to index
    %c0_266 = arith.constant 0 : index
    %341 = memref.load %arg2[%340, %c0_266] : memref<2x4xf32, #tpu.memory_space<smem>>
    %c0_267 = arith.constant 0 : index
    %c8 = arith.constant 8 : index
    %c0_268 = arith.constant 0 : index
    %c0_269 = arith.constant 0 : index
    %342 = vector.load %arg4[%c0_267, %c8, %c0_268, %c0_269] : memref<4x9x8x4xf32, #tpu.memory_space<vmem>>, vector<1x1x8x4xf32>
    %343 = vector.shape_cast %342 : vector<1x1x8x4xf32> to vector<8x4xf32>
    %344 = vector.broadcast %341 : f32 to vector<8x4xf32>
    %345 = arith.mulf %344, %343 : vector<8x4xf32>
    %346 = arith.addf %339, %345 : vector<8x4xf32>
    %347 = arith.index_cast %arg0 : i32 to index
    %c1_270 = arith.constant 1 : index
    %348 = memref.load %arg2[%347, %c1_270] : memref<2x4xf32, #tpu.memory_space<smem>>
    %c1_271 = arith.constant 1 : index
    %c8_272 = arith.constant 8 : index
    %c0_273 = arith.constant 0 : index
    %c0_274 = arith.constant 0 : index
    %349 = vector.load %arg4[%c1_271, %c8_272, %c0_273, %c0_274] : memref<4x9x8x4xf32, #tpu.memory_space<vmem>>, vector<1x1x8x4xf32>
    %350 = vector.shape_cast %349 : vector<1x1x8x4xf32> to vector<8x4xf32>
    %351 = vector.broadcast %348 : f32 to vector<8x4xf32>
    %352 = arith.mulf %351, %350 : vector<8x4xf32>
    %353 = arith.addf %346, %352 : vector<8x4xf32>
    %354 = arith.index_cast %arg0 : i32 to index
    %c2_275 = arith.constant 2 : index
    %355 = memref.load %arg2[%354, %c2_275] : memref<2x4xf32, #tpu.memory_space<smem>>
    %c2_276 = arith.constant 2 : index
    %c8_277 = arith.constant 8 : index
    %c0_278 = arith.constant 0 : index
    %c0_279 = arith.constant 0 : index
    %356 = vector.load %arg4[%c2_276, %c8_277, %c0_278, %c0_279] : memref<4x9x8x4xf32, #tpu.memory_space<vmem>>, vector<1x1x8x4xf32>
    %357 = vector.shape_cast %356 : vector<1x1x8x4xf32> to vector<8x4xf32>
    %358 = vector.broadcast %355 : f32 to vector<8x4xf32>
    %359 = arith.mulf %358, %357 : vector<8x4xf32>
    %360 = arith.addf %353, %359 : vector<8x4xf32>
    %361 = arith.index_cast %arg0 : i32 to index
    %c3_280 = arith.constant 3 : index
    %362 = memref.load %arg2[%361, %c3_280] : memref<2x4xf32, #tpu.memory_space<smem>>
    %c3_281 = arith.constant 3 : index
    %c8_282 = arith.constant 8 : index
    %c0_283 = arith.constant 0 : index
    %c0_284 = arith.constant 0 : index
    %363 = vector.load %arg4[%c3_281, %c8_282, %c0_283, %c0_284] : memref<4x9x8x4xf32, #tpu.memory_space<vmem>>, vector<1x1x8x4xf32>
    %364 = vector.shape_cast %363 : vector<1x1x8x4xf32> to vector<8x4xf32>
    %365 = vector.broadcast %362 : f32 to vector<8x4xf32>
    %366 = arith.mulf %365, %364 : vector<8x4xf32>
    %367 = arith.addf %360, %366 : vector<8x4xf32>
    %c0_285 = arith.constant 0 : index
    %c38 = arith.constant 38 : index
    %368 = vector.load %arg7[%c0_285, %c38] : memref<4x326xf32, #tpu.memory_space<vmem>>, vector<4x288xf32>
    %cst_286 = arith.constant dense<0.000000e+00> : vector<8x288xf32>
    %369 = tpu.matmul %367, %368, %cst_286 {dimension_numbers = #tpu.dot_dimension_numbers<[1], [0], [0], [1], [0, 0, 1, 1], [], []>} : vector<8x4xf32>, vector<4x288xf32>, vector<8x288xf32> -> vector<8x288xf32>
    %370 = arith.addf %338, %369 : vector<8x288xf32>
    %cst_287 = arith.constant 0.000000e+00 : f32
    %371 = vector.broadcast %cst_287 : f32 to vector<8x1xf32>
    %372 = arith.index_cast %arg0 : i32 to index
    %c0_288 = arith.constant 0 : index
    %373 = memref.load %arg2[%372, %c0_288] : memref<2x4xf32, #tpu.memory_space<smem>>
    %c0_289 = arith.constant 0 : index
    %c0_290 = arith.constant 0 : index
    %c0_291 = arith.constant 0 : index
    %374 = vector.load %arg5[%c0_289, %c0_290, %c0_291] : memref<4x8x1xf32, #tpu.memory_space<vmem>>, vector<1x8x1xf32>
    %375 = vector.shape_cast %374 : vector<1x8x1xf32> to vector<8x1xf32>
    %376 = vector.broadcast %373 : f32 to vector<8x1xf32>
    %377 = arith.mulf %376, %375 : vector<8x1xf32>
    %378 = arith.addf %371, %377 : vector<8x1xf32>
    %379 = arith.index_cast %arg0 : i32 to index
    %c1_292 = arith.constant 1 : index
    %380 = memref.load %arg2[%379, %c1_292] : memref<2x4xf32, #tpu.memory_space<smem>>
    %c1_293 = arith.constant 1 : index
    %c0_294 = arith.constant 0 : index
    %c0_295 = arith.constant 0 : index
    %381 = vector.load %arg5[%c1_293, %c0_294, %c0_295] : memref<4x8x1xf32, #tpu.memory_space<vmem>>, vector<1x8x1xf32>
    %382 = vector.shape_cast %381 : vector<1x8x1xf32> to vector<8x1xf32>
    %383 = vector.broadcast %380 : f32 to vector<8x1xf32>
    %384 = arith.mulf %383, %382 : vector<8x1xf32>
    %385 = arith.addf %378, %384 : vector<8x1xf32>
    %386 = arith.index_cast %arg0 : i32 to index
    %c2_296 = arith.constant 2 : index
    %387 = memref.load %arg2[%386, %c2_296] : memref<2x4xf32, #tpu.memory_space<smem>>
    %c2_297 = arith.constant 2 : index
    %c0_298 = arith.constant 0 : index
    %c0_299 = arith.constant 0 : index
    %388 = vector.load %arg5[%c2_297, %c0_298, %c0_299] : memref<4x8x1xf32, #tpu.memory_space<vmem>>, vector<1x8x1xf32>
    %389 = vector.shape_cast %388 : vector<1x8x1xf32> to vector<8x1xf32>
    %390 = vector.broadcast %387 : f32 to vector<8x1xf32>
    %391 = arith.mulf %390, %389 : vector<8x1xf32>
    %392 = arith.addf %385, %391 : vector<8x1xf32>
    %393 = arith.index_cast %arg0 : i32 to index
    %c3_300 = arith.constant 3 : index
    %394 = memref.load %arg2[%393, %c3_300] : memref<2x4xf32, #tpu.memory_space<smem>>
    %c3_301 = arith.constant 3 : index
    %c0_302 = arith.constant 0 : index
    %c0_303 = arith.constant 0 : index
    %395 = vector.load %arg5[%c3_301, %c0_302, %c0_303] : memref<4x8x1xf32, #tpu.memory_space<vmem>>, vector<1x8x1xf32>
    %396 = vector.shape_cast %395 : vector<1x8x1xf32> to vector<8x1xf32>
    %397 = vector.broadcast %394 : f32 to vector<8x1xf32>
    %398 = arith.mulf %397, %396 : vector<8x1xf32>
    %399 = arith.addf %392, %398 : vector<8x1xf32>
    %400 = vector.broadcast %399 : vector<8x1xf32> to vector<8x288xf32>
    %401 = arith.addf %370, %400 : vector<8x288xf32>
    %c0_304 = arith.constant 0 : index
    %c0_305 = arith.constant 0 : index
    %c0_306 = arith.constant 0 : index
    %402 = vector.load %arg6[%c0_304, %c0_305, %c0_306] : memref<1x8x288xf32, #tpu.memory_space<vmem>>, vector<1x8x288xf32>
    %403 = vector.shape_cast %402 : vector<1x8x288xf32> to vector<8x288xf32>
    %404 = vector.shape_cast %401 : vector<8x288xf32> to vector<1x8x288xf32>
    tpu.vector_store %arg6[%c0_304, %c0_305, %c0_306], %404 {strides = array<i32>} : memref<1x8x288xf32, #tpu.memory_space<vmem>>, vector<1x8x288xf32>,
    return
  }
  func.func @transform_0(%arg0: i32, %arg1: i32, %arg2: memref<2x4xf32, #tpu.memory_space<smem>>) -> (i32, i32, i32) {
    %c0_i32 = arith.constant 0 : i32
    %c0_i32_0 = arith.constant 0 : i32
    %c0_i32_1 = arith.constant 0 : i32
    return %arg0, %c0_i32, %c0_i32_0 : i32, i32, i32
  }
  func.func @transform_1(%arg0: i32, %arg1: i32, %arg2: memref<2x4xf32, #tpu.memory_space<smem>>) -> (i32, i32, i32, i32) {
    %c0_i32 = arith.constant 0 : i32
    %c0_i32_0 = arith.constant 0 : i32
    %c0_i32_1 = arith.constant 0 : i32
    %c0_i32_2 = arith.constant 0 : i32
    return %c0_i32, %c0_i32_0, %arg1, %c0_i32_1 : i32, i32, i32, i32
  }
  func.func @transform_2(%arg0: i32, %arg1: i32, %arg2: memref<2x4xf32, #tpu.memory_space<smem>>) -> (i32, i32, i32) {
    %c0_i32 = arith.constant 0 : i32
    %c0_i32_0 = arith.constant 0 : i32
    %c0_i32_1 = arith.constant 0 : i32
    return %c0_i32, %arg1, %c0_i32_0 : i32, i32, i32
  }
  func.func @transform_3(%arg0: i32, %arg1: i32, %arg2: memref<2x4xf32, #tpu.memory_space<smem>>) -> (i32, i32, i32) {
    %c0_i32 = arith.constant 0 : i32
    %c0_i32_0 = arith.constant 0 : i32
    return %arg0, %arg1, %c0_i32 : i32, i32, i32
  }
}

</mosaic_0001>

<llo_original>
// kernel: tpu_custom_call.1
$region0: #{tpu_custom_call.1}
  #allocation0 [shape = 'u32[]', space=smem, size = 0x4, offset = 0x4, fixed_abs, tag = 'smem constant byte address 0x4 - core index']
  #allocation1 [shape = 'u32[144,128]{1,0:T(1,128)}', space=vmem, size = 0x12000, scoped, tag = 'internal scratch']
  #allocation2 [shape = 'f32[4,326]{1,0:T(4,128)}', space=vmem, size = 0x1800, scoped, tag = 'scratch operand']
  #allocation3 [shape = 's32[1]{0}', space=sflag, size = 0x4, scoped, tag = 'scoped memory for tpu_custom_call.1']
  #allocation4 [shape = 'u8[1024]{0}', space=smem, size = 0x400, scoped, tag = 'prefetched SMEM operand 0']
  %s0 = inlined_call_operand.vmem [shape: f32[2,4], index: 0, kind: input, shape index: {}]
  %s1 = inlined_call_operand.vmem [shape: f32[2,4,256], index: 1, kind: input, shape index: {}]
  %s2 = inlined_call_operand.vmem [shape: f32[4,9,8,4], index: 2, kind: input, shape index: {}]
  %s3 = inlined_call_operand.vmem [shape: f32[4,8,1], index: 3, kind: input, shape index: {}]
  %s4 = inlined_call_operand.hbm [shape: f32[2,8,288], index: 4, kind: output, shape index: {}]
  %s5 = sld [smem:[#allocation0]]
  $region45: #{tpu_custom_call.1} parent=0
    _
  %s7 = ssub.s32 1, %s5
  %s8 = scalar_select 0, %s7, %s5
  %s9 = sshll.u32 %s0, 4
  %s10 = int_to_ptr.vmem [resolvable:$true] %s9
  %12 = dma.vmem_to_smem %s10, 32, [#allocation4], [#allocation3]
  %13 = dma.done [#allocation3], 32
  %14 = sfence
  $region1: #{tpu_custom_call.1} parent=0
    #allocation5 [shape = 'u8[24576]{0}', space=vmem, size = 0x6000, scoped, tag = 'output window, operand 0']
    #allocation6 [shape = 's32[2]{0}', space=sflag, size = 0x8, scoped, tag = 'scoped memory for tpu_custom_call.1']
    %15 = vsyncpa [#allocation6], 0
    %s16 = scalar_lea.sflag [#allocation6], 1
    %17 = vsyncpa %s16, 0
    loop: start=0, step=1, limit=4
    $region2: #{tpu_custom_call.1} parent=1 // loop_pre_header
      _
    $region3: #{tpu_custom_call.1} parent=1 // loop_header
      %s19 = sphi 0, %s23
      %p20 = scmp.ge.s32.totalorder %s19, 4
      %s26 = sphi 0, %s38
      %s27 = sphi 0, %s34
      %s28 = sphi 0, %s26
      %s29 = sphi 0, %s27
      %s30 = sphi 0, %s28
      %s31 = sphi 0, %s29
      %s41 = sphi 0, %s43
      %s44 = sphi 0, %s41
      %s45 = sphi 0, %s44
      %s61 = sphi 0, %s45
      %s67 = sphi 0, %s69
      %s70 = sphi 0, %s67
      %s71 = sphi 0, %s70
      %s87 = sphi 0, %s71
      %s93 = sphi 0, %s95
      %s96 = sphi 0, %s93
      %s97 = sphi 0, %s96
      %s113 = sphi 0, %s97
      %s121 = sphi 0, %s123
      %s124 = sphi 0, %s121
      %s125 = sphi 0, %s124
      %s141 = sphi 0, %s125
    $region4: #{tpu_custom_call.1} parent=1 // loop_header_branch
      %22 = sbr.rel (%p20) target = $region8
    $region5: #{tpu_custom_call.1} parent=1 // loop_body
      %s24 = ssub.s32 %s19, 1
      %s25 = ssub.s32 %s19, 2
      %s32 = sadd.s32 1, %s27
      %p33 = scmp.ge.s32.totalorder %s32, 1
      %s34 = scalar_select %p33, 0, %s32
      %s35 = sadd.s32 1, %s26
      %s36 = scalar_select %p33, %s35, %s26
      %p37 = scmp.ge.s32.totalorder %s36, 2
      %s38 = scalar_select %p37, 0, %s36
      %s39 = ssub.s32 %s26, %s38
      %p40 = scmp.eq.s32.totalorder %s39, 0
      %s42 = sadd.s32 %s41, 1
      %s43 = scalar_select %p40, %s41, %s42
      %p46 = pneg %p40
      %p47 = scmp.eq.s32.totalorder %s19, 1
      %p48 = por %p46, %p47
      %p49 = scmp.ne.s32.totalorder %s41, %s44
      %p50 = scmp.eq.s32.totalorder %s19, 0
      %p51 = por %p49, %p50
      %p52 = scmp.ne.s32.totalorder %s41, %s44
      %p53 = scmp.eq.s32.totalorder %s24, 1
      %p54 = por %p52, %p53
      %p55 = scmp.ne.s32.totalorder %s44, %s45
      %p56 = scmp.eq.s32.totalorder %s24, 0
      %p57 = por %p55, %p56
      %p58 = scmp.ne.s32.totalorder %s44, %s45
      %p59 = scmp.eq.s32.totalorder %s25, 1
      %p60 = por %p58, %p59
      %p62 = scmp.ne.s32.totalorder %s45, %s61
      %p63 = scmp.eq.s32.totalorder %s25, 0
      %p64 = por %p62, %p63
      %s65 = ssub.s32 %s27, %s34
      %p66 = scmp.eq.s32.totalorder %s65, 0
      %s68 = sadd.s32 %s67, 1
      %s69 = scalar_select %p66, %s67, %s68
      %p72 = pneg %p66
      %p73 = scmp.eq.s32.totalorder %s19, 1
      %p74 = por %p72, %p73
      %p75 = scmp.ne.s32.totalorder %s67, %s70
      %p76 = scmp.eq.s32.totalorder %s19, 0
      %p77 = por %p75, %p76
      %p78 = scmp.ne.s32.totalorder %s67, %s70
      %p79 = scmp.eq.s32.totalorder %s24, 1
      %p80 = por %p78, %p79
      %p81 = scmp.ne.s32.totalorder %s70, %s71
      %p82 = scmp.eq.s32.totalorder %s24, 0
      %p83 = por %p81, %p82
      %p84 = scmp.ne.s32.totalorder %s70, %s71
      %p85 = scmp.eq.s32.totalorder %s25, 1
      %p86 = por %p84, %p85
      %p88 = scmp.ne.s32.totalorder %s71, %s87
      %p89 = scmp.eq.s32.totalorder %s25, 0
      %p90 = por %p88, %p89
      %s91 = ssub.s32 %s27, %s34
      %p92 = scmp.eq.s32.totalorder %s91, 0
      %s94 = sadd.s32 %s93, 1
      %s95 = scalar_select %p92, %s93, %s94
      %p98 = pneg %p92
      %p99 = scmp.eq.s32.totalorder %s19, 1
      %p100 = por %p98, %p99
      %p101 = scmp.ne.s32.totalorder %s93, %s96
      %p102 = scmp.eq.s32.totalorder %s19, 0
      %p103 = por %p101, %p102
      %p104 = scmp.ne.s32.totalorder %s93, %s96
      %p105 = scmp.eq.s32.totalorder %s24, 1
      %p106 = por %p104, %p105
      %p107 = scmp.ne.s32.totalorder %s96, %s97
      %p108 = scmp.eq.s32.totalorder %s24, 0
      %p109 = por %p107, %p108
      %p110 = scmp.ne.s32.totalorder %s96, %s97
      %p111 = scmp.eq.s32.totalorder %s25, 1
      %p112 = por %p110, %p111
      %p114 = scmp.ne.s32.totalorder %s97, %s113
      %p115 = scmp.eq.s32.totalorder %s25, 0
      %p116 = por %p114, %p115
      %s117 = ssub.s32 %s26, %s38
      %s118 = ssub.s32 %s27, %s34
      %s119 = sor.u32 %s117, %s118
      %p120 = scmp.eq.s32.totalorder %s119, 0
      %s122 = sadd.s32 %s121, 1
      %s123 = scalar_select %p120, %s121, %s122
      %p126 = pneg %p120
      %p127 = scmp.eq.s32.totalorder %s19, 1
      %p128 = por %p126, %p127
      %p129 = scmp.ne.s32.totalorder %s121, %s124
      %p130 = scmp.eq.s32.totalorder %s19, 0
      %p131 = por %p129, %p130
      %p132 = scmp.ne.s32.totalorder %s121, %s124
      %p133 = scmp.eq.s32.totalorder %s24, 1
      %p134 = por %p132, %p133
      %p135 = scmp.ne.s32.totalorder %s124, %s125
      %p136 = scmp.eq.s32.totalorder %s24, 0
      %p137 = por %p135, %p136
      %p138 = scmp.ne.s32.totalorder %s124, %s125
      %p139 = scmp.eq.s32.totalorder %s25, 1
      %p140 = por %p138, %p139
      %p142 = scmp.ne.s32.totalorder %s125, %s141
      %p143 = scmp.eq.s32.totalorder %s25, 0
      %p144 = por %p142, %p143
      %p145 = scmp.le.s32.totalorder 1, %s19
      %p146 = scmp.lt.s32.totalorder %s19, 3
      %p147 = pnand %p145, %p146
      %p148 = pneg %p147
      // Predicated region
      $region9: #{tpu_custom_call.1} parent=5 // pred_check
        _
      $region10: #{tpu_custom_call.1} parent=5 // pred_check_branch
        %150 = sbr.rel (%p147) target = $region12
      $region11: #{tpu_custom_call.1} parent=5 // pred_region
        %s151 = ssub.s32 %s19, 1
        // Predicated region
        $region13: #{tpu_custom_call.1} parent=11 // pred_check
          %p152 = pneg %p83
        $region14: #{tpu_custom_call.1} parent=11 // pred_check_branch
          %154 = sbr.rel (%p152) target = $region16
        $region15: #{tpu_custom_call.1} parent=11 // pred_region
          %p155 = scmp.lt.s32.totalorder %s29, 0
          %s156 = scalar_select %p155, %s29, 0
          %s157 = smul.addr %s156, 8
          %s158 = scalar_lea.vmem %s2, %s157
        $region16: #{tpu_custom_call.1} parent=11 // pred_fallthru
          _
        // Predicated region
        $region17: #{tpu_custom_call.1} parent=11 // pred_check
          %p159 = pneg %p109
        $region18: #{tpu_custom_call.1} parent=11 // pred_check_branch
          %161 = sbr.rel (%p159) target = $region20
        $region19: #{tpu_custom_call.1} parent=11 // pred_region
          %p162 = scmp.lt.s32.totalorder %s29, 0
          %s163 = scalar_select %p162, %s29, 0
          %s164 = smul.addr %s163, 8
          %s165 = scalar_lea.vmem %s3, %s164
        $region20: #{tpu_custom_call.1} parent=11 // pred_fallthru
          _
      $region12: #{tpu_custom_call.1} parent=5 // pred_fallthru
        _
      %p166 = scmp.lt.s32.totalorder %s19, 2
      // Predicated region
      $region21: #{tpu_custom_call.1} parent=5 // pred_check
        %p167 = pneg %p166
      $region22: #{tpu_custom_call.1} parent=5 // pred_check_branch
        %169 = sbr.rel (%p167) target = $region24
      $region23: #{tpu_custom_call.1} parent=5 // pred_region
        // Predicated region
        $region25: #{tpu_custom_call.1} parent=23 // pred_check
          %p170 = pneg %p51
        $region26: #{tpu_custom_call.1} parent=23 // pred_check_branch
          %172 = sbr.rel (%p170) target = $region28
        $region27: #{tpu_custom_call.1} parent=23 // pred_region
          %p173 = scmp.lt.s32.totalorder %s26, 1
          %s174 = scalar_select %p173, %s26, 1
          %s175 = smul.addr %s174, 2
          %s176 = smul.addr %s175, 4
          %s177 = scalar_lea.vmem %s1, %s176
        $region28: #{tpu_custom_call.1} parent=23 // pred_fallthru
          _
      $region24: #{tpu_custom_call.1} parent=5 // pred_fallthru
        _
      %p178 = scmp.le.s32.totalorder 1, %s19
      %p179 = scmp.lt.s32.totalorder %s19, 3
      %p180 = pnand %p178, %p179
      %p181 = pneg %p180
      // Predicated region
      $region29: #{tpu_custom_call.1} parent=5 // pred_check
        _
      $region30: #{tpu_custom_call.1} parent=5 // pred_check_branch
        %183 = sbr.rel (%p180) target = $region32
      $region31: #{tpu_custom_call.1} parent=5 // pred_region
        %s184 = ssub.s32 %s19, 1
        %p185 = scmp.lt.s32.totalorder %s28, 1
        %s186 = scalar_select %p185, %s28, 1
        %s187 = smul.addr %s186, 2
        %s188 = smul.addr %s187, 4
        %s189 = scalar_lea.vmem %s1, %s188
        %p190 = pneg %p57
        %p191 = pneg %p54
        %p192 = scmp.lt.s32.totalorder %s29, 0
        %s193 = scalar_select %p192, %s29, 0
        %s194 = smul.addr %s193, 8
        %s195 = scalar_lea.vmem %s2, %s194
        %p196 = pneg %p83
        %p197 = pneg %p80
        %p198 = scmp.lt.s32.totalorder %s29, 0
        %s199 = scalar_select %p198, %s29, 0
        %s200 = smul.addr %s199, 8
        %s201 = scalar_lea.vmem %s3, %s200
        %p202 = pneg %p109
        %p203 = pneg %p106
        %p204 = pneg %p137
        %p205 = pneg %p134
        %s206 = sand.u32 %s124, 1
        %s207 = scalar_lea.sflag [#allocation6], %s206
        %s208 = sand.u32 %s124, 1
        %s209 = smul.addr %s208, 24
        %s210 = scalar_lea.vmem [#allocation5], %s209
        %p211 = scmp.lt.s32.totalorder %s28, 1
        %s212 = scalar_select %p211, %s28, 1
        %s213 = smul.addr %s212, 2
        %s214 = smul.addr %s213, 4
        %s215 = scalar_lea.vmem %s1, %s214
        %p216 = scmp.lt.s32.totalorder %s29, 0
        %s217 = scalar_select %p216, %s29, 0
        %s218 = smul.addr %s217, 8
        %s219 = scalar_lea.vmem %s2, %s218
        %p220 = scmp.lt.s32.totalorder %s29, 0
        %s221 = scalar_select %p220, %s29, 0
        %s222 = smul.addr %s221, 8
        %s223 = scalar_lea.vmem %s3, %s222
        %vm224 = vcmask 150528
        %225 = vst.msk [vmem:[#allocation2] sm:$0xf] %vm224, 0.0
        %v226 = vld [vmem:[%s215] sm:$0xf]
        %228 = vrot.lane.b32.xlu0 %v226, 19
        %v229 = vpop.permute.xlu0 %228
        %vm231 = vcmask 281752
        %232 = vst.msk [vmem:[#allocation2] sm:$0xf] %vm231, %v229
        %vm233 = vcmask 298264
        %234 = vst.msk [vmem:[#allocation2] sm:$0xf] %vm233, 0.0
        %v235 = vld [vmem:[%s215] sm:$0xf]
        %237 = vrot.lane.b32.xlu0 %v235, 21
        %v238 = vpop.permute.xlu0 %237
        %vm240 = vcmask 429352
        %241 = vst.msk [vmem:[#allocation2] sm:$0xf] %vm240, %v238
        %vm242 = vcmask 445864
        %243 = vst.msk [vmem:[#allocation2] sm:$0xf] %vm242, 0.0
        %v244 = vld [vmem:[%s215] sm:$0xf]
        %246 = vrot.lane.b32.xlu0 %v244, 23
        %v247 = vpop.permute.xlu0 %246
        %vm249 = vcmask 576952
        %250 = vst.msk [vmem:[#allocation2] sm:$0xf] %vm249, %v247
        %vm251 = vcmask 593464
        %252 = vst.msk [vmem:[#allocation2] sm:$0xf] %vm251, 0.0
        %v253 = vld [vmem:[%s215] sm:$0xf]
        %255 = vrot.lane.b32.xlu0 %v253, 25
        %v256 = vpop.permute.xlu0 %255
        %vm258 = vcmask 724552
        %259 = vst.msk [vmem:[#allocation2] sm:$0xf] %vm258, %v256
        %vm260 = vcmask 741064
        %261 = vst.msk [vmem:[#allocation2] sm:$0xf] %vm260, 0.0
        %v262 = vld [vmem:[%s215] sm:$0xf]
        %264 = vrot.lane.b32.xlu0 %v262, 27
        %v265 = vpop.permute.xlu0 %264
        %vm267 = vcmask 872152
        %268 = vst.msk [vmem:[#allocation2] sm:$0xf] %vm267, %v265
        %vm269 = vcmask 888664
        %270 = vst.msk [vmem:[#allocation2] sm:$0xf] %vm269, 0.0
        %v271 = vld [vmem:[%s215] sm:$0xf]
        %273 = vrot.lane.b32.xlu0 %v271, 29
        %v274 = vpop.permute.xlu0 %273
        %vm276 = vcmask 1019752
        %277 = vst.msk [vmem:[#allocation2] sm:$0xf] %vm276, %v274
        %vm278 = vcmask 1036264
        %279 = vst.msk [vmem:[#allocation2] sm:$0xf] %vm278, 0.0
        %v280 = vld [vmem:[%s215] sm:$0xf]
        %282 = vrot.lane.b32.xlu0 %v280, 31
        %v283 = vpop.permute.xlu0 %282
        %v284 = vrot.slane %v283, 4
        %vm285 = vcmask 252928
        %v286 = vsel %vm285, %v284, %v283
        %vm288 = vcmask 1044472
        %vm289 = vcmask 121860
        %vm290 = vmor %vm289, %vm288
        %291 = vst.msk [vmem:[#allocation2] sm:$0xff] %vm290, %v286
        %vm292 = vcmask 134264
        %293 = vst.msk [vmem:[#allocation2 + $0x4] sm:$0xf] %vm292, 0.0
        %v294 = vld [vmem:[%s215] sm:$0xf]
        %296 = vrot.lane.b32.xlu0 %v294, 33
        %v297 = vpop.permute.xlu0 %296
        %vm299 = vcmask 265352
        %300 = vst.msk [vmem:[#allocation2 + $0x4] sm:$0xf] %vm299, %v297
        %vm301 = vcmask 281864
        %302 = vst.msk [vmem:[#allocation2 + $0x4] sm:$0xf] %vm301, 0.0
        %v303 = vld [vmem:[%s215 + $0x4] sm:$0xf]
        %305 = vrot.lane.b32.xlu0 %v303, 35
        %v306 = vpop.permute.xlu0 %305
        %vm308 = vcmask 412952
        %309 = vst.msk [vmem:[#allocation2 + $0x4] sm:$0xf] %vm308, %v306
        %vm310 = vcmask 429464
        %311 = vst.msk [vmem:[#allocation2 + $0x4] sm:$0xf] %vm310, 0.0
        %v312 = vld [vmem:[%s215 + $0x4] sm:$0xf]
        %314 = vrot.lane.b32.xlu0 %v312, 37
        %v315 = vpop.permute.xlu0 %314
        %vm317 = vcmask 560552
        %318 = vst.msk [vmem:[#allocation2 + $0x4] sm:$0xf] %vm317, %v315
        %vm319 = vcmask 577064
        %320 = vst.msk [vmem:[#allocation2 + $0x4] sm:$0xf] %vm319, 0.0
        %v321 = vld [vmem:[%s215 + $0x4] sm:$0xf]
        %323 = vrot.lane.b32.xlu0 %v321, 39
        %v324 = vpop.permute.xlu0 %323
        %vm326 = vcmask 708152
        %327 = vst.msk [vmem:[#allocation2 + $0x4] sm:$0xf] %vm326, %v324
        %vm328 = vcmask 724664
        %329 = vst.msk [vmem:[#allocation2 + $0x4] sm:$0xf] %vm328, 0.0
        %v330 = vld [vmem:[%s215 + $0x4] sm:$0xf]
        %332 = vrot.lane.b32.xlu0 %v330, 41
        %v333 = vpop.permute.xlu0 %332
        %vm335 = vcmask 855752
        %336 = vst.msk [vmem:[#allocation2 + $0x4] sm:$0xf] %vm335, %v333
        %vm337 = vcmask 872264
        %338 = vst.msk [vmem:[#allocation2 + $0x4] sm:$0xf] %vm337, 0.0
        %v339 = vld [vmem:[%s215 + $0x4] sm:$0xf]
        %341 = vrot.lane.b32.xlu0 %v339, 43
        %v342 = vpop.permute.xlu0 %341
        %vm344 = vcmask 1003352
        %345 = vst.msk [vmem:[#allocation2 + $0x4] sm:$0xf] %vm344, %v342
        %vm346 = vcmask 1019864
        %347 = vst.msk [vmem:[#allocation2 + $0x4] sm:$0xf] %vm346, 0.0
        %v348 = vld [vmem:[%s215 + $0x4] sm:$0xf]
        %350 = vrot.lane.b32.xlu0 %v348, 45
        %v351 = vpop.permute.xlu0 %350
        %v352 = vrot.slane %v351, 4
        %vm353 = vcmask 367616
        %v354 = vsel %vm353, %v352, %v351
        %vm356 = vcmask 1044456
        %vm357 = vcmask 105476
        %vm358 = vmor %vm357, %vm356
        %359 = vst.msk [vmem:[#allocation2 + $0x4] sm:$0xff] %vm358, %v354
        %vm360 = vcmask 117864
        %361 = vst.msk [vmem:[#allocation2 + $0x8] sm:$0xf] %vm360, 0.0
        %v362 = vld [vmem:[%s215 + $0x4] sm:$0xf]
        %364 = vrot.lane.b32.xlu0 %v362, 47
        %v365 = vpop.permute.xlu0 %364
        %vm367 = vcmask 248952
        %368 = vst.msk [vmem:[#allocation2 + $0x8] sm:$0xf] %vm367, %v365
        %vm369 = vcmask 265464
        %370 = vst.msk [vmem:[#allocation2 + $0x8] sm:$0xf] %vm369, 0.0
        %v371 = vld [vmem:[%s215 + $0x4] sm:$0xf]
        %373 = vrot.lane.b32.xlu0 %v371, 49
        %v374 = vpop.permute.xlu0 %373
        %vm376 = vcmask 396552
        %377 = vst.msk [vmem:[#allocation2 + $0x8] sm:$0xf] %vm376, %v374
        %vm378 = vcmask 568712
        %379 = vst.msk [vmem:[#allocation2 + $0x8] sm:$0xf] %vm378, 0.0
        %s380 = smul.u32 %s28, 128
        %s381 = sld [smem:[#allocation4 + %s380]]
        %v382 = vld [vmem:[%s219] sm:$0xff]
        %v383 = vstv %s381
        %v384 = vmul.f32 %v383, %v382
        %v385 = vadd.f32 %v384, 0.0
        %s386 = sadd.s32 %s380, 1
        %s387 = sld [smem:[#allocation4 + %s386]]
        %s388 = scalar_lea.vmem %s219, 72
        %v389 = vld [vmem:[%s388] sm:$0xff]
        %v390 = vstv %s387
        %v391 = vmul.f32 %v390, %v389
        %v392 = vadd.f32 %v385, %v391
        %s393 = sadd.s32 %s380, 2
        %s394 = sld [smem:[#allocation4 + %s393]]
        %s395 = scalar_lea.vmem %s219, 144
        %v396 = vld [vmem:[%s395] sm:$0xff]
        %v397 = vstv %s394
        %v398 = vmul.f32 %v397, %v396
        %v399 = vadd.f32 %v392, %v398
        %s400 = sadd.s32 %s380, 3
        %s401 = sld [smem:[#allocation4 + %s400]]
        %s402 = scalar_lea.vmem %s219, 216
        %v403 = vld [vmem:[%s402] sm:$0xff]
        %v404 = vstv %s401
        %v405 = vmul.f32 %v404, %v403
        %v406 = vadd.f32 %v399, %v405
        %v407 = vld [vmem:[#allocation2] sm:$0xff]
        %v408 = vld [vmem:[#allocation2 + $0x8] sm:$0xf]
        %s409 = scalar_lea.vmem %s219, 8
        %v410 = vld [vmem:[%s409] sm:$0xff]
        %v411 = vmul.f32 %v383, %v410
        %v412 = vadd.f32 %v411, 0.0
        %s413 = scalar_lea.vmem %s219, 80
        %v414 = vld [vmem:[%s413] sm:$0xff]
        %v415 = vmul.f32 %v390, %v414
        %v416 = vadd.f32 %v412, %v415
        %s417 = scalar_lea.vmem %s219, 152
        %v418 = vld [vmem:[%s417] sm:$0xff]
        %v419 = vmul.f32 %v397, %v418
        %v420 = vadd.f32 %v416, %v419
        %s421 = scalar_lea.vmem %s219, 224
        %v422 = vld [vmem:[%s421] sm:$0xff]
        %v423 = vmul.f32 %v404, %v422
        %v424 = vadd.f32 %v420, %v423
        %v427 = vcombine.high %v407, %v407
        %428 = vrot.lane.b32.xlu0 %v407, 127
        %v429 = vpop.permute.xlu0 %428
        %430 = vrot.lane.b32.xlu0 %v427, 127
        %v431 = vpop.permute.xlu0 %430
        %432 = vrot.lane.b32.xlu0 %v408, 127
        %v433 = vpop.permute.xlu0 %432
        %vm434 = vcmask 1039360
        %v435 = vsel %vm434, %v429, %v431
        %v436 = vsel %vm434, %v431, %v433
        %vm437 = vcmask 31744
        %v439 = vsel %vm437, %v424, 0
        %vm441 = vcmask 1043456
        %v442 = vsel %vm441, %v435, 0
        %v444 = vsel %vm441, %v436, 0
        %v446 = vsel %vm441, %v433, 0
        %448 = vmatprep.subr.mxu0 0.0
        %449 = vmatpush1.msra.mxu0 0.0
        %450 = vmatprep.subr.mxu0 0.0
        %451 = vmatpush1.msra.mxu0 0.0
        %452 = vmatprep.subr.mxu0 0.0
        %453 = vmatpush1.msra.mxu0 0.0
        %454 = vmatprep.subr.mxu0 0.0
        %455 = vmatpush1.msra.mxu0 0.0
        %456 = vmatprep.subr.mxu0 0.0
        %457 = vmatpush1.msra.mxu0 0.0
        %458 = vmatprep.subr.mxu0 0.0
        %459 = vmatpush1.msra.mxu0 0.0
        %460 = vmatprep.subr.mxu0 0.0
        %461 = vmatpush1.msra.mxu0 0.0
        %462 = vmatprep.subr.mxu0 0.0
        %463 = vmatpush1.msra.mxu0 0.0
        %464 = vmatprep.subr.mxu0 0.0
        %465 = vmatpush1.msra.mxu0 0.0
        %466 = vmatprep.subr.mxu0 0.0
        %467 = vmatpush1.msra.mxu0 0.0
        %468 = vmatprep.subr.mxu0 0.0
        %469 = vmatpush1.msra.mxu0 0.0
        %470 = vmatprep.subr.mxu0 0.0
        %471 = vmatpush1.msra.mxu0 0.0
        %472 = vmatprep.subr.mxu0 0.0
        %473 = vmatpush1.msra.mxu0 0.0
        %474 = vmatprep.subr.mxu0 0.0
        %475 = vmatpush1.msra.mxu0 0.0
        %476 = vmatprep.subr.mxu0 0.0
        %477 = vmatpush1.msra.mxu0 0.0
        %478 = vmatprep.subr.mxu0 %v444
        %479 = vmatpush1.msra.mxu0 %v442
        %480 = vmatprep.subr.mxu0 0.0
        %481 = vmatpush2.msra.mxu0 0.0
        %482 = vmatprep.subr.mxu0 0.0
        %483 = vmatpush2.msra.mxu0 0.0
        %484 = vmatprep.subr.mxu0 0.0
        %485 = vmatpush2.msra.mxu0 0.0
        %486 = vmatprep.subr.mxu0 0.0
        %487 = vmatpush2.msra.mxu0 0.0
        %488 = vmatprep.subr.mxu0 0.0
        %489 = vmatpush2.msra.mxu0 0.0
        %490 = vmatprep.subr.mxu0 0.0
        %491 = vmatpush2.msra.mxu0 0.0
        %492 = vmatprep.subr.mxu0 0.0
        %493 = vmatpush2.msra.mxu0 0.0
        %494 = vmatprep.subr.mxu0 0.0
        %495 = vmatpush2.msra.mxu0 0.0
        %496 = vmatprep.subr.mxu0 0.0
        %497 = vmatpush2.msra.mxu0 0.0
        %498 = vmatprep.subr.mxu0 0.0
        %499 = vmatpush2.msra.mxu0 0.0
        %500 = vmatprep.subr.mxu0 0.0
        %501 = vmatpush2.msra.mxu0 0.0
        %502 = vmatprep.subr.mxu0 0.0
        %503 = vmatpush2.msra.mxu0 0.0
        %504 = vmatprep.subr.mxu0 0.0
        %505 = vmatpush2.msra.mxu0 0.0
        %506 = vmatprep.subr.mxu0 0.0
        %507 = vmatpush2.msra.mxu0 0.0
        %508 = vmatprep.subr.mxu0 0.0
        %509 = vmatpush2.msra.mxu0 0.0
        %510 = vmatprep.subr.mxu0 0.0
        %511 = vmatpush2.msra.mxu0 0.0
        %512 = vmatprep.mubr.f32.mxu0 0.0
        %513 = vmatmul.mubr.f32.gmra.mxu0 %v439
        %v514 = vpop.f32.mrf.mxu0
        %v515 = vadd.f32 0.0, %v514
        %v516 = vpop.f32.mrf.mxu0
        %v517 = vadd.f32 0.0, %v516
        %518 = vdwg.mxu0
        %519 = vmatprep.subr.mxu0 0.0
        %520 = vmatpush1.msra.mxu0 0.0
        %521 = vmatprep.subr.mxu0 0.0
        %522 = vmatpush1.msra.mxu0 0.0
        %523 = vmatprep.subr.mxu0 0.0
        %524 = vmatpush1.msra.mxu0 0.0
        %525 = vmatprep.subr.mxu0 0.0
        %526 = vmatpush1.msra.mxu0 0.0
        %527 = vmatprep.subr.mxu0 0.0
        %528 = vmatpush1.msra.mxu0 0.0
        %529 = vmatprep.subr.mxu0 0.0
        %530 = vmatpush1.msra.mxu0 0.0
        %531 = vmatprep.subr.mxu0 0.0
        %532 = vmatpush1.msra.mxu0 0.0
        %533 = vmatprep.subr.mxu0 0.0
        %534 = vmatpush1.msra.mxu0 0.0
        %535 = vmatprep.subr.mxu0 0.0
        %536 = vmatpush1.msra.mxu0 0.0
        %537 = vmatprep.subr.mxu0 0.0
        %538 = vmatpush1.msra.mxu0 0.0
        %539 = vmatprep.subr.mxu0 0.0
        %540 = vmatpush1.msra.mxu0 0.0
        %541 = vmatprep.subr.mxu0 0.0
        %542 = vmatpush1.msra.mxu0 0.0
        %543 = vmatprep.subr.mxu0 0.0
        %544 = vmatpush1.msra.mxu0 0.0
        %545 = vmatprep.subr.mxu0 0.0
        %546 = vmatpush1.msra.mxu0 0.0
        %547 = vmatprep.subr.mxu0 0.0
        %548 = vmatpush1.msra.mxu0 0.0
        %549 = vmatprep.subr.mxu0 0.0
        %550 = vmatpush1.msra.mxu0 %v446
        %551 = vmatprep.subr.mxu0 0.0
        %552 = vmatpush2.msra.mxu0 0.0
        %553 = vmatprep.subr.mxu0 0.0
        %554 = vmatpush2.msra.mxu0 0.0
        %555 = vmatprep.subr.mxu0 0.0
        %556 = vmatpush2.msra.mxu0 0.0
        %557 = vmatprep.subr.mxu0 0.0
        %558 = vmatpush2.msra.mxu0 0.0
        %559 = vmatprep.subr.mxu0 0.0
        %560 = vmatpush2.msra.mxu0 0.0
        %561 = vmatprep.subr.mxu0 0.0
        %562 = vmatpush2.msra.mxu0 0.0
        %563 = vmatprep.subr.mxu0 0.0
        %564 = vmatpush2.msra.mxu0 0.0
        %565 = vmatprep.subr.mxu0 0.0
        %566 = vmatpush2.msra.mxu0 0.0
        %567 = vmatprep.subr.mxu0 0.0
        %568 = vmatpush2.msra.mxu0 0.0
        %569 = vmatprep.subr.mxu0 0.0
        %570 = vmatpush2.msra.mxu0 0.0
        %571 = vmatprep.subr.mxu0 0.0
        %572 = vmatpush2.msra.mxu0 0.0
        %573 = vmatprep.subr.mxu0 0.0
        %574 = vmatpush2.msra.mxu0 0.0
        %575 = vmatprep.subr.mxu0 0.0
        %576 = vmatpush2.msra.mxu0 0.0
        %577 = vmatprep.subr.mxu0 0.0
        %578 = vmatpush2.msra.mxu0 0.0
        %579 = vmatprep.subr.mxu0 0.0
        %580 = vmatpush2.msra.mxu0 0.0
        %581 = vmatprep.subr.mxu0 0.0
        %582 = vmatpush2.msra.mxu0 0.0
        %583 = vmatprep.mubr.f32.mxu0 0.0
        %584 = vmatmul.mubr.f32.gmra.mxu0 %v439
        %v585 = vpop.f32.mrf.mxu0
        %v586 = vadd.f32 0.0, %v585
        %v587 = vpop.f32.mrf.mxu0
        %588 = vdwg.mxu0
        %v590 = vsel %vm437, %v406, 0
        %v592 = vsel %vm441, %v407, 0
        %v594 = vsel %vm441, %v427, 0
        %v596 = vsel %vm441, %v408, 0
        %598 = vmatprep.subr.mxu0 0.0
        %599 = vmatpush1.msra.mxu0 0.0
        %600 = vmatprep.subr.mxu0 0.0
        %601 = vmatpush1.msra.mxu0 0.0
        %602 = vmatprep.subr.mxu0 0.0
        %603 = vmatpush1.msra.mxu0 0.0
        %604 = vmatprep.subr.mxu0 0.0
        %605 = vmatpush1.msra.mxu0 0.0
        %606 = vmatprep.subr.mxu0 0.0
        %607 = vmatpush1.msra.mxu0 0.0
        %608 = vmatprep.subr.mxu0 0.0
        %609 = vmatpush1.msra.mxu0 0.0
        %610 = vmatprep.subr.mxu0 0.0
        %611 = vmatpush1.msra.mxu0 0.0
        %612 = vmatprep.subr.mxu0 0.0
        %613 = vmatpush1.msra.mxu0 0.0
        %614 = vmatprep.subr.mxu0 0.0
        %615 = vmatpush1.msra.mxu0 0.0
        %616 = vmatprep.subr.mxu0 0.0
        %617 = vmatpush1.msra.mxu0 0.0
        %618 = vmatprep.subr.mxu0 0.0
        %619 = vmatpush1.msra.mxu0 0.0
        %620 = vmatprep.subr.mxu0 0.0
        %621 = vmatpush1.msra.mxu0 0.0
        %622 = vmatprep.subr.mxu0 0.0
        %623 = vmatpush1.msra.mxu0 0.0
        %624 = vmatprep.subr.mxu0 0.0
        %625 = vmatpush1.msra.mxu0 0.0
        %626 = vmatprep.subr.mxu0 0.0
        %627 = vmatpush1.msra.mxu0 0.0
        %628 = vmatprep.subr.mxu0 %v594
        %629 = vmatpush1.msra.mxu0 %v592
        %630 = vmatprep.subr.mxu0 0.0
        %631 = vmatpush2.msra.mxu0 0.0
        %632 = vmatprep.subr.mxu0 0.0
        %633 = vmatpush2.msra.mxu0 0.0
        %634 = vmatprep.subr.mxu0 0.0
        %635 = vmatpush2.msra.mxu0 0.0
        %636 = vmatprep.subr.mxu0 0.0
        %637 = vmatpush2.msra.mxu0 0.0
        %638 = vmatprep.subr.mxu0 0.0
        %639 = vmatpush2.msra.mxu0 0.0
        %640 = vmatprep.subr.mxu0 0.0
        %641 = vmatpush2.msra.mxu0 0.0
        %642 = vmatprep.subr.mxu0 0.0
        %643 = vmatpush2.msra.mxu0 0.0
        %644 = vmatprep.subr.mxu0 0.0
        %645 = vmatpush2.msra.mxu0 0.0
        %646 = vmatprep.subr.mxu0 0.0
        %647 = vmatpush2.msra.mxu0 0.0
        %648 = vmatprep.subr.mxu0 0.0
        %649 = vmatpush2.msra.mxu0 0.0
        %650 = vmatprep.subr.mxu0 0.0
        %651 = vmatpush2.msra.mxu0 0.0
        %652 = vmatprep.subr.mxu0 0.0
        %653 = vmatpush2.msra.mxu0 0.0
        %654 = vmatprep.subr.mxu0 0.0
        %655 = vmatpush2.msra.mxu0 0.0
        %656 = vmatprep.subr.mxu0 0.0
        %657 = vmatpush2.msra.mxu0 0.0
        %658 = vmatprep.subr.mxu0 0.0
        %659 = vmatpush2.msra.mxu0 0.0
        %660 = vmatprep.subr.mxu0 0.0
        %661 = vmatpush2.msra.mxu0 0.0
        %662 = vmatprep.mubr.f32.mxu0 0.0
        %663 = vmatmul.mubr.f32.gmra.mxu0 %v590
        %v664 = vpop.f32.mrf.mxu0
        %v665 = vadd.f32 %v515, %v664
        %v666 = vpop.f32.mrf.mxu0
        %v667 = vadd.f32 %v517, %v666
        %668 = vdwg.mxu0
        %669 = vmatprep.subr.mxu0 0.0
        %670 = vmatpush1.msra.mxu0 0.0
        %671 = vmatprep.subr.mxu0 0.0
        %672 = vmatpush1.msra.mxu0 0.0
        %673 = vmatprep.subr.mxu0 0.0
        %674 = vmatpush1.msra.mxu0 0.0
        %675 = vmatprep.subr.mxu0 0.0
        %676 = vmatpush1.msra.mxu0 0.0
        %677 = vmatprep.subr.mxu0 0.0
        %678 = vmatpush1.msra.mxu0 0.0
        %679 = vmatprep.subr.mxu0 0.0
        %680 = vmatpush1.msra.mxu0 0.0
        %681 = vmatprep.subr.mxu0 0.0
        %682 = vmatpush1.msra.mxu0 0.0
        %683 = vmatprep.subr.mxu0 0.0
        %684 = vmatpush1.msra.mxu0 0.0
        %685 = vmatprep.subr.mxu0 0.0
        %686 = vmatpush1.msra.mxu0 0.0
        %687 = vmatprep.subr.mxu0 0.0
        %688 = vmatpush1.msra.mxu0 0.0
        %689 = vmatprep.subr.mxu0 0.0
        %690 = vmatpush1.msra.mxu0 0.0
        %691 = vmatprep.subr.mxu0 0.0
        %692 = vmatpush1.msra.mxu0 0.0
        %693 = vmatprep.subr.mxu0 0.0
        %694 = vmatpush1.msra.mxu0 0.0
        %695 = vmatprep.subr.mxu0 0.0
        %696 = vmatpush1.msra.mxu0 0.0
        %697 = vmatprep.subr.mxu0 0.0
        %698 = vmatpush1.msra.mxu0 0.0
        %699 = vmatprep.subr.mxu0 0.0
        %700 = vmatpush1.msra.mxu0 %v596
        %701 = vmatprep.subr.mxu0 0.0
        %702 = vmatpush2.msra.mxu0 0.0
        %703 = vmatprep.subr.mxu0 0.0
        %704 = vmatpush2.msra.mxu0 0.0
        %705 = vmatprep.subr.mxu0 0.0
        %706 = vmatpush2.msra.mxu0 0.0
        %707 = vmatprep.subr.mxu0 0.0
        %708 = vmatpush2.msra.mxu0 0.0
        %709 = vmatprep.subr.mxu0 0.0
        %710 = vmatpush2.msra.mxu0 0.0
        %711 = vmatprep.subr.mxu0 0.0
        %712 = vmatpush2.msra.mxu0 0.0
        %713 = vmatprep.subr.mxu0 0.0
        %714 = vmatpush2.msra.mxu0 0.0
        %715 = vmatprep.subr.mxu0 0.0
        %716 = vmatpush2.msra.mxu0 0.0
        %717 = vmatprep.subr.mxu0 0.0
        %718 = vmatpush2.msra.mxu0 0.0
        %719 = vmatprep.subr.mxu0 0.0
        %720 = vmatpush2.msra.mxu0 0.0
        %721 = vmatprep.subr.mxu0 0.0
        %722 = vmatpush2.msra.mxu0 0.0
        %723 = vmatprep.subr.mxu0 0.0
        %724 = vmatpush2.msra.mxu0 0.0
        %725 = vmatprep.subr.mxu0 0.0
        %726 = vmatpush2.msra.mxu0 0.0
        %727 = vmatprep.subr.mxu0 0.0
        %728 = vmatpush2.msra.mxu0 0.0
        %729 = vmatprep.subr.mxu0 0.0
        %730 = vmatpush2.msra.mxu0 0.0
        %731 = vmatprep.subr.mxu0 0.0
        %732 = vmatpush2.msra.mxu0 0.0
        %733 = vmatprep.mubr.f32.mxu0 0.0
        %734 = vmatmul.mubr.f32.gmra.mxu0 %v590
        %v735 = vpop.f32.mrf.mxu0
        %v736 = vadd.f32 %v586, %v735
        %v737 = vpop.f32.mrf.mxu0
        %738 = vdwg.mxu0
        %s739 = scalar_lea.vmem %s219, 16
        %v740 = vld [vmem:[%s739] sm:$0xff]
        %v741 = vmul.f32 %v383, %v740
        %v742 = vadd.f32 %v741, 0.0
        %s743 = scalar_lea.vmem %s219, 88
        %v744 = vld [vmem:[%s743] sm:$0xff]
        %v745 = vmul.f32 %v390, %v744
        %v746 = vadd.f32 %v742, %v745
        %s747 = scalar_lea.vmem %s219, 160
        %v748 = vld [vmem:[%s747] sm:$0xff]
        %v749 = vmul.f32 %v397, %v748
        %v750 = vadd.f32 %v746, %v749
        %s751 = scalar_lea.vmem %s219, 232
        %v752 = vld [vmem:[%s751] sm:$0xff]
        %v753 = vmul.f32 %v404, %v752
        %v754 = vadd.f32 %v750, %v753
        %v755 = vld [vmem:[#allocation2] sm:$0xff]
        %v756 = vld [vmem:[#allocation2 + $0x8] sm:$0xf]
        %v759 = vcombine.high %v755, %v755
        %760 = vrot.lane.b32.xlu0 %v755, 126
        %v761 = vpop.permute.xlu0 %760
        %762 = vrot.lane.b32.xlu0 %v759, 126
        %v763 = vpop.permute.xlu0 %762
        %764 = vrot.lane.b32.xlu0 %v756, 126
        %v765 = vpop.permute.xlu0 %764
        %vm766 = vcmask 1031168
        %v767 = vsel %vm766, %v761, %v763
        %v768 = vsel %vm766, %v763, %v765
        %v770 = vsel %vm437, %v754, 0
        %v772 = vsel %vm441, %v767, 0
        %v774 = vsel %vm441, %v768, 0
        %v776 = vsel %vm441, %v765, 0
        %778 = vmatprep.subr.mxu0 0.0
        %779 = vmatpush1.msra.mxu0 0.0
        %780 = vmatprep.subr.mxu0 0.0
        %781 = vmatpush1.msra.mxu0 0.0
        %782 = vmatprep.subr.mxu0 0.0
        %783 = vmatpush1.msra.mxu0 0.0
        %784 = vmatprep.subr.mxu0 0.0
        %785 = vmatpush1.msra.mxu0 0.0
        %786 = vmatprep.subr.mxu0 0.0
        %787 = vmatpush1.msra.mxu0 0.0
        %788 = vmatprep.subr.mxu0 0.0
        %789 = vmatpush1.msra.mxu0 0.0
        %790 = vmatprep.subr.mxu0 0.0
        %791 = vmatpush1.msra.mxu0 0.0
        %792 = vmatprep.subr.mxu0 0.0
        %793 = vmatpush1.msra.mxu0 0.0
        %794 = vmatprep.subr.mxu0 0.0
        %795 = vmatpush1.msra.mxu0 0.0
        %796 = vmatprep.subr.mxu0 0.0
        %797 = vmatpush1.msra.mxu0 0.0
        %798 = vmatprep.subr.mxu0 0.0
        %799 = vmatpush1.msra.mxu0 0.0
        %800 = vmatprep.subr.mxu0 0.0
        %801 = vmatpush1.msra.mxu0 0.0
        %802 = vmatprep.subr.mxu0 0.0
        %803 = vmatpush1.msra.mxu0 0.0
        %804 = vmatprep.subr.mxu0 0.0
        %805 = vmatpush1.msra.mxu0 0.0
        %806 = vmatprep.subr.mxu0 0.0
        %807 = vmatpush1.msra.mxu0 0.0
        %808 = vmatprep.subr.mxu0 %v774
        %809 = vmatpush1.msra.mxu0 %v772
        %810 = vmatprep.subr.mxu0 0.0
        %811 = vmatpush2.msra.mxu0 0.0
        %812 = vmatprep.subr.mxu0 0.0
        %813 = vmatpush2.msra.mxu0 0.0
        %814 = vmatprep.subr.mxu0 0.0
        %815 = vmatpush2.msra.mxu0 0.0
        %816 = vmatprep.subr.mxu0 0.0
        %817 = vmatpush2.msra.mxu0 0.0
        %818 = vmatprep.subr.mxu0 0.0
        %819 = vmatpush2.msra.mxu0 0.0
        %820 = vmatprep.subr.mxu0 0.0
        %821 = vmatpush2.msra.mxu0 0.0
        %822 = vmatprep.subr.mxu0 0.0
        %823 = vmatpush2.msra.mxu0 0.0
        %824 = vmatprep.subr.mxu0 0.0
        %825 = vmatpush2.msra.mxu0 0.0
        %826 = vmatprep.subr.mxu0 0.0
        %827 = vmatpush2.msra.mxu0 0.0
        %828 = vmatprep.subr.mxu0 0.0
        %829 = vmatpush2.msra.mxu0 0.0
        %830 = vmatprep.subr.mxu0 0.0
        %831 = vmatpush2.msra.mxu0 0.0
        %832 = vmatprep.subr.mxu0 0.0
        %833 = vmatpush2.msra.mxu0 0.0
        %834 = vmatprep.subr.mxu0 0.0
        %835 = vmatpush2.msra.mxu0 0.0
        %836 = vmatprep.subr.mxu0 0.0
        %837 = vmatpush2.msra.mxu0 0.0
        %838 = vmatprep.subr.mxu0 0.0
        %839 = vmatpush2.msra.mxu0 0.0
        %840 = vmatprep.subr.mxu0 0.0
        %841 = vmatpush2.msra.mxu0 0.0
        %842 = vmatprep.mubr.f32.mxu0 0.0
        %843 = vmatmul.mubr.f32.gmra.mxu0 %v770
        %v844 = vpop.f32.mrf.mxu0
        %v845 = vadd.f32 0.0, %v844
        %v846 = vpop.f32.mrf.mxu0
        %v847 = vadd.f32 0.0, %v846
        %848 = vdwg.mxu0
        %849 = vmatprep.subr.mxu0 0.0
        %850 = vmatpush1.msra.mxu0 0.0
        %851 = vmatprep.subr.mxu0 0.0
        %852 = vmatpush1.msra.mxu0 0.0
        %853 = vmatprep.subr.mxu0 0.0
        %854 = vmatpush1.msra.mxu0 0.0
        %855 = vmatprep.subr.mxu0 0.0
        %856 = vmatpush1.msra.mxu0 0.0
        %857 = vmatprep.subr.mxu0 0.0
        %858 = vmatpush1.msra.mxu0 0.0
        %859 = vmatprep.subr.mxu0 0.0
        %860 = vmatpush1.msra.mxu0 0.0
        %861 = vmatprep.subr.mxu0 0.0
        %862 = vmatpush1.msra.mxu0 0.0
        %863 = vmatprep.subr.mxu0 0.0
        %864 = vmatpush1.msra.mxu0 0.0
        %865 = vmatprep.subr.mxu0 0.0
        %866 = vmatpush1.msra.mxu0 0.0
        %867 = vmatprep.subr.mxu0 0.0
        %868 = vmatpush1.msra.mxu0 0.0
        %869 = vmatprep.subr.mxu0 0.0
        %870 = vmatpush1.msra.mxu0 0.0
        %871 = vmatprep.subr.mxu0 0.0
        %872 = vmatpush1.msra.mxu0 0.0
        %873 = vmatprep.subr.mxu0 0.0
        %874 = vmatpush1.msra.mxu0 0.0
        %875 = vmatprep.subr.mxu0 0.0
        %876 = vmatpush1.msra.mxu0 0.0
        %877 = vmatprep.subr.mxu0 0.0
        %878 = vmatpush1.msra.mxu0 0.0
        %879 = vmatprep.subr.mxu0 0.0
        %880 = vmatpush1.msra.mxu0 %v776
        %881 = vmatprep.subr.mxu0 0.0
        %882 = vmatpush2.msra.mxu0 0.0
        %883 = vmatprep.subr.mxu0 0.0
        %884 = vmatpush2.msra.mxu0 0.0
        %885 = vmatprep.subr.mxu0 0.0
        %886 = vmatpush2.msra.mxu0 0.0
        %887 = vmatprep.subr.mxu0 0.0
        %888 = vmatpush2.msra.mxu0 0.0
        %889 = vmatprep.subr.mxu0 0.0
        %890 = vmatpush2.msra.mxu0 0.0
        %891 = vmatprep.subr.mxu0 0.0
        %892 = vmatpush2.msra.mxu0 0.0
        %893 = vmatprep.subr.mxu0 0.0
        %894 = vmatpush2.msra.mxu0 0.0
        %895 = vmatprep.subr.mxu0 0.0
        %896 = vmatpush2.msra.mxu0 0.0
        %897 = vmatprep.subr.mxu0 0.0
        %898 = vmatpush2.msra.mxu0 0.0
        %899 = vmatprep.subr.mxu0 0.0
        %900 = vmatpush2.msra.mxu0 0.0
        %901 = vmatprep.subr.mxu0 0.0
        %902 = vmatpush2.msra.mxu0 0.0
        %903 = vmatprep.subr.mxu0 0.0
        %904 = vmatpush2.msra.mxu0 0.0
        %905 = vmatprep.subr.mxu0 0.0
        %906 = vmatpush2.msra.mxu0 0.0
        %907 = vmatprep.subr.mxu0 0.0
        %908 = vmatpush2.msra.mxu0 0.0
        %909 = vmatprep.subr.mxu0 0.0
        %910 = vmatpush2.msra.mxu0 0.0
        %911 = vmatprep.subr.mxu0 0.0
        %912 = vmatpush2.msra.mxu0 0.0
        %913 = vmatprep.mubr.f32.mxu0 0.0
        %914 = vmatmul.mubr.f32.gmra.mxu0 %v770
        %v915 = vpop.f32.mrf.mxu0
        %v916 = vadd.f32 0.0, %v915
        %v917 = vpop.f32.mrf.mxu0
        %918 = vdwg.mxu0
        %v919 = vadd.f32 %v665, %v845
        %v920 = vadd.f32 %v667, %v847
        %v921 = vadd.f32 %v736, %v916
        %s922 = scalar_lea.vmem %s219, 24
        %v923 = vld [vmem:[%s922] sm:$0xff]
        %v924 = vmul.f32 %v383, %v923
        %v925 = vadd.f32 %v924, 0.0
        %s926 = scalar_lea.vmem %s219, 96
        %v927 = vld [vmem:[%s926] sm:$0xff]
        %v928 = vmul.f32 %v390, %v927
        %v929 = vadd.f32 %v925, %v928
        %s930 = scalar_lea.vmem %s219, 168
        %v931 = vld [vmem:[%s930] sm:$0xff]
        %v932 = vmul.f32 %v397, %v931
        %v933 = vadd.f32 %v929, %v932
        %s934 = scalar_lea.vmem %s219, 240
        %v935 = vld [vmem:[%s934] sm:$0xff]
        %v936 = vmul.f32 %v404, %v935
        %v937 = vadd.f32 %v933, %v936
        %v938 = vld [vmem:[#allocation2] sm:$0xff]
        %v939 = vld [vmem:[#allocation2 + $0x8] sm:$0xf]
        %v942 = vcombine.high %v938, %v938
        %943 = vrot.lane.b32.xlu0 %v938, 110
        %v944 = vpop.permute.xlu0 %943
        %945 = vrot.lane.b32.xlu0 %v942, 110
        %v946 = vpop.permute.xlu0 %945
        %947 = vrot.lane.b32.xlu0 %v939, 110
        %v948 = vpop.permute.xlu0 %947
        %vm949 = vcmask 900096
        %v950 = vsel %vm949, %v944, %v946
        %v951 = vsel %vm949, %v946, %v948
        %v953 = vsel %vm437, %v937, 0
        %v955 = vsel %vm441, %v950, 0
        %v957 = vsel %vm441, %v951, 0
        %v959 = vsel %vm441, %v948, 0
        %961 = vmatprep.subr.mxu0 0.0
        %962 = vmatpush1.msra.mxu0 0.0
        %963 = vmatprep.subr.mxu0 0.0
        %964 = vmatpush1.msra.mxu0 0.0
        %965 = vmatprep.subr.mxu0 0.0
        %966 = vmatpush1.msra.mxu0 0.0
        %967 = vmatprep.subr.mxu0 0.0
        %968 = vmatpush1.msra.mxu0 0.0
        %969 = vmatprep.subr.mxu0 0.0
        %970 = vmatpush1.msra.mxu0 0.0
        %971 = vmatprep.subr.mxu0 0.0
        %972 = vmatpush1.msra.mxu0 0.0
        %973 = vmatprep.subr.mxu0 0.0
        %974 = vmatpush1.msra.mxu0 0.0
        %975 = vmatprep.subr.mxu0 0.0
        %976 = vmatpush1.msra.mxu0 0.0
        %977 = vmatprep.subr.mxu0 0.0
        %978 = vmatpush1.msra.mxu0 0.0
        %979 = vmatprep.subr.mxu0 0.0
        %980 = vmatpush1.msra.mxu0 0.0
        %981 = vmatprep.subr.mxu0 0.0
        %982 = vmatpush1.msra.mxu0 0.0
        %983 = vmatprep.subr.mxu0 0.0
        %984 = vmatpush1.msra.mxu0 0.0
        %985 = vmatprep.subr.mxu0 0.0
        %986 = vmatpush1.msra.mxu0 0.0
        %987 = vmatprep.subr.mxu0 0.0
        %988 = vmatpush1.msra.mxu0 0.0
        %989 = vmatprep.subr.mxu0 0.0
        %990 = vmatpush1.msra.mxu0 0.0
        %991 = vmatprep.subr.mxu0 %v957
        %992 = vmatpush1.msra.mxu0 %v955
        %993 = vmatprep.subr.mxu0 0.0
        %994 = vmatpush2.msra.mxu0 0.0
        %995 = vmatprep.subr.mxu0 0.0
        %996 = vmatpush2.msra.mxu0 0.0
        %997 = vmatprep.subr.mxu0 0.0
        %998 = vmatpush2.msra.mxu0 0.0
        %999 = vmatprep.subr.mxu0 0.0
        %1000 = vmatpush2.msra.mxu0 0.0
        %1001 = vmatprep.subr.mxu0 0.0
        %1002 = vmatpush2.msra.mxu0 0.0
        %1003 = vmatprep.subr.mxu0 0.0
        %1004 = vmatpush2.msra.mxu0 0.0
        %1005 = vmatprep.subr.mxu0 0.0
        %1006 = vmatpush2.msra.mxu0 0.0
        %1007 = vmatprep.subr.mxu0 0.0
        %1008 = vmatpush2.msra.mxu0 0.0
        %1009 = vmatprep.subr.mxu0 0.0
        %1010 = vmatpush2.msra.mxu0 0.0
        %1011 = vmatprep.subr.mxu0 0.0
        %1012 = vmatpush2.msra.mxu0 0.0
        %1013 = vmatprep.subr.mxu0 0.0
        %1014 = vmatpush2.msra.mxu0 0.0
        %1015 = vmatprep.subr.mxu0 0.0
        %1016 = vmatpush2.msra.mxu0 0.0
        %1017 = vmatprep.subr.mxu0 0.0
        %1018 = vmatpush2.msra.mxu0 0.0
        %1019 = vmatprep.subr.mxu0 0.0
        %1020 = vmatpush2.msra.mxu0 0.0
        %1021 = vmatprep.subr.mxu0 0.0
        %1022 = vmatpush2.msra.mxu0 0.0
        %1023 = vmatprep.subr.mxu0 0.0
        %1024 = vmatpush2.msra.mxu0 0.0
        %1025 = vmatprep.mubr.f32.mxu0 0.0
        %1026 = vmatmul.mubr.f32.gmra.mxu0 %v953
        %v1027 = vpop.f32.mrf.mxu0
        %v1028 = vadd.f32 0.0, %v1027
        %v1029 = vpop.f32.mrf.mxu0
        %v1030 = vadd.f32 0.0, %v1029
        %1031 = vdwg.mxu0
        %1032 = vmatprep.subr.mxu0 0.0
        %1033 = vmatpush1.msra.mxu0 0.0
        %1034 = vmatprep.subr.mxu0 0.0
        %1035 = vmatpush1.msra.mxu0 0.0
        %1036 = vmatprep.subr.mxu0 0.0
        %1037 = vmatpush1.msra.mxu0 0.0
        %1038 = vmatprep.subr.mxu0 0.0
        %1039 = vmatpush1.msra.mxu0 0.0
        %1040 = vmatprep.subr.mxu0 0.0
        %1041 = vmatpush1.msra.mxu0 0.0
        %1042 = vmatprep.subr.mxu0 0.0
        %1043 = vmatpush1.msra.mxu0 0.0
        %1044 = vmatprep.subr.mxu0 0.0
        %1045 = vmatpush1.msra.mxu0 0.0
        %1046 = vmatprep.subr.mxu0 0.0
        %1047 = vmatpush1.msra.mxu0 0.0
        %1048 = vmatprep.subr.mxu0 0.0
        %1049 = vmatpush1.msra.mxu0 0.0
        %1050 = vmatprep.subr.mxu0 0.0
        %1051 = vmatpush1.msra.mxu0 0.0
        %1052 = vmatprep.subr.mxu0 0.0
        %1053 = vmatpush1.msra.mxu0 0.0
        %1054 = vmatprep.subr.mxu0 0.0
        %1055 = vmatpush1.msra.mxu0 0.0
        %1056 = vmatprep.subr.mxu0 0.0
        %1057 = vmatpush1.msra.mxu0 0.0
        %1058 = vmatprep.subr.mxu0 0.0
        %1059 = vmatpush1.msra.mxu0 0.0
        %1060 = vmatprep.subr.mxu0 0.0
        %1061 = vmatpush1.msra.mxu0 0.0
        %1062 = vmatprep.subr.mxu0 0.0
        %1063 = vmatpush1.msra.mxu0 %v959
        %1064 = vmatprep.subr.mxu0 0.0
        %1065 = vmatpush2.msra.mxu0 0.0
        %1066 = vmatprep.subr.mxu0 0.0
        %1067 = vmatpush2.msra.mxu0 0.0
        %1068 = vmatprep.subr.mxu0 0.0
        %1069 = vmatpush2.msra.mxu0 0.0
        %1070 = vmatprep.subr.mxu0 0.0
        %1071 = vmatpush2.msra.mxu0 0.0
        %1072 = vmatprep.subr.mxu0 0.0
        %1073 = vmatpush2.msra.mxu0 0.0
        %1074 = vmatprep.subr.mxu0 0.0
        %1075 = vmatpush2.msra.mxu0 0.0
        %1076 = vmatprep.subr.mxu0 0.0
        %1077 = vmatpush2.msra.mxu0 0.0
        %1078 = vmatprep.subr.mxu0 0.0
        %1079 = vmatpush2.msra.mxu0 0.0
        %1080 = vmatprep.subr.mxu0 0.0
        %1081 = vmatpush2.msra.mxu0 0.0
        %1082 = vmatprep.subr.mxu0 0.0
        %1083 = vmatpush2.msra.mxu0 0.0
        %1084 = vmatprep.subr.mxu0 0.0
        %1085 = vmatpush2.msra.mxu0 0.0
        %1086 = vmatprep.subr.mxu0 0.0
        %1087 = vmatpush2.msra.mxu0 0.0
        %1088 = vmatprep.subr.mxu0 0.0
        %1089 = vmatpush2.msra.mxu0 0.0
        %1090 = vmatprep.subr.mxu0 0.0
        %1091 = vmatpush2.msra.mxu0 0.0
        %1092 = vmatprep.subr.mxu0 0.0
        %1093 = vmatpush2.msra.mxu0 0.0
        %1094 = vmatprep.subr.mxu0 0.0
        %1095 = vmatpush2.msra.mxu0 0.0
        %1096 = vmatprep.mubr.f32.mxu0 0.0
        %1097 = vmatmul.mubr.f32.gmra.mxu0 %v953
        %v1098 = vpop.f32.mrf.mxu0
        %v1099 = vadd.f32 0.0, %v1098
        %v1100 = vpop.f32.mrf.mxu0
        %1101 = vdwg.mxu0
        %v1102 = vadd.f32 %v919, %v1028
        %v1103 = vadd.f32 %v920, %v1030
        %v1104 = vadd.f32 %v921, %v1099
        %s1105 = scalar_lea.vmem %s219, 32
        %v1106 = vld [vmem:[%s1105] sm:$0xff]
        %v1107 = vmul.f32 %v383, %v1106
        %v1108 = vadd.f32 %v1107, 0.0
        %s1109 = scalar_lea.vmem %s219, 104
        %v1110 = vld [vmem:[%s1109] sm:$0xff]
        %v1111 = vmul.f32 %v390, %v1110
        %v1112 = vadd.f32 %v1108, %v1111
        %s1113 = scalar_lea.vmem %s219, 176
        %v1114 = vld [vmem:[%s1113] sm:$0xff]
        %v1115 = vmul.f32 %v397, %v1114
        %v1116 = vadd.f32 %v1112, %v1115
        %s1117 = scalar_lea.vmem %s219, 248
        %v1118 = vld [vmem:[%s1117] sm:$0xff]
        %v1119 = vmul.f32 %v404, %v1118
        %v1120 = vadd.f32 %v1116, %v1119
        %v1121 = vld [vmem:[#allocation2] sm:$0xff]
        %v1122 = vld [vmem:[#allocation2 + $0x8] sm:$0xf]
        %v1125 = vcombine.high %v1121, %v1121
        %1126 = vrot.lane.b32.xlu0 %v1121, 109
        %v1127 = vpop.permute.xlu0 %1126
        %1128 = vrot.lane.b32.xlu0 %v1125, 109
        %v1129 = vpop.permute.xlu0 %1128
        %1130 = vrot.lane.b32.xlu0 %v1122, 109
        %v1131 = vpop.permute.xlu0 %1130
        %vm1132 = vcmask 891904
        %v1133 = vsel %vm1132, %v1127, %v1129
        %v1134 = vsel %vm1132, %v1129, %v1131
        %v1136 = vsel %vm437, %v1120, 0
        %v1138 = vsel %vm441, %v1133, 0
        %v1140 = vsel %vm441, %v1134, 0
        %v1142 = vsel %vm441, %v1131, 0
        %1144 = vmatprep.subr.mxu0 0.0
        %1145 = vmatpush1.msra.mxu0 0.0
        %1146 = vmatprep.subr.mxu0 0.0
        %1147 = vmatpush1.msra.mxu0 0.0
        %1148 = vmatprep.subr.mxu0 0.0
        %1149 = vmatpush1.msra.mxu0 0.0
        %1150 = vmatprep.subr.mxu0 0.0
        %1151 = vmatpush1.msra.mxu0 0.0
        %1152 = vmatprep.subr.mxu0 0.0
        %1153 = vmatpush1.msra.mxu0 0.0
        %1154 = vmatprep.subr.mxu0 0.0
        %1155 = vmatpush1.msra.mxu0 0.0
        %1156 = vmatprep.subr.mxu0 0.0
        %1157 = vmatpush1.msra.mxu0 0.0
        %1158 = vmatprep.subr.mxu0 0.0
        %1159 = vmatpush1.msra.mxu0 0.0
        %1160 = vmatprep.subr.mxu0 0.0
        %1161 = vmatpush1.msra.mxu0 0.0
        %1162 = vmatprep.subr.mxu0 0.0
        %1163 = vmatpush1.msra.mxu0 0.0
        %1164 = vmatprep.subr.mxu0 0.0
        %1165 = vmatpush1.msra.mxu0 0.0
        %1166 = vmatprep.subr.mxu0 0.0
        %1167 = vmatpush1.msra.mxu0 0.0
        %1168 = vmatprep.subr.mxu0 0.0
        %1169 = vmatpush1.msra.mxu0 0.0
        %1170 = vmatprep.subr.mxu0 0.0
        %1171 = vmatpush1.msra.mxu0 0.0
        %1172 = vmatprep.subr.mxu0 0.0
        %1173 = vmatpush1.msra.mxu0 0.0
        %1174 = vmatprep.subr.mxu0 %v1140
        %1175 = vmatpush1.msra.mxu0 %v1138
        %1176 = vmatprep.subr.mxu0 0.0
        %1177 = vmatpush2.msra.mxu0 0.0
        %1178 = vmatprep.subr.mxu0 0.0
        %1179 = vmatpush2.msra.mxu0 0.0
        %1180 = vmatprep.subr.mxu0 0.0
        %1181 = vmatpush2.msra.mxu0 0.0
        %1182 = vmatprep.subr.mxu0 0.0
        %1183 = vmatpush2.msra.mxu0 0.0
        %1184 = vmatprep.subr.mxu0 0.0
        %1185 = vmatpush2.msra.mxu0 0.0
        %1186 = vmatprep.subr.mxu0 0.0
        %1187 = vmatpush2.msra.mxu0 0.0
        %1188 = vmatprep.subr.mxu0 0.0
        %1189 = vmatpush2.msra.mxu0 0.0
        %1190 = vmatprep.subr.mxu0 0.0
        %1191 = vmatpush2.msra.mxu0 0.0
        %1192 = vmatprep.subr.mxu0 0.0
        %1193 = vmatpush2.msra.mxu0 0.0
        %1194 = vmatprep.subr.mxu0 0.0
        %1195 = vmatpush2.msra.mxu0 0.0
        %1196 = vmatprep.subr.mxu0 0.0
        %1197 = vmatpush2.msra.mxu0 0.0
        %1198 = vmatprep.subr.mxu0 0.0
        %1199 = vmatpush2.msra.mxu0 0.0
        %1200 = vmatprep.subr.mxu0 0.0
        %1201 = vmatpush2.msra.mxu0 0.0
        %1202 = vmatprep.subr.mxu0 0.0
        %1203 = vmatpush2.msra.mxu0 0.0
        %1204 = vmatprep.subr.mxu0 0.0
        %1205 = vmatpush2.msra.mxu0 0.0
        %1206 = vmatprep.subr.mxu0 0.0
        %1207 = vmatpush2.msra.mxu0 0.0
        %1208 = vmatprep.mubr.f32.mxu0 0.0
        %1209 = vmatmul.mubr.f32.gmra.mxu0 %v1136
        %v1210 = vpop.f32.mrf.mxu0
        %v1211 = vadd.f32 0.0, %v1210
        %v1212 = vpop.f32.mrf.mxu0
        %v1213 = vadd.f32 0.0, %v1212
        %1214 = vdwg.mxu0
        %1215 = vmatprep.subr.mxu0 0.0
        %1216 = vmatpush1.msra.mxu0 0.0
        %1217 = vmatprep.subr.mxu0 0.0
        %1218 = vmatpush1.msra.mxu0 0.0
        %1219 = vmatprep.subr.mxu0 0.0
        %1220 = vmatpush1.msra.mxu0 0.0
        %1221 = vmatprep.subr.mxu0 0.0
        %1222 = vmatpush1.msra.mxu0 0.0
        %1223 = vmatprep.subr.mxu0 0.0
        %1224 = vmatpush1.msra.mxu0 0.0
        %1225 = vmatprep.subr.mxu0 0.0
        %1226 = vmatpush1.msra.mxu0 0.0
        %1227 = vmatprep.subr.mxu0 0.0
        %1228 = vmatpush1.msra.mxu0 0.0
        %1229 = vmatprep.subr.mxu0 0.0
        %1230 = vmatpush1.msra.mxu0 0.0
        %1231 = vmatprep.subr.mxu0 0.0
        %1232 = vmatpush1.msra.mxu0 0.0
        %1233 = vmatprep.subr.mxu0 0.0
        %1234 = vmatpush1.msra.mxu0 0.0
        %1235 = vmatprep.subr.mxu0 0.0
        %1236 = vmatpush1.msra.mxu0 0.0
        %1237 = vmatprep.subr.mxu0 0.0
        %1238 = vmatpush1.msra.mxu0 0.0
        %1239 = vmatprep.subr.mxu0 0.0
        %1240 = vmatpush1.msra.mxu0 0.0
        %1241 = vmatprep.subr.mxu0 0.0
        %1242 = vmatpush1.msra.mxu0 0.0
        %1243 = vmatprep.subr.mxu0 0.0
        %1244 = vmatpush1.msra.mxu0 0.0
        %1245 = vmatprep.subr.mxu0 0.0
        %1246 = vmatpush1.msra.mxu0 %v1142
        %1247 = vmatprep.subr.mxu0 0.0
        %1248 = vmatpush2.msra.mxu0 0.0
        %1249 = vmatprep.subr.mxu0 0.0
        %1250 = vmatpush2.msra.mxu0 0.0
        %1251 = vmatprep.subr.mxu0 0.0
        %1252 = vmatpush2.msra.mxu0 0.0
        %1253 = vmatprep.subr.mxu0 0.0
        %1254 = vmatpush2.msra.mxu0 0.0
        %1255 = vmatprep.subr.mxu0 0.0
        %1256 = vmatpush2.msra.mxu0 0.0
        %1257 = vmatprep.subr.mxu0 0.0
        %1258 = vmatpush2.msra.mxu0 0.0
        %1259 = vmatprep.subr.mxu0 0.0
        %1260 = vmatpush2.msra.mxu0 0.0
        %1261 = vmatprep.subr.mxu0 0.0
        %1262 = vmatpush2.msra.mxu0 0.0
        %1263 = vmatprep.subr.mxu0 0.0
        %1264 = vmatpush2.msra.mxu0 0.0
        %1265 = vmatprep.subr.mxu0 0.0
        %1266 = vmatpush2.msra.mxu0 0.0
        %1267 = vmatprep.subr.mxu0 0.0
        %1268 = vmatpush2.msra.mxu0 0.0
        %1269 = vmatprep.subr.mxu0 0.0
        %1270 = vmatpush2.msra.mxu0 0.0
        %1271 = vmatprep.subr.mxu0 0.0
        %1272 = vmatpush2.msra.mxu0 0.0
        %1273 = vmatprep.subr.mxu0 0.0
        %1274 = vmatpush2.msra.mxu0 0.0
        %1275 = vmatprep.subr.mxu0 0.0
        %1276 = vmatpush2.msra.mxu0 0.0
        %1277 = vmatprep.subr.mxu0 0.0
        %1278 = vmatpush2.msra.mxu0 0.0
        %1279 = vmatprep.mubr.f32.mxu0 0.0
        %1280 = vmatmul.mubr.f32.gmra.mxu0 %v1136
        %v1281 = vpop.f32.mrf.mxu0
        %v1282 = vadd.f32 0.0, %v1281
        %v1283 = vpop.f32.mrf.mxu0
        %1284 = vdwg.mxu0
        %v1285 = vadd.f32 %v1102, %v1211
        %v1286 = vadd.f32 %v1103, %v1213
        %v1287 = vadd.f32 %v1104, %v1282
        %s1288 = scalar_lea.vmem %s219, 40
        %v1289 = vld [vmem:[%s1288] sm:$0xff]
        %v1290 = vmul.f32 %v383, %v1289
        %v1291 = vadd.f32 %v1290, 0.0
        %s1292 = scalar_lea.vmem %s219, 112
        %v1293 = vld [vmem:[%s1292] sm:$0xff]
        %v1294 = vmul.f32 %v390, %v1293
        %v1295 = vadd.f32 %v1291, %v1294
        %s1296 = scalar_lea.vmem %s219, 184
        %v1297 = vld [vmem:[%s1296] sm:$0xff]
        %v1298 = vmul.f32 %v397, %v1297
        %v1299 = vadd.f32 %v1295, %v1298
        %s1300 = scalar_lea.vmem %s219, 256
        %v1301 = vld [vmem:[%s1300] sm:$0xff]
        %v1302 = vmul.f32 %v404, %v1301
        %v1303 = vadd.f32 %v1299, %v1302
        %v1304 = vld [vmem:[#allocation2] sm:$0xff]
        %v1305 = vld [vmem:[#allocation2 + $0x8] sm:$0xf]
        %v1308 = vcombine.high %v1304, %v1304
        %1309 = vrot.lane.b32.xlu0 %v1304, 108
        %v1310 = vpop.permute.xlu0 %1309
        %1311 = vrot.lane.b32.xlu0 %v1308, 108
        %v1312 = vpop.permute.xlu0 %1311
        %1313 = vrot.lane.b32.xlu0 %v1305, 108
        %v1314 = vpop.permute.xlu0 %1313
        %vm1315 = vcmask 883712
        %v1316 = vsel %vm1315, %v1310, %v1312
        %v1317 = vsel %vm1315, %v1312, %v1314
        %v1319 = vsel %vm437, %v1303, 0
        %v1321 = vsel %vm441, %v1316, 0
        %v1323 = vsel %vm441, %v1317, 0
        %v1325 = vsel %vm441, %v1314, 0
        %1327 = vmatprep.subr.mxu0 0.0
        %1328 = vmatpush1.msra.mxu0 0.0
        %1329 = vmatprep.subr.mxu0 0.0
        %1330 = vmatpush1.msra.mxu0 0.0
        %1331 = vmatprep.subr.mxu0 0.0
        %1332 = vmatpush1.msra.mxu0 0.0
        %1333 = vmatprep.subr.mxu0 0.0
        %1334 = vmatpush1.msra.mxu0 0.0
        %1335 = vmatprep.subr.mxu0 0.0
        %1336 = vmatpush1.msra.mxu0 0.0
        %1337 = vmatprep.subr.mxu0 0.0
        %1338 = vmatpush1.msra.mxu0 0.0
        %1339 = vmatprep.subr.mxu0 0.0
        %1340 = vmatpush1.msra.mxu0 0.0
        %1341 = vmatprep.subr.mxu0 0.0
        %1342 = vmatpush1.msra.mxu0 0.0
        %1343 = vmatprep.subr.mxu0 0.0
        %1344 = vmatpush1.msra.mxu0 0.0
        %1345 = vmatprep.subr.mxu0 0.0
        %1346 = vmatpush1.msra.mxu0 0.0
        %1347 = vmatprep.subr.mxu0 0.0
        %1348 = vmatpush1.msra.mxu0 0.0
        %1349 = vmatprep.subr.mxu0 0.0
        %1350 = vmatpush1.msra.mxu0 0.0
        %1351 = vmatprep.subr.mxu0 0.0
        %1352 = vmatpush1.msra.mxu0 0.0
        %1353 = vmatprep.subr.mxu0 0.0
        %1354 = vmatpush1.msra.mxu0 0.0
        %1355 = vmatprep.subr.mxu0 0.0
        %1356 = vmatpush1.msra.mxu0 0.0
        %1357 = vmatprep.subr.mxu0 %v1323
        %1358 = vmatpush1.msra.mxu0 %v1321
        %1359 = vmatprep.subr.mxu0 0.0
        %1360 = vmatpush2.msra.mxu0 0.0
        %1361 = vmatprep.subr.mxu0 0.0
        %1362 = vmatpush2.msra.mxu0 0.0
        %1363 = vmatprep.subr.mxu0 0.0
        %1364 = vmatpush2.msra.mxu0 0.0
        %1365 = vmatprep.subr.mxu0 0.0
        %1366 = vmatpush2.msra.mxu0 0.0
        %1367 = vmatprep.subr.mxu0 0.0
        %1368 = vmatpush2.msra.mxu0 0.0
        %1369 = vmatprep.subr.mxu0 0.0
        %1370 = vmatpush2.msra.mxu0 0.0
        %1371 = vmatprep.subr.mxu0 0.0
        %1372 = vmatpush2.msra.mxu0 0.0
        %1373 = vmatprep.subr.mxu0 0.0
        %1374 = vmatpush2.msra.mxu0 0.0
        %1375 = vmatprep.subr.mxu0 0.0
        %1376 = vmatpush2.msra.mxu0 0.0
        %1377 = vmatprep.subr.mxu0 0.0
        %1378 = vmatpush2.msra.mxu0 0.0
        %1379 = vmatprep.subr.mxu0 0.0
        %1380 = vmatpush2.msra.mxu0 0.0
        %1381 = vmatprep.subr.mxu0 0.0
        %1382 = vmatpush2.msra.mxu0 0.0
        %1383 = vmatprep.subr.mxu0 0.0
        %1384 = vmatpush2.msra.mxu0 0.0
        %1385 = vmatprep.subr.mxu0 0.0
        %1386 = vmatpush2.msra.mxu0 0.0
        %1387 = vmatprep.subr.mxu0 0.0
        %1388 = vmatpush2.msra.mxu0 0.0
        %1389 = vmatprep.subr.mxu0 0.0
        %1390 = vmatpush2.msra.mxu0 0.0
        %1391 = vmatprep.mubr.f32.mxu0 0.0
        %1392 = vmatmul.mubr.f32.gmra.mxu0 %v1319
        %v1393 = vpop.f32.mrf.mxu0
        %v1394 = vadd.f32 0.0, %v1393
        %v1395 = vpop.f32.mrf.mxu0
        %v1396 = vadd.f32 0.0, %v1395
        %1397 = vdwg.mxu0
        %1398 = vmatprep.subr.mxu0 0.0
        %1399 = vmatpush1.msra.mxu0 0.0
        %1400 = vmatprep.subr.mxu0 0.0
        %1401 = vmatpush1.msra.mxu0 0.0
        %1402 = vmatprep.subr.mxu0 0.0
        %1403 = vmatpush1.msra.mxu0 0.0
        %1404 = vmatprep.subr.mxu0 0.0
        %1405 = vmatpush1.msra.mxu0 0.0
        %1406 = vmatprep.subr.mxu0 0.0
        %1407 = vmatpush1.msra.mxu0 0.0
        %1408 = vmatprep.subr.mxu0 0.0
        %1409 = vmatpush1.msra.mxu0 0.0
        %1410 = vmatprep.subr.mxu0 0.0
        %1411 = vmatpush1.msra.mxu0 0.0
        %1412 = vmatprep.subr.mxu0 0.0
        %1413 = vmatpush1.msra.mxu0 0.0
        %1414 = vmatprep.subr.mxu0 0.0
        %1415 = vmatpush1.msra.mxu0 0.0
        %1416 = vmatprep.subr.mxu0 0.0
        %1417 = vmatpush1.msra.mxu0 0.0
        %1418 = vmatprep.subr.mxu0 0.0
        %1419 = vmatpush1.msra.mxu0 0.0
        %1420 = vmatprep.subr.mxu0 0.0
        %1421 = vmatpush1.msra.mxu0 0.0
        %1422 = vmatprep.subr.mxu0 0.0
        %1423 = vmatpush1.msra.mxu0 0.0
        %1424 = vmatprep.subr.mxu0 0.0
        %1425 = vmatpush1.msra.mxu0 0.0
        %1426 = vmatprep.subr.mxu0 0.0
        %1427 = vmatpush1.msra.mxu0 0.0
        %1428 = vmatprep.subr.mxu0 0.0
        %1429 = vmatpush1.msra.mxu0 %v1325
        %1430 = vmatprep.subr.mxu0 0.0
        %1431 = vmatpush2.msra.mxu0 0.0
        %1432 = vmatprep.subr.mxu0 0.0
        %1433 = vmatpush2.msra.mxu0 0.0
        %1434 = vmatprep.subr.mxu0 0.0
        %1435 = vmatpush2.msra.mxu0 0.0
        %1436 = vmatprep.subr.mxu0 0.0
        %1437 = vmatpush2.msra.mxu0 0.0
        %1438 = vmatprep.subr.mxu0 0.0
        %1439 = vmatpush2.msra.mxu0 0.0
        %1440 = vmatprep.subr.mxu0 0.0
        %1441 = vmatpush2.msra.mxu0 0.0
        %1442 = vmatprep.subr.mxu0 0.0
        %1443 = vmatpush2.msra.mxu0 0.0
        %1444 = vmatprep.subr.mxu0 0.0
        %1445 = vmatpush2.msra.mxu0 0.0
        %1446 = vmatprep.subr.mxu0 0.0
        %1447 = vmatpush2.msra.mxu0 0.0
        %1448 = vmatprep.subr.mxu0 0.0
        %1449 = vmatpush2.msra.mxu0 0.0
        %1450 = vmatprep.subr.mxu0 0.0
        %1451 = vmatpush2.msra.mxu0 0.0
        %1452 = vmatprep.subr.mxu0 0.0
        %1453 = vmatpush2.msra.mxu0 0.0
        %1454 = vmatprep.subr.mxu0 0.0
        %1455 = vmatpush2.msra.mxu0 0.0
        %1456 = vmatprep.subr.mxu0 0.0
        %1457 = vmatpush2.msra.mxu0 0.0
        %1458 = vmatprep.subr.mxu0 0.0
        %1459 = vmatpush2.msra.mxu0 0.0
        %1460 = vmatprep.subr.mxu0 0.0
        %1461 = vmatpush2.msra.mxu0 0.0
        %1462 = vmatprep.mubr.f32.mxu0 0.0
        %1463 = vmatmul.mubr.f32.gmra.mxu0 %v1319
        %v1464 = vpop.f32.mrf.mxu0
        %v1465 = vadd.f32 0.0, %v1464
        %v1466 = vpop.f32.mrf.mxu0
        %1467 = vdwg.mxu0
        %v1468 = vadd.f32 %v1285, %v1394
        %v1469 = vadd.f32 %v1286, %v1396
        %v1470 = vadd.f32 %v1287, %v1465
        %s1471 = scalar_lea.vmem %s219, 48
        %v1472 = vld [vmem:[%s1471] sm:$0xff]
        %v1473 = vmul.f32 %v383, %v1472
        %v1474 = vadd.f32 %v1473, 0.0
        %s1475 = scalar_lea.vmem %s219, 120
        %v1476 = vld [vmem:[%s1475] sm:$0xff]
        %v1477 = vmul.f32 %v390, %v1476
        %v1478 = vadd.f32 %v1474, %v1477
        %s1479 = scalar_lea.vmem %s219, 192
        %v1480 = vld [vmem:[%s1479] sm:$0xff]
        %v1481 = vmul.f32 %v397, %v1480
        %v1482 = vadd.f32 %v1478, %v1481
        %s1483 = scalar_lea.vmem %s219, 264
        %v1484 = vld [vmem:[%s1483] sm:$0xff]
        %v1485 = vmul.f32 %v404, %v1484
        %v1486 = vadd.f32 %v1482, %v1485
        %v1487 = vld [vmem:[#allocation2] sm:$0xff]
        %v1488 = vld [vmem:[#allocation2 + $0x8] sm:$0xf]
        %v1491 = vcombine.high %v1487, %v1487
        %1492 = vrot.lane.b32.xlu0 %v1487, 92
        %v1493 = vpop.permute.xlu0 %1492
        %1494 = vrot.lane.b32.xlu0 %v1491, 92
        %v1495 = vpop.permute.xlu0 %1494
        %1496 = vrot.lane.b32.xlu0 %v1488, 92
        %v1497 = vpop.permute.xlu0 %1496
        %vm1498 = vcmask 752640
        %v1499 = vsel %vm1498, %v1493, %v1495
        %v1500 = vsel %vm1498, %v1495, %v1497
        %v1502 = vsel %vm437, %v1486, 0
        %v1504 = vsel %vm441, %v1499, 0
        %v1506 = vsel %vm441, %v1500, 0
        %v1508 = vsel %vm441, %v1497, 0
        %1510 = vmatprep.subr.mxu0 0.0
        %1511 = vmatpush1.msra.mxu0 0.0
        %1512 = vmatprep.subr.mxu0 0.0
        %1513 = vmatpush1.msra.mxu0 0.0
        %1514 = vmatprep.subr.mxu0 0.0
        %1515 = vmatpush1.msra.mxu0 0.0
        %1516 = vmatprep.subr.mxu0 0.0
        %1517 = vmatpush1.msra.mxu0 0.0
        %1518 = vmatprep.subr.mxu0 0.0
        %1519 = vmatpush1.msra.mxu0 0.0
        %1520 = vmatprep.subr.mxu0 0.0
        %1521 = vmatpush1.msra.mxu0 0.0
        %1522 = vmatprep.subr.mxu0 0.0
        %1523 = vmatpush1.msra.mxu0 0.0
        %1524 = vmatprep.subr.mxu0 0.0
        %1525 = vmatpush1.msra.mxu0 0.0
        %1526 = vmatprep.subr.mxu0 0.0
        %1527 = vmatpush1.msra.mxu0 0.0
        %1528 = vmatprep.subr.mxu0 0.0
        %1529 = vmatpush1.msra.mxu0 0.0
        %1530 = vmatprep.subr.mxu0 0.0
        %1531 = vmatpush1.msra.mxu0 0.0
        %1532 = vmatprep.subr.mxu0 0.0
        %1533 = vmatpush1.msra.mxu0 0.0
        %1534 = vmatprep.subr.mxu0 0.0
        %1535 = vmatpush1.msra.mxu0 0.0
        %1536 = vmatprep.subr.mxu0 0.0
        %1537 = vmatpush1.msra.mxu0 0.0
        %1538 = vmatprep.subr.mxu0 0.0
        %1539 = vmatpush1.msra.mxu0 0.0
        %1540 = vmatprep.subr.mxu0 %v1506
        %1541 = vmatpush1.msra.mxu0 %v1504
        %1542 = vmatprep.subr.mxu0 0.0
        %1543 = vmatpush2.msra.mxu0 0.0
        %1544 = vmatprep.subr.mxu0 0.0
        %1545 = vmatpush2.msra.mxu0 0.0
        %1546 = vmatprep.subr.mxu0 0.0
        %1547 = vmatpush2.msra.mxu0 0.0
        %1548 = vmatprep.subr.mxu0 0.0
        %1549 = vmatpush2.msra.mxu0 0.0
        %1550 = vmatprep.subr.mxu0 0.0
        %1551 = vmatpush2.msra.mxu0 0.0
        %1552 = vmatprep.subr.mxu0 0.0
        %1553 = vmatpush2.msra.mxu0 0.0
        %1554 = vmatprep.subr.mxu0 0.0
        %1555 = vmatpush2.msra.mxu0 0.0
        %1556 = vmatprep.subr.mxu0 0.0
        %1557 = vmatpush2.msra.mxu0 0.0
        %1558 = vmatprep.subr.mxu0 0.0
        %1559 = vmatpush2.msra.mxu0 0.0
        %1560 = vmatprep.subr.mxu0 0.0
        %1561 = vmatpush2.msra.mxu0 0.0
        %1562 = vmatprep.subr.mxu0 0.0
        %1563 = vmatpush2.msra.mxu0 0.0
        %1564 = vmatprep.subr.mxu0 0.0
        %1565 = vmatpush2.msra.mxu0 0.0
        %1566 = vmatprep.subr.mxu0 0.0
        %1567 = vmatpush2.msra.mxu0 0.0
        %1568 = vmatprep.subr.mxu0 0.0
        %1569 = vmatpush2.msra.mxu0 0.0
        %1570 = vmatprep.subr.mxu0 0.0
        %1571 = vmatpush2.msra.mxu0 0.0
        %1572 = vmatprep.subr.mxu0 0.0
        %1573 = vmatpush2.msra.mxu0 0.0
        %1574 = vmatprep.mubr.f32.mxu0 0.0
        %1575 = vmatmul.mubr.f32.gmra.mxu0 %v1502
        %v1576 = vpop.f32.mrf.mxu0
        %v1577 = vadd.f32 0.0, %v1576
        %v1578 = vpop.f32.mrf.mxu0
        %v1579 = vadd.f32 0.0, %v1578
        %1580 = vdwg.mxu0
        %1581 = vmatprep.subr.mxu0 0.0
        %1582 = vmatpush1.msra.mxu0 0.0
        %1583 = vmatprep.subr.mxu0 0.0
        %1584 = vmatpush1.msra.mxu0 0.0
        %1585 = vmatprep.subr.mxu0 0.0
        %1586 = vmatpush1.msra.mxu0 0.0
        %1587 = vmatprep.subr.mxu0 0.0
        %1588 = vmatpush1.msra.mxu0 0.0
        %1589 = vmatprep.subr.mxu0 0.0
        %1590 = vmatpush1.msra.mxu0 0.0
        %1591 = vmatprep.subr.mxu0 0.0
        %1592 = vmatpush1.msra.mxu0 0.0
        %1593 = vmatprep.subr.mxu0 0.0
        %1594 = vmatpush1.msra.mxu0 0.0
        %1595 = vmatprep.subr.mxu0 0.0
        %1596 = vmatpush1.msra.mxu0 0.0
        %1597 = vmatprep.subr.mxu0 0.0
        %1598 = vmatpush1.msra.mxu0 0.0
        %1599 = vmatprep.subr.mxu0 0.0
        %1600 = vmatpush1.msra.mxu0 0.0
        %1601 = vmatprep.subr.mxu0 0.0
        %1602 = vmatpush1.msra.mxu0 0.0
        %1603 = vmatprep.subr.mxu0 0.0
        %1604 = vmatpush1.msra.mxu0 0.0
        %1605 = vmatprep.subr.mxu0 0.0
        %1606 = vmatpush1.msra.mxu0 0.0
        %1607 = vmatprep.subr.mxu0 0.0
        %1608 = vmatpush1.msra.mxu0 0.0
        %1609 = vmatprep.subr.mxu0 0.0
        %1610 = vmatpush1.msra.mxu0 0.0
        %1611 = vmatprep.subr.mxu0 0.0
        %1612 = vmatpush1.msra.mxu0 %v1508
        %1613 = vmatprep.subr.mxu0 0.0
        %1614 = vmatpush2.msra.mxu0 0.0
        %1615 = vmatprep.subr.mxu0 0.0
        %1616 = vmatpush2.msra.mxu0 0.0
        %1617 = vmatprep.subr.mxu0 0.0
        %1618 = vmatpush2.msra.mxu0 0.0
        %1619 = vmatprep.subr.mxu0 0.0
        %1620 = vmatpush2.msra.mxu0 0.0
        %1621 = vmatprep.subr.mxu0 0.0
        %1622 = vmatpush2.msra.mxu0 0.0
        %1623 = vmatprep.subr.mxu0 0.0
        %1624 = vmatpush2.msra.mxu0 0.0
        %1625 = vmatprep.subr.mxu0 0.0
        %1626 = vmatpush2.msra.mxu0 0.0
        %1627 = vmatprep.subr.mxu0 0.0
        %1628 = vmatpush2.msra.mxu0 0.0
        %1629 = vmatprep.subr.mxu0 0.0
        %1630 = vmatpush2.msra.mxu0 0.0
        %1631 = vmatprep.subr.mxu0 0.0
        %1632 = vmatpush2.msra.mxu0 0.0
        %1633 = vmatprep.subr.mxu0 0.0
        %1634 = vmatpush2.msra.mxu0 0.0
        %1635 = vmatprep.subr.mxu0 0.0
        %1636 = vmatpush2.msra.mxu0 0.0
        %1637 = vmatprep.subr.mxu0 0.0
        %1638 = vmatpush2.msra.mxu0 0.0
        %1639 = vmatprep.subr.mxu0 0.0
        %1640 = vmatpush2.msra.mxu0 0.0
        %1641 = vmatprep.subr.mxu0 0.0
        %1642 = vmatpush2.msra.mxu0 0.0
        %1643 = vmatprep.subr.mxu0 0.0
        %1644 = vmatpush2.msra.mxu0 0.0
        %1645 = vmatprep.mubr.f32.mxu0 0.0
        %1646 = vmatmul.mubr.f32.gmra.mxu0 %v1502
        %v1647 = vpop.f32.mrf.mxu0
        %v1648 = vadd.f32 0.0, %v1647
        %v1649 = vpop.f32.mrf.mxu0
        %1650 = vdwg.mxu0
        %v1651 = vadd.f32 %v1468, %v1577
        %v1652 = vadd.f32 %v1469, %v1579
        %v1653 = vadd.f32 %v1470, %v1648
        %s1654 = scalar_lea.vmem %s219, 56
        %v1655 = vld [vmem:[%s1654] sm:$0xff]
        %v1656 = vmul.f32 %v383, %v1655
        %v1657 = vadd.f32 %v1656, 0.0
        %s1658 = scalar_lea.vmem %s219, 128
        %v1659 = vld [vmem:[%s1658] sm:$0xff]
        %v1660 = vmul.f32 %v390, %v1659
        %v1661 = vadd.f32 %v1657, %v1660
        %s1662 = scalar_lea.vmem %s219, 200
        %v1663 = vld [vmem:[%s1662] sm:$0xff]
        %v1664 = vmul.f32 %v397, %v1663
        %v1665 = vadd.f32 %v1661, %v1664
        %s1666 = scalar_lea.vmem %s219, 272
        %v1667 = vld [vmem:[%s1666] sm:$0xff]
        %v1668 = vmul.f32 %v404, %v1667
        %v1669 = vadd.f32 %v1665, %v1668
        %v1670 = vld [vmem:[#allocation2] sm:$0xff]
        %v1671 = vld [vmem:[#allocation2 + $0x8] sm:$0xf]
        %v1674 = vcombine.high %v1670, %v1670
        %1675 = vrot.lane.b32.xlu0 %v1670, 91
        %v1676 = vpop.permute.xlu0 %1675
        %1677 = vrot.lane.b32.xlu0 %v1674, 91
        %v1678 = vpop.permute.xlu0 %1677
        %1679 = vrot.lane.b32.xlu0 %v1671, 91
        %v1680 = vpop.permute.xlu0 %1679
        %vm1681 = vcmask 744448
        %v1682 = vsel %vm1681, %v1676, %v1678
        %v1683 = vsel %vm1681, %v1678, %v1680
        %v1685 = vsel %vm437, %v1669, 0
        %v1687 = vsel %vm441, %v1682, 0
        %v1689 = vsel %vm441, %v1683, 0
        %v1691 = vsel %vm441, %v1680, 0
        %1693 = vmatprep.subr.mxu0 0.0
        %1694 = vmatpush1.msra.mxu0 0.0
        %1695 = vmatprep.subr.mxu0 0.0
        %1696 = vmatpush1.msra.mxu0 0.0
        %1697 = vmatprep.subr.mxu0 0.0
        %1698 = vmatpush1.msra.mxu0 0.0
        %1699 = vmatprep.subr.mxu0 0.0
        %1700 = vmatpush1.msra.mxu0 0.0
        %1701 = vmatprep.subr.mxu0 0.0
        %1702 = vmatpush1.msra.mxu0 0.0
        %1703 = vmatprep.subr.mxu0 0.0
        %1704 = vmatpush1.msra.mxu0 0.0
        %1705 = vmatprep.subr.mxu0 0.0
        %1706 = vmatpush1.msra.mxu0 0.0
        %1707 = vmatprep.subr.mxu0 0.0
        %1708 = vmatpush1.msra.mxu0 0.0
        %1709 = vmatprep.subr.mxu0 0.0
        %1710 = vmatpush1.msra.mxu0 0.0
        %1711 = vmatprep.subr.mxu0 0.0
        %1712 = vmatpush1.msra.mxu0 0.0
        %1713 = vmatprep.subr.mxu0 0.0
        %1714 = vmatpush1.msra.mxu0 0.0
        %1715 = vmatprep.subr.mxu0 0.0
        %1716 = vmatpush1.msra.mxu0 0.0
        %1717 = vmatprep.subr.mxu0 0.0
        %1718 = vmatpush1.msra.mxu0 0.0
        %1719 = vmatprep.subr.mxu0 0.0
        %1720 = vmatpush1.msra.mxu0 0.0
        %1721 = vmatprep.subr.mxu0 0.0
        %1722 = vmatpush1.msra.mxu0 0.0
        %1723 = vmatprep.subr.mxu0 %v1689
        %1724 = vmatpush1.msra.mxu0 %v1687
        %1725 = vmatprep.subr.mxu0 0.0
        %1726 = vmatpush2.msra.mxu0 0.0
        %1727 = vmatprep.subr.mxu0 0.0
        %1728 = vmatpush2.msra.mxu0 0.0
        %1729 = vmatprep.subr.mxu0 0.0
        %1730 = vmatpush2.msra.mxu0 0.0
        %1731 = vmatprep.subr.mxu0 0.0
        %1732 = vmatpush2.msra.mxu0 0.0
        %1733 = vmatprep.subr.mxu0 0.0
        %1734 = vmatpush2.msra.mxu0 0.0
        %1735 = vmatprep.subr.mxu0 0.0
        %1736 = vmatpush2.msra.mxu0 0.0
        %1737 = vmatprep.subr.mxu0 0.0
        %1738 = vmatpush2.msra.mxu0 0.0
        %1739 = vmatprep.subr.mxu0 0.0
        %1740 = vmatpush2.msra.mxu0 0.0
        %1741 = vmatprep.subr.mxu0 0.0
        %1742 = vmatpush2.msra.mxu0 0.0
        %1743 = vmatprep.subr.mxu0 0.0
        %1744 = vmatpush2.msra.mxu0 0.0
        %1745 = vmatprep.subr.mxu0 0.0
        %1746 = vmatpush2.msra.mxu0 0.0
        %1747 = vmatprep.subr.mxu0 0.0
        %1748 = vmatpush2.msra.mxu0 0.0
        %1749 = vmatprep.subr.mxu0 0.0
        %1750 = vmatpush2.msra.mxu0 0.0
        %1751 = vmatprep.subr.mxu0 0.0
        %1752 = vmatpush2.msra.mxu0 0.0
        %1753 = vmatprep.subr.mxu0 0.0
        %1754 = vmatpush2.msra.mxu0 0.0
        %1755 = vmatprep.subr.mxu0 0.0
        %1756 = vmatpush2.msra.mxu0 0.0
        %1757 = vmatprep.mubr.f32.mxu0 0.0
        %1758 = vmatmul.mubr.f32.gmra.mxu0 %v1685
        %v1759 = vpop.f32.mrf.mxu0
        %v1760 = vadd.f32 0.0, %v1759
        %v1761 = vpop.f32.mrf.mxu0
        %v1762 = vadd.f32 0.0, %v1761
        %1763 = vdwg.mxu0
        %1764 = vmatprep.subr.mxu0 0.0
        %1765 = vmatpush1.msra.mxu0 0.0
        %1766 = vmatprep.subr.mxu0 0.0
        %1767 = vmatpush1.msra.mxu0 0.0
        %1768 = vmatprep.subr.mxu0 0.0
        %1769 = vmatpush1.msra.mxu0 0.0
        %1770 = vmatprep.subr.mxu0 0.0
        %1771 = vmatpush1.msra.mxu0 0.0
        %1772 = vmatprep.subr.mxu0 0.0
        %1773 = vmatpush1.msra.mxu0 0.0
        %1774 = vmatprep.subr.mxu0 0.0
        %1775 = vmatpush1.msra.mxu0 0.0
        %1776 = vmatprep.subr.mxu0 0.0
        %1777 = vmatpush1.msra.mxu0 0.0
        %1778 = vmatprep.subr.mxu0 0.0
        %1779 = vmatpush1.msra.mxu0 0.0
        %1780 = vmatprep.subr.mxu0 0.0
        %1781 = vmatpush1.msra.mxu0 0.0
        %1782 = vmatprep.subr.mxu0 0.0
        %1783 = vmatpush1.msra.mxu0 0.0
        %1784 = vmatprep.subr.mxu0 0.0
        %1785 = vmatpush1.msra.mxu0 0.0
        %1786 = vmatprep.subr.mxu0 0.0
        %1787 = vmatpush1.msra.mxu0 0.0
        %1788 = vmatprep.subr.mxu0 0.0
        %1789 = vmatpush1.msra.mxu0 0.0
        %1790 = vmatprep.subr.mxu0 0.0
        %1791 = vmatpush1.msra.mxu0 0.0
        %1792 = vmatprep.subr.mxu0 0.0
        %1793 = vmatpush1.msra.mxu0 0.0
        %1794 = vmatprep.subr.mxu0 0.0
        %1795 = vmatpush1.msra.mxu0 %v1691
        %1796 = vmatprep.subr.mxu0 0.0
        %1797 = vmatpush2.msra.mxu0 0.0
        %1798 = vmatprep.subr.mxu0 0.0
        %1799 = vmatpush2.msra.mxu0 0.0
        %1800 = vmatprep.subr.mxu0 0.0
        %1801 = vmatpush2.msra.mxu0 0.0
        %1802 = vmatprep.subr.mxu0 0.0
        %1803 = vmatpush2.msra.mxu0 0.0
        %1804 = vmatprep.subr.mxu0 0.0
        %1805 = vmatpush2.msra.mxu0 0.0
        %1806 = vmatprep.subr.mxu0 0.0
        %1807 = vmatpush2.msra.mxu0 0.0
        %1808 = vmatprep.subr.mxu0 0.0
        %1809 = vmatpush2.msra.mxu0 0.0
        %1810 = vmatprep.subr.mxu0 0.0
        %1811 = vmatpush2.msra.mxu0 0.0
        %1812 = vmatprep.subr.mxu0 0.0
        %1813 = vmatpush2.msra.mxu0 0.0
        %1814 = vmatprep.subr.mxu0 0.0
        %1815 = vmatpush2.msra.mxu0 0.0
        %1816 = vmatprep.subr.mxu0 0.0
        %1817 = vmatpush2.msra.mxu0 0.0
        %1818 = vmatprep.subr.mxu0 0.0
        %1819 = vmatpush2.msra.mxu0 0.0
        %1820 = vmatprep.subr.mxu0 0.0
        %1821 = vmatpush2.msra.mxu0 0.0
        %1822 = vmatprep.subr.mxu0 0.0
        %1823 = vmatpush2.msra.mxu0 0.0
        %1824 = vmatprep.subr.mxu0 0.0
        %1825 = vmatpush2.msra.mxu0 0.0
        %1826 = vmatprep.subr.mxu0 0.0
        %1827 = vmatpush2.msra.mxu0 0.0
        %1828 = vmatprep.mubr.f32.mxu0 0.0
        %1829 = vmatmul.mubr.f32.gmra.mxu0 %v1685
        %v1830 = vpop.f32.mrf.mxu0
        %v1831 = vadd.f32 0.0, %v1830
        %v1832 = vpop.f32.mrf.mxu0
        %1833 = vdwg.mxu0
        %v1834 = vadd.f32 %v1651, %v1760
        %v1835 = vadd.f32 %v1652, %v1762
        %v1836 = vadd.f32 %v1653, %v1831
        %s1837 = scalar_lea.vmem %s219, 64
        %v1838 = vld [vmem:[%s1837] sm:$0xff]
        %v1839 = vmul.f32 %v383, %v1838
        %v1840 = vadd.f32 %v1839, 0.0
        %s1841 = scalar_lea.vmem %s219, 136
        %v1842 = vld [vmem:[%s1841] sm:$0xff]
        %v1843 = vmul.f32 %v390, %v1842
        %v1844 = vadd.f32 %v1840, %v1843
        %s1845 = scalar_lea.vmem %s219, 208
        %v1846 = vld [vmem:[%s1845] sm:$0xff]
        %v1847 = vmul.f32 %v397, %v1846
        %v1848 = vadd.f32 %v1844, %v1847
        %s1849 = scalar_lea.vmem %s219, 280
        %v1850 = vld [vmem:[%s1849] sm:$0xff]
        %v1851 = vmul.f32 %v404, %v1850
        %v1852 = vadd.f32 %v1848, %v1851
        %v1853 = vld [vmem:[#allocation2] sm:$0xff]
        %v1854 = vld [vmem:[#allocation2 + $0x8] sm:$0xf]
        %v1857 = vcombine.high %v1853, %v1853
        %1858 = vrot.lane.b32.xlu0 %v1853, 90
        %v1859 = vpop.permute.xlu0 %1858
        %1860 = vrot.lane.b32.xlu0 %v1857, 90
        %v1861 = vpop.permute.xlu0 %1860
        %1862 = vrot.lane.b32.xlu0 %v1854, 90
        %v1863 = vpop.permute.xlu0 %1862
        %vm1864 = vcmask 736256
        %v1865 = vsel %vm1864, %v1859, %v1861
        %v1866 = vsel %vm1864, %v1861, %v1863
        %v1868 = vsel %vm437, %v1852, 0
        %v1870 = vsel %vm441, %v1865, 0
        %v1872 = vsel %vm441, %v1866, 0
        %v1874 = vsel %vm441, %v1863, 0
        %1876 = vmatprep.subr.mxu0 0.0
        %1877 = vmatpush1.msra.mxu0 0.0
        %1878 = vmatprep.subr.mxu0 0.0
        %1879 = vmatpush1.msra.mxu0 0.0
        %1880 = vmatprep.subr.mxu0 0.0
        %1881 = vmatpush1.msra.mxu0 0.0
        %1882 = vmatprep.subr.mxu0 0.0
        %1883 = vmatpush1.msra.mxu0 0.0
        %1884 = vmatprep.subr.mxu0 0.0
        %1885 = vmatpush1.msra.mxu0 0.0
        %1886 = vmatprep.subr.mxu0 0.0
        %1887 = vmatpush1.msra.mxu0 0.0
        %1888 = vmatprep.subr.mxu0 0.0
        %1889 = vmatpush1.msra.mxu0 0.0
        %1890 = vmatprep.subr.mxu0 0.0
        %1891 = vmatpush1.msra.mxu0 0.0
        %1892 = vmatprep.subr.mxu0 0.0
        %1893 = vmatpush1.msra.mxu0 0.0
        %1894 = vmatprep.subr.mxu0 0.0
        %1895 = vmatpush1.msra.mxu0 0.0
        %1896 = vmatprep.subr.mxu0 0.0
        %1897 = vmatpush1.msra.mxu0 0.0
        %1898 = vmatprep.subr.mxu0 0.0
        %1899 = vmatpush1.msra.mxu0 0.0
        %1900 = vmatprep.subr.mxu0 0.0
        %1901 = vmatpush1.msra.mxu0 0.0
        %1902 = vmatprep.subr.mxu0 0.0
        %1903 = vmatpush1.msra.mxu0 0.0
        %1904 = vmatprep.subr.mxu0 0.0
        %1905 = vmatpush1.msra.mxu0 0.0
        %1906 = vmatprep.subr.mxu0 %v1872
        %1907 = vmatpush1.msra.mxu0 %v1870
        %1908 = vmatprep.subr.mxu0 0.0
        %1909 = vmatpush2.msra.mxu0 0.0
        %1910 = vmatprep.subr.mxu0 0.0
        %1911 = vmatpush2.msra.mxu0 0.0
        %1912 = vmatprep.subr.mxu0 0.0
        %1913 = vmatpush2.msra.mxu0 0.0
        %1914 = vmatprep.subr.mxu0 0.0
        %1915 = vmatpush2.msra.mxu0 0.0
        %1916 = vmatprep.subr.mxu0 0.0
        %1917 = vmatpush2.msra.mxu0 0.0
        %1918 = vmatprep.subr.mxu0 0.0
        %1919 = vmatpush2.msra.mxu0 0.0
        %1920 = vmatprep.subr.mxu0 0.0
        %1921 = vmatpush2.msra.mxu0 0.0
        %1922 = vmatprep.subr.mxu0 0.0
        %1923 = vmatpush2.msra.mxu0 0.0
        %1924 = vmatprep.subr.mxu0 0.0
        %1925 = vmatpush2.msra.mxu0 0.0
        %1926 = vmatprep.subr.mxu0 0.0
        %1927 = vmatpush2.msra.mxu0 0.0
        %1928 = vmatprep.subr.mxu0 0.0
        %1929 = vmatpush2.msra.mxu0 0.0
        %1930 = vmatprep.subr.mxu0 0.0
        %1931 = vmatpush2.msra.mxu0 0.0
        %1932 = vmatprep.subr.mxu0 0.0
        %1933 = vmatpush2.msra.mxu0 0.0
        %1934 = vmatprep.subr.mxu0 0.0
        %1935 = vmatpush2.msra.mxu0 0.0
        %1936 = vmatprep.subr.mxu0 0.0
        %1937 = vmatpush2.msra.mxu0 0.0
        %1938 = vmatprep.subr.mxu0 0.0
        %1939 = vmatpush2.msra.mxu0 0.0
        %1940 = vmatprep.mubr.f32.mxu0 0.0
        %1941 = vmatmul.mubr.f32.gmra.mxu0 %v1868
        %v1942 = vpop.f32.mrf.mxu0
        %v1943 = vadd.f32 0.0, %v1942
        %v1944 = vpop.f32.mrf.mxu0
        %v1945 = vadd.f32 0.0, %v1944
        %1946 = vdwg.mxu0
        %1947 = vmatprep.subr.mxu0 0.0
        %1948 = vmatpush1.msra.mxu0 0.0
        %1949 = vmatprep.subr.mxu0 0.0
        %1950 = vmatpush1.msra.mxu0 0.0
        %1951 = vmatprep.subr.mxu0 0.0
        %1952 = vmatpush1.msra.mxu0 0.0
        %1953 = vmatprep.subr.mxu0 0.0
        %1954 = vmatpush1.msra.mxu0 0.0
        %1955 = vmatprep.subr.mxu0 0.0
        %1956 = vmatpush1.msra.mxu0 0.0
        %1957 = vmatprep.subr.mxu0 0.0
        %1958 = vmatpush1.msra.mxu0 0.0
        %1959 = vmatprep.subr.mxu0 0.0
        %1960 = vmatpush1.msra.mxu0 0.0
        %1961 = vmatprep.subr.mxu0 0.0
        %1962 = vmatpush1.msra.mxu0 0.0
        %1963 = vmatprep.subr.mxu0 0.0
        %1964 = vmatpush1.msra.mxu0 0.0
        %1965 = vmatprep.subr.mxu0 0.0
        %1966 = vmatpush1.msra.mxu0 0.0
        %1967 = vmatprep.subr.mxu0 0.0
        %1968 = vmatpush1.msra.mxu0 0.0
        %1969 = vmatprep.subr.mxu0 0.0
        %1970 = vmatpush1.msra.mxu0 0.0
        %1971 = vmatprep.subr.mxu0 0.0
        %1972 = vmatpush1.msra.mxu0 0.0
        %1973 = vmatprep.subr.mxu0 0.0
        %1974 = vmatpush1.msra.mxu0 0.0
        %1975 = vmatprep.subr.mxu0 0.0
        %1976 = vmatpush1.msra.mxu0 0.0
        %1977 = vmatprep.subr.mxu0 0.0
        %1978 = vmatpush1.msra.mxu0 %v1874
        %1979 = vmatprep.subr.mxu0 0.0
        %1980 = vmatpush2.msra.mxu0 0.0
        %1981 = vmatprep.subr.mxu0 0.0
        %1982 = vmatpush2.msra.mxu0 0.0
        %1983 = vmatprep.subr.mxu0 0.0
        %1984 = vmatpush2.msra.mxu0 0.0
        %1985 = vmatprep.subr.mxu0 0.0
        %1986 = vmatpush2.msra.mxu0 0.0
        %1987 = vmatprep.subr.mxu0 0.0
        %1988 = vmatpush2.msra.mxu0 0.0
        %1989 = vmatprep.subr.mxu0 0.0
        %1990 = vmatpush2.msra.mxu0 0.0
        %1991 = vmatprep.subr.mxu0 0.0
        %1992 = vmatpush2.msra.mxu0 0.0
        %1993 = vmatprep.subr.mxu0 0.0
        %1994 = vmatpush2.msra.mxu0 0.0
        %1995 = vmatprep.subr.mxu0 0.0
        %1996 = vmatpush2.msra.mxu0 0.0
        %1997 = vmatprep.subr.mxu0 0.0
        %1998 = vmatpush2.msra.mxu0 0.0
        %1999 = vmatprep.subr.mxu0 0.0
        %2000 = vmatpush2.msra.mxu0 0.0
        %2001 = vmatprep.subr.mxu0 0.0
        %2002 = vmatpush2.msra.mxu0 0.0
        %2003 = vmatprep.subr.mxu0 0.0
        %2004 = vmatpush2.msra.mxu0 0.0
        %2005 = vmatprep.subr.mxu0 0.0
        %2006 = vmatpush2.msra.mxu0 0.0
        %2007 = vmatprep.subr.mxu0 0.0
        %2008 = vmatpush2.msra.mxu0 0.0
        %2009 = vmatprep.subr.mxu0 0.0
        %2010 = vmatpush2.msra.mxu0 0.0
        %2011 = vmatprep.mubr.f32.mxu0 0.0
        %2012 = vmatmul.mubr.f32.gmra.mxu0 %v1868
        %v2013 = vpop.f32.mrf.mxu0
        %v2014 = vadd.f32 0.0, %v2013
        %v2015 = vpop.f32.mrf.mxu0
        %2016 = vdwg.mxu0
        %v2017 = vadd.f32 %v1834, %v1943
        %v2018 = vadd.f32 %v1835, %v1945
        %v2019 = vadd.f32 %v1836, %v2014
        %v2020 = vld [vmem:[%s223] sm:$0xff]
        %v2021 = vmul.f32 %v383, %v2020
        %v2022 = vadd.f32 %v2021, 0.0
        %s2023 = scalar_lea.vmem %s223, 8
        %v2024 = vld [vmem:[%s2023] sm:$0xff]
        %v2025 = vmul.f32 %v390, %v2024
        %v2026 = vadd.f32 %v2022, %v2025
        %s2027 = scalar_lea.vmem %s223, 16
        %v2028 = vld [vmem:[%s2027] sm:$0xff]
        %v2029 = vmul.f32 %v397, %v2028
        %v2030 = vadd.f32 %v2026, %v2029
        %s2031 = scalar_lea.vmem %s223, 24
        %v2032 = vld [vmem:[%s2031] sm:$0xff]
        %v2033 = vmul.f32 %v404, %v2032
        %v2034 = vadd.f32 %v2030, %v2033
        %2036 = vset.pattern.permute.xlu0 0
        %2037 = vperm.xlu0 %2036, %v2034
        %v2038 = vpop.permute.xlu0 %2037
        %v2040 = vadd.f32 %v2017, %v2038
        %v2041 = vadd.f32 %v2018, %v2038
        %v2042 = vadd.f32 %v2019, %v2038
        %2043 = vst [vmem:[%s210] sm:$0xff] %v2040
        %2044 = vst [vmem:[%s210 + $0x8] sm:$0xff] %v2041
        %vm2045 = vcmask 261120
        %2046 = vst.msk [vmem:[%s210 + $0x10] sm:$0xff] %vm2045, %v2042
        %s2047 = sand.u32 %s124, 1
        %s2048 = scalar_lea.sflag [#allocation6], %s2047
        %s2049 = sand.u32 %s124, 1
        %s2050 = smul.addr %s2049, 24
        %s2051 = scalar_lea.vmem [#allocation5], %s2050
        // Predicated region
        $region33: #{tpu_custom_call.1} parent=31 // pred_check
          %p2052 = pneg %p134
        $region34: #{tpu_custom_call.1} parent=31 // pred_check_branch
          %2054 = sbr.rel (%p2052) target = $region36
        $region35: #{tpu_custom_call.1} parent=31 // pred_region
          %s2056 = ssub.s32 384, 384
          %2057 = vsyncadd %s2048, %s2056
          %s2058 = smul.addr %s29, 3
          %s2059 = smul.addr %s28, 3
          %s2060 = sadd.s32 %s2058, %s2059
          %s2061 = smul.addr %s2060, 128
          %s2062 = scalar_lea.hbm %s4, %s2061
          %s2064 = sshll.u32 %s2051, 4
          %s2065 = int_to_ptr.vmem [resolvable:$true] %s2064
          %2067 = dma.vmem_to_hbm [thread:$0]  %s2065, 384, %s2062, %s2048
        $region36: #{tpu_custom_call.1} parent=31 // pred_fallthru
          _
      $region32: #{tpu_custom_call.1} parent=5 // pred_fallthru
        _
      %p2068 = scmp.le.s32.totalorder 2, %s19
      // Predicated region
      $region37: #{tpu_custom_call.1} parent=5 // pred_check
        %p2069 = pneg %p2068
      $region38: #{tpu_custom_call.1} parent=5 // pred_check_branch
        %2071 = sbr.rel (%p2069) target = $region40
      $region39: #{tpu_custom_call.1} parent=5 // pred_region
        %s2072 = ssub.s32 %s19, 2
        // Predicated region
        $region41: #{tpu_custom_call.1} parent=39 // pred_check
          %p2073 = pneg %p140
        $region42: #{tpu_custom_call.1} parent=39 // pred_check_branch
          %2075 = sbr.rel (%p2073) target = $region44
        $region43: #{tpu_custom_call.1} parent=39 // pred_region
          %s2076 = sand.u32 %s125, 1
          %s2077 = scalar_lea.sflag [#allocation6], %s2076
          %s2078 = sand.u32 %s125, 1
          %s2079 = smul.addr %s2078, 24
          %s2080 = scalar_lea.vmem [#allocation5], %s2079
          %2081 = dma.done %s2077, 384
        $region44: #{tpu_custom_call.1} parent=39 // pred_fallthru
          _
      $region40: #{tpu_custom_call.1} parent=5 // pred_fallthru
        _
    $region6: #{tpu_custom_call.1} parent=1 // loop_footer
      %s23 = sadd.s32 1, %s19
    $region7: #{tpu_custom_call.1} parent=1 // loop_footer_branch
      %18 = sbr.rel target = $region3
    $region8: #{tpu_custom_call.1} parent=1 // loop_exit
      _
    %2082 = vsyncpa [#allocation6], 1
    %s2083 = scalar_lea.sflag [#allocation6], 1
    %2084 = vsyncpa %s2083, 1

// kernel: tpu_custom_call.1
$region0: #{tpu_custom_call.1}
  #allocation0 [shape = 'u32[]', space=smem, size = 0x4, offset = 0x4, fixed_abs, tag = 'smem constant byte address 0x4 - core index']
  #allocation1 [shape = 'u32[144,128]{1,0:T(1,128)}', space=vmem, size = 0x12000, scoped, tag = 'internal scratch']
  #allocation2 [shape = 'f32[4,326]{1,0:T(4,128)}', space=vmem, size = 0x1800, scoped, tag = 'scratch operand']
  #allocation3 [shape = 's32[1]{0}', space=sflag, size = 0x4, scoped, tag = 'scoped memory for tpu_custom_call.1']
  #allocation4 [shape = 'u8[1024]{0}', space=smem, size = 0x400, scoped, tag = 'prefetched SMEM operand 0']
  %s0 = inlined_call_operand.vmem [shape: f32[2,4], index: 0, kind: input, shape index: {}]
  %s1 = inlined_call_operand.vmem [shape: f32[2,4,256], index: 1, kind: input, shape index: {}]
  %s2 = inlined_call_operand.vmem [shape: f32[4,9,8,4], index: 2, kind: input, shape index: {}]
  %s3 = inlined_call_operand.vmem [shape: f32[4,8,1], index: 3, kind: input, shape index: {}]
  %s4 = inlined_call_operand.hbm [shape: f32[2,8,288], index: 4, kind: output, shape index: {}]
  %s5 = sld [smem:[#allocation0]]
  $region45: #{tpu_custom_call.1} parent=0
    _
  %s7 = ssub.s32 1, %s5
  %s8 = scalar_select 0, %s7, %s5
  %s9 = sshll.u32 %s0, 4
  %s10 = int_to_ptr.vmem [resolvable:$true] %s9
  %12 = dma.vmem_to_smem %s10, 32, [#allocation4], [#allocation3]
  %13 = dma.done [#allocation3], 32
  %14 = sfence
  $region1: #{tpu_custom_call.1} parent=0
    #allocation5 [shape = 'u8[24576]{0}', space=vmem, size = 0x6000, scoped, tag = 'output window, operand 0']
    #allocation6 [shape = 's32[2]{0}', space=sflag, size = 0x8, scoped, tag = 'scoped memory for tpu_custom_call.1']
    %15 = vsyncpa [#allocation6], 0
    %s16 = scalar_lea.sflag [#allocation6], 1
    %17 = vsyncpa %s16, 0
    loop: start=0, step=1, limit=4
    $region2: #{tpu_custom_call.1} parent=1 // loop_pre_header
      _
    $region3: #{tpu_custom_call.1} parent=1 // loop_header
      %s19 = sphi 0, %s23
      %p20 = scmp.ge.s32.totalorder %s19, 4
      %s26 = sphi 0, %s38
      %s27 = sphi 0, %s34
      %s28 = sphi 0, %s26
      %s29 = sphi 0, %s27
      %s30 = sphi 0, %s28
      %s31 = sphi 0, %s29
      %s41 = sphi 0, %s43
      %s44 = sphi 0, %s41
      %s45 = sphi 0, %s44
      %s61 = sphi 0, %s45
      %s67 = sphi 0, %s69
      %s70 = sphi 0, %s67
      %s71 = sphi 0, %s70
      %s87 = sphi 0, %s71
      %s93 = sphi 0, %s95
      %s96 = sphi 0, %s93
      %s97 = sphi 0, %s96
      %s113 = sphi 0, %s97
      %s121 = sphi 0, %s123
      %s124 = sphi 0, %s121
      %s125 = sphi 0, %s124
      %s141 = sphi 0, %s125
    $region4: #{tpu_custom_call.1} parent=1 // loop_header_branch
      %22 = sbr.rel (%p20) target = $region8
    $region5: #{tpu_custom_call.1} parent=1 // loop_body
      %s24 = ssub.s32 %s19, 1
      %s25 = ssub.s32 %s19, 2
      %s32 = sadd.s32 1, %s27
      %p33 = scmp.ge.s32.totalorder %s32, 1
      %s34 = scalar_select %p33, 0, %s32
      %s35 = sadd.s32 1, %s26
      %s36 = scalar_select %p33, %s35, %s26
      %p37 = scmp.ge.s32.totalorder %s36, 2
      %s38 = scalar_select %p37, 0, %s36
      %s39 = ssub.s32 %s26, %s38
      %p40 = scmp.eq.s32.totalorder %s39, 0
      %s42 = sadd.s32 %s41, 1
      %s43 = scalar_select %p40, %s41, %s42
      %p46 = pneg %p40
      %p47 = scmp.eq.s32.totalorder %s19, 1
      %p48 = por %p46, %p47
      %p49 = scmp.ne.s32.totalorder %s41, %s44
      %p50 = scmp.eq.s32.totalorder %s19, 0
      %p51 = por %p49, %p50
      %p52 = scmp.ne.s32.totalorder %s41, %s44
      %p53 = scmp.eq.s32.totalorder %s24, 1
      %p54 = por %p52, %p53
      %p55 = scmp.ne.s32.totalorder %s44, %s45
      %p56 = scmp.eq.s32.totalorder %s24, 0
      %p57 = por %p55, %p56
      %p58 = scmp.ne.s32.totalorder %s44, %s45
      %p59 = scmp.eq.s32.totalorder %s25, 1
      %p60 = por %p58, %p59
      %p62 = scmp.ne.s32.totalorder %s45, %s61
      %p63 = scmp.eq.s32.totalorder %s25, 0
      %p64 = por %p62, %p63
      %s65 = ssub.s32 %s27, %s34
      %p66 = scmp.eq.s32.totalorder %s65, 0
      %s68 = sadd.s32 %s67, 1
      %s69 = scalar_select %p66, %s67, %s68
      %p72 = pneg %p66
      %p73 = scmp.eq.s32.totalorder %s19, 1
      %p74 = por %p72, %p73
      %p75 = scmp.ne.s32.totalorder %s67, %s70
      %p76 = scmp.eq.s32.totalorder %s19, 0
      %p77 = por %p75, %p76
      %p78 = scmp.ne.s32.totalorder %s67, %s70
      %p79 = scmp.eq.s32.totalorder %s24, 1
      %p80 = por %p78, %p79
      %p81 = scmp.ne.s32.totalorder %s70, %s71
      %p82 = scmp.eq.s32.totalorder %s24, 0
      %p83 = por %p81, %p82
      %p84 = scmp.ne.s32.totalorder %s70, %s71
      %p85 = scmp.eq.s32.totalorder %s25, 1
      %p86 = por %p84, %p85
      %p88 = scmp.ne.s32.totalorder %s71, %s87
      %p89 = scmp.eq.s32.totalorder %s25, 0
      %p90 = por %p88, %p89
      %s91 = ssub.s32 %s27, %s34
      %p92 = scmp.eq.s32.totalorder %s91, 0
      %s94 = sadd.s32 %s93, 1
      %s95 = scalar_select %p92, %s93, %s94
      %p98 = pneg %p92
      %p99 = scmp.eq.s32.totalorder %s19, 1
      %p100 = por %p98, %p99
      %p101 = scmp.ne.s32.totalorder %s93, %s96
      %p102 = scmp.eq.s32.totalorder %s19, 0
      %p103 = por %p101, %p102
      %p104 = scmp.ne.s32.totalorder %s93, %s96
      %p105 = scmp.eq.s32.totalorder %s24, 1
      %p106 = por %p104, %p105
      %p107 = scmp.ne.s32.totalorder %s96, %s97
      %p108 = scmp.eq.s32.totalorder %s24, 0
      %p109 = por %p107, %p108
      %p110 = scmp.ne.s32.totalorder %s96, %s97
      %p111 = scmp.eq.s32.totalorder %s25, 1
      %p112 = por %p110, %p111
      %p114 = scmp.ne.s32.totalorder %s97, %s113
      %p115 = scmp.eq.s32.totalorder %s25, 0
      %p116 = por %p114, %p115
      %s117 = ssub.s32 %s26, %s38
      %s118 = ssub.s32 %s27, %s34
      %s119 = sor.u32 %s117, %s118
      %p120 = scmp.eq.s32.totalorder %s119, 0
      %s122 = sadd.s32 %s121, 1
      %s123 = scalar_select %p120, %s121, %s122
      %p126 = pneg %p120
      %p127 = scmp.eq.s32.totalorder %s19, 1
      %p128 = por %p126, %p127
      %p129 = scmp.ne.s32.totalorder %s121, %s124
      %p130 = scmp.eq.s32.totalorder %s19, 0
      %p131 = por %p129, %p130
      %p132 = scmp.ne.s32.totalorder %s121, %s124
      %p133 = scmp.eq.s32.totalorder %s24, 1
      %p134 = por %p132, %p133
      %p135 = scmp.ne.s32.totalorder %s124, %s125
      %p136 = scmp.eq.s32.totalorder %s24, 0
      %p137 = por %p135, %p136
      %p138 = scmp.ne.s32.totalorder %s124, %s125
      %p139 = scmp.eq.s32.totalorder %s25, 1
      %p140 = por %p138, %p139
      %p142 = scmp.ne.s32.totalorder %s125, %s141
      %p143 = scmp.eq.s32.totalorder %s25, 0
      %p144 = por %p142, %p143
      %p145 = scmp.le.s32.totalorder 1, %s19
      %p146 = scmp.lt.s32.totalorder %s19, 3
      %p147 = pnand %p145, %p146
      %p148 = pneg %p147
      // Predicated region
      $region9: #{tpu_custom_call.1} parent=5 // pred_check
        _
      $region10: #{tpu_custom_call.1} parent=5 // pred_check_branch
        %150 = sbr.rel (%p147) target = $region12
      $region11: #{tpu_custom_call.1} parent=5 // pred_region
        %s151 = ssub.s32 %s19, 1
        // Predicated region
        $region13: #{tpu_custom_call.1} parent=11 // pred_check
          %p152 = pneg %p83
        $region14: #{tpu_custom_call.1} parent=11 // pred_check_branch
          %154 = sbr.rel (%p152) target = $region16
        $region15: #{tpu_custom_call.1} parent=11 // pred_region
          %p155 = scmp.lt.s32.totalorder %s29, 0
          %s156 = scalar_select %p155, %s29, 0
          %s157 = smul.addr %s156, 8
          %s158 = scalar_lea.vmem %s2, %s157
        $region16: #{tpu_custom_call.1} parent=11 // pred_fallthru
          _
        // Predicated region
        $region17: #{tpu_custom_call.1} parent=11 // pred_check
          %p159 = pneg %p109
        $region18: #{tpu_custom_call.1} parent=11 // pred_check_branch
          %161 = sbr.rel (%p159) target = $region20
        $region19: #{tpu_custom_call.1} parent=11 // pred_region
          %p162 = scmp.lt.s32.totalorder %s29, 0
          %s163 = scalar_select %p162, %s29, 0
          %s164 = smul.addr %s163, 8
          %s165 = scalar_lea.vmem %s3, %s164
        $region20: #{tpu_custom_call.1} parent=11 // pred_fallthru
          _
      $region12: #{tpu_custom_call.1} parent=5 // pred_fallthru
        _
      %p166 = scmp.lt.s32.totalorder %s19, 2
      // Predicated region
      $region21: #{tpu_custom_call.1} parent=5 // pred_check
        %p167 = pneg %p166
      $region22: #{tpu_custom_call.1} parent=5 // pred_check_branch
        %169 = sbr.rel (%p167) target = $region24
      $region23: #{tpu_custom_call.1} parent=5 // pred_region
        // Predicated region
        $region25: #{tpu_custom_call.1} parent=23 // pred_check
          %p170 = pneg %p51
        $region26: #{tpu_custom_call.1} parent=23 // pred_check_branch
          %172 = sbr.rel (%p170) target = $region28
        $region27: #{tpu_custom_call.1} parent=23 // pred_region
          %p173 = scmp.lt.s32.totalorder %s26, 1
          %s174 = scalar_select %p173, %s26, 1
          %s175 = smul.addr %s174, 2
          %s176 = smul.addr %s175, 4
          %s177 = scalar_lea.vmem %s1, %s176
        $region28: #{tpu_custom_call.1} parent=23 // pred_fallthru
          _
      $region24: #{tpu_custom_call.1} parent=5 // pred_fallthru
        _
      %p178 = scmp.le.s32.totalorder 1, %s19
      %p179 = scmp.lt.s32.totalorder %s19, 3
      %p180 = pnand %p178, %p179
      %p181 = pneg %p180
      // Predicated region
      $region29: #{tpu_custom_call.1} parent=5 // pred_check
        _
      $region30: #{tpu_custom_call.1} parent=5 // pred_check_branch
        %183 = sbr.rel (%p180) target = $region32
      $region31: #{tpu_custom_call.1} parent=5 // pred_region
        %s184 = ssub.s32 %s19, 1
        %p185 = scmp.lt.s32.totalorder %s28, 1
        %s186 = scalar_select %p185, %s28, 1
        %s187 = smul.addr %s186, 2
        %s188 = smul.addr %s187, 4
        %s189 = scalar_lea.vmem %s1, %s188
        %p190 = pneg %p57
        %p191 = pneg %p54
        %p192 = scmp.lt.s32.totalorder %s29, 0
        %s193 = scalar_select %p192, %s29, 0
        %s194 = smul.addr %s193, 8
        %s195 = scalar_lea.vmem %s2, %s194
        %p196 = pneg %p83
        %p197 = pneg %p80
        %p198 = scmp.lt.s32.totalorder %s29, 0
        %s199 = scalar_select %p198, %s29, 0
        %s200 = smul.addr %s199, 8
        %s201 = scalar_lea.vmem %s3, %s200
        %p202 = pneg %p109
        %p203 = pneg %p106
        %p204 = pneg %p137
        %p205 = pneg %p134
        %s206 = sand.u32 %s124, 1
        %s207 = scalar_lea.sflag [#allocation6], %s206
        %s208 = sand.u32 %s124, 1
        %s209 = smul.addr %s208, 24
        %s210 = scalar_lea.vmem [#allocation5], %s209
        %p211 = scmp.lt.s32.totalorder %s28, 1
        %s212 = scalar_select %p211, %s28, 1
        %s213 = smul.addr %s212, 2
        %s214 = smul.addr %s213, 4
        %s215 = scalar_lea.vmem %s1, %s214
        %p216 = scmp.lt.s32.totalorder %s29, 0
        %s217 = scalar_select %p216, %s29, 0
        %s218 = smul.addr %s217, 8
        %s219 = scalar_lea.vmem %s2, %s218
        %p220 = scmp.lt.s32.totalorder %s29, 0
        %s221 = scalar_select %p220, %s29, 0
        %s222 = smul.addr %s221, 8
        %s223 = scalar_lea.vmem %s3, %s222
        %vm224 = vcmask 150528
        %225 = vst.msk [vmem:[#allocation2] sm:$0xf] %vm224, 0.0
        %v226 = vld [vmem:[%s215] sm:$0xf]
        %228 = vrot.lane.b32.xlu0 %v226, 19
        %v229 = vpop.permute.xlu0 %228
        %vm231 = vcmask 281752
        %232 = vst.msk [vmem:[#allocation2] sm:$0xf] %vm231, %v229
        %vm233 = vcmask 298264
        %234 = vst.msk [vmem:[#allocation2] sm:$0xf] %vm233, 0.0
        %v235 = vld [vmem:[%s215] sm:$0xf]
        %237 = vrot.lane.b32.xlu0 %v235, 21
        %v238 = vpop.permute.xlu0 %237
        %vm240 = vcmask 429352
        %241 = vst.msk [vmem:[#allocation2] sm:$0xf] %vm240, %v238
        %vm242 = vcmask 445864
        %243 = vst.msk [vmem:[#allocation2] sm:$0xf] %vm242, 0.0
        %v244 = vld [vmem:[%s215] sm:$0xf]
        %246 = vrot.lane.b32.xlu0 %v244, 23
        %v247 = vpop.permute.xlu0 %246
        %vm249 = vcmask 576952
        %250 = vst.msk [vmem:[#allocation2] sm:$0xf] %vm249, %v247
        %vm251 = vcmask 593464
        %252 = vst.msk [vmem:[#allocation2] sm:$0xf] %vm251, 0.0
        %v253 = vld [vmem:[%s215] sm:$0xf]
        %255 = vrot.lane.b32.xlu0 %v253, 25
        %v256 = vpop.permute.xlu0 %255
        %vm258 = vcmask 724552
        %259 = vst.msk [vmem:[#allocation2] sm:$0xf] %vm258, %v256
        %vm260 = vcmask 741064
        %261 = vst.msk [vmem:[#allocation2] sm:$0xf] %vm260, 0.0
        %v262 = vld [vmem:[%s215] sm:$0xf]
        %264 = vrot.lane.b32.xlu0 %v262, 27
        %v265 = vpop.permute.xlu0 %264
        %vm267 = vcmask 872152
        %268 = vst.msk [vmem:[#allocation2] sm:$0xf] %vm267, %v265
        %vm269 = vcmask 888664
        %270 = vst.msk [vmem:[#allocation2] sm:$0xf] %vm269, 0.0
        %v271 = vld [vmem:[%s215] sm:$0xf]
        %273 = vrot.lane.b32.xlu0 %v271, 29
        %v274 = vpop.permute.xlu0 %273
        %vm276 = vcmask 1019752
        %277 = vst.msk [vmem:[#allocation2] sm:$0xf] %vm276, %v274
        %vm278 = vcmask 1036264
        %279 = vst.msk [vmem:[#allocation2] sm:$0xf] %vm278, 0.0
        %v280 = vld [vmem:[%s215] sm:$0xf]
        %282 = vrot.lane.b32.xlu0 %v280, 31
        %v283 = vpop.permute.xlu0 %282
        %v284 = vrot.slane %v283, 4
        %vm285 = vcmask 252928
        %v286 = vsel %vm285, %v284, %v283
        %vm288 = vcmask 1044472
        %vm289 = vcmask 121860
        %vm290 = vmor %vm289, %vm288
        %291 = vst.msk [vmem:[#allocation2] sm:$0xff] %vm290, %v286
        %vm292 = vcmask 134264
        %293 = vst.msk [vmem:[#allocation2 + $0x4] sm:$0xf] %vm292, 0.0
        %v294 = vld [vmem:[%s215] sm:$0xf]
        %296 = vrot.lane.b32.xlu0 %v294, 33
        %v297 = vpop.permute.xlu0 %296
        %vm299 = vcmask 265352
        %300 = vst.msk [vmem:[#allocation2 + $0x4] sm:$0xf] %vm299, %v297
        %vm301 = vcmask 281864
        %302 = vst.msk [vmem:[#allocation2 + $0x4] sm:$0xf] %vm301, 0.0
        %v303 = vld [vmem:[%s215 + $0x4] sm:$0xf]
        %305 = vrot.lane.b32.xlu0 %v303, 35
        %v306 = vpop.permute.xlu0 %305
        %vm308 = vcmask 412952
        %309 = vst.msk [vmem:[#allocation2 + $0x4] sm:$0xf] %vm308, %v306
        %vm310 = vcmask 429464
        %311 = vst.msk [vmem:[#allocation2 + $0x4] sm:$0xf] %vm310, 0.0
        %v312 = vld [vmem:[%s215 + $0x4] sm:$0xf]
        %314 = vrot.lane.b32.xlu0 %v312, 37
        %v315 = vpop.permute.xlu0 %314
        %vm317 = vcmask 560552
        %318 = vst.msk [vmem:[#allocation2 + $0x4] sm:$0xf] %vm317, %v315
        %vm319 = vcmask 577064
        %320 = vst.msk [vmem:[#allocation2 + $0x4] sm:$0xf] %vm319, 0.0
        %v321 = vld [vmem:[%s215 + $0x4] sm:$0xf]
        %323 = vrot.lane.b32.xlu0 %v321, 39
        %v324 = vpop.permute.xlu0 %323
        %vm326 = vcmask 708152
        %327 = vst.msk [vmem:[#allocation2 + $0x4] sm:$0xf] %vm326, %v324
        %vm328 = vcmask 724664
        %329 = vst.msk [vmem:[#allocation2 + $0x4] sm:$0xf] %vm328, 0.0
        %v330 = vld [vmem:[%s215 + $0x4] sm:$0xf]
        %332 = vrot.lane.b32.xlu0 %v330, 41
        %v333 = vpop.permute.xlu0 %332
        %vm335 = vcmask 855752
        %336 = vst.msk [vmem:[#allocation2 + $0x4] sm:$0xf] %vm335, %v333
        %vm337 = vcmask 872264
        %338 = vst.msk [vmem:[#allocation2 + $0x4] sm:$0xf] %vm337, 0.0
        %v339 = vld [vmem:[%s215 + $0x4] sm:$0xf]
        %341 = vrot.lane.b32.xlu0 %v339, 43
        %v342 = vpop.permute.xlu0 %341
        %vm344 = vcmask 1003352
        %345 = vst.msk [vmem:[#allocation2 + $0x4] sm:$0xf] %vm344, %v342
        %vm346 = vcmask 1019864
        %347 = vst.msk [vmem:[#allocation2 + $0x4] sm:$0xf] %vm346, 0.0
        %v348 = vld [vmem:[%s215 + $0x4] sm:$0xf]
        %350 = vrot.lane.b32.xlu0 %v348, 45
        %v351 = vpop.permute.xlu0 %350
        %v352 = vrot.slane %v351, 4
        %vm353 = vcmask 367616
        %v354 = vsel %vm353, %v352, %v351
        %vm356 = vcmask 1044456
        %vm357 = vcmask 105476
        %vm358 = vmor %vm357, %vm356
        %359 = vst.msk [vmem:[#allocation2 + $0x4] sm:$0xff] %vm358, %v354
        %vm360 = vcmask 117864
        %361 = vst.msk [vmem:[#allocation2 + $0x8] sm:$0xf] %vm360, 0.0
        %v362 = vld [vmem:[%s215 + $0x4] sm:$0xf]
        %364 = vrot.lane.b32.xlu0 %v362, 47
        %v365 = vpop.permute.xlu0 %364
        %vm367 = vcmask 248952
        %368 = vst.msk [vmem:[#allocation2 + $0x8] sm:$0xf] %vm367, %v365
        %vm369 = vcmask 265464
        %370 = vst.msk [vmem:[#allocation2 + $0x8] sm:$0xf] %vm369, 0.0
        %v371 = vld [vmem:[%s215 + $0x4] sm:$0xf]
        %373 = vrot.lane.b32.xlu0 %v371, 49
        %v374 = vpop.permute.xlu0 %373
        %vm376 = vcmask 396552
        %377 = vst.msk [vmem:[#allocation2 + $0x8] sm:$0xf] %vm376, %v374
        %vm378 = vcmask 568712
        %379 = vst.msk [vmem:[#allocation2 + $0x8] sm:$0xf] %vm378, 0.0
        %s380 = smul.u32 %s28, 128
        %s381 = sld [smem:[#allocation4 + %s380]]
        %v382 = vld [vmem:[%s219] sm:$0xff]
        %v383 = vstv %s381
        %v384 = vmul.f32 %v383, %v382
        %v385 = vadd.f32 %v384, 0.0
        %s386 = sadd.s32 %s380, 1
        %s387 = sld [smem:[#allocation4 + %s386]]
        %s388 = scalar_lea.vmem %s219, 72
        %v389 = vld [vmem:[%s388] sm:$0xff]
        %v390 = vstv %s387
        %v391 = vmul.f32 %v390, %v389
        %v392 = vadd.f32 %v385, %v391
        %s393 = sadd.s32 %s380, 2
        %s394 = sld [smem:[#allocation4 + %s393]]
        %s395 = scalar_lea.vmem %s219, 144
        %v396 = vld [vmem:[%s395] sm:$0xff]
        %v397 = vstv %s394
        %v398 = vmul.f32 %v397, %v396
        %v399 = vadd.f32 %v392, %v398
        %s400 = sadd.s32 %s380, 3
        %s401 = sld [smem:[#allocation4 + %s400]]
        %s402 = scalar_lea.vmem %s219, 216
        %v403 = vld [vmem:[%s402] sm:$0xff]
        %v404 = vstv %s401
        %v405 = vmul.f32 %v404, %v403
        %v406 = vadd.f32 %v399, %v405
        %v407 = vld [vmem:[#allocation2] sm:$0xff]
        %v408 = vld [vmem:[#allocation2 + $0x8] sm:$0xf]
        %s409 = scalar_lea.vmem %s219, 8
        %v410 = vld [vmem:[%s409] sm:$0xff]
        %v411 = vmul.f32 %v383, %v410
        %v412 = vadd.f32 %v411, 0.0
        %s413 = scalar_lea.vmem %s219, 80
        %v414 = vld [vmem:[%s413] sm:$0xff]
        %v415 = vmul.f32 %v390, %v414
        %v416 = vadd.f32 %v412, %v415
        %s417 = scalar_lea.vmem %s219, 152
        %v418 = vld [vmem:[%s417] sm:$0xff]
        %v419 = vmul.f32 %v397, %v418
        %v420 = vadd.f32 %v416, %v419
        %s421 = scalar_lea.vmem %s219, 224
        %v422 = vld [vmem:[%s421] sm:$0xff]
        %v423 = vmul.f32 %v404, %v422
        %v424 = vadd.f32 %v420, %v423
        %v427 = vcombine.high %v407, %v407
        %428 = vrot.lane.b32.xlu0 %v407, 127
        %v429 = vpop.permute.xlu0 %428
        %430 = vrot.lane.b32.xlu0 %v427, 127
        %v431 = vpop.permute.xlu0 %430
        %432 = vrot.lane.b32.xlu0 %v408, 127
        %v433 = vpop.permute.xlu0 %432
        %vm434 = vcmask 1039360
        %v435 = vsel %vm434, %v429, %v431
        %v436 = vsel %vm434, %v431, %v433
        %vm437 = vcmask 31744
        %v439 = vsel %vm437, %v424, 0
        %vm441 = vcmask 1043456
        %v442 = vsel %vm441, %v435, 0
        %v444 = vsel %vm441, %v436, 0
        %v446 = vsel %vm441, %v433, 0
        %448 = vmatprep.subr.mxu0 0.0
        %449 = vmatpush1.msra.mxu0 0.0
        %450 = vmatprep.subr.mxu0 0.0
        %451 = vmatpush1.msra.mxu0 0.0
        %452 = vmatprep.subr.mxu0 0.0
        %453 = vmatpush1.msra.mxu0 0.0
        %454 = vmatprep.subr.mxu0 0.0
        %455 = vmatpush1.msra.mxu0 0.0
        %456 = vmatprep.subr.mxu0 0.0
        %457 = vmatpush1.msra.mxu0 0.0
        %458 = vmatprep.subr.mxu0 0.0
        %459 = vmatpush1.msra.mxu0 0.0
        %460 = vmatprep.subr.mxu0 0.0
        %461 = vmatpush1.msra.mxu0 0.0
        %462 = vmatprep.subr.mxu0 0.0
        %463 = vmatpush1.msra.mxu0 0.0
        %464 = vmatprep.subr.mxu0 0.0
        %465 = vmatpush1.msra.mxu0 0.0
        %466 = vmatprep.subr.mxu0 0.0
        %467 = vmatpush1.msra.mxu0 0.0
        %468 = vmatprep.subr.mxu0 0.0
        %469 = vmatpush1.msra.mxu0 0.0
        %470 = vmatprep.subr.mxu0 0.0
        %471 = vmatpush1.msra.mxu0 0.0
        %472 = vmatprep.subr.mxu0 0.0
        %473 = vmatpush1.msra.mxu0 0.0
        %474 = vmatprep.subr.mxu0 0.0
        %475 = vmatpush1.msra.mxu0 0.0
        %476 = vmatprep.subr.mxu0 0.0
        %477 = vmatpush1.msra.mxu0 0.0
        %478 = vmatprep.subr.mxu0 %v444
        %479 = vmatpush1.msra.mxu0 %v442
        %480 = vmatprep.subr.mxu0 0.0
        %481 = vmatpush2.msra.mxu0 0.0
        %482 = vmatprep.subr.mxu0 0.0
        %483 = vmatpush2.msra.mxu0 0.0
        %484 = vmatprep.subr.mxu0 0.0
        %485 = vmatpush2.msra.mxu0 0.0
        %486 = vmatprep.subr.mxu0 0.0
        %487 = vmatpush2.msra.mxu0 0.0
        %488 = vmatprep.subr.mxu0 0.0
        %489 = vmatpush2.msra.mxu0 0.0
        %490 = vmatprep.subr.mxu0 0.0
        %491 = vmatpush2.msra.mxu0 0.0
        %492 = vmatprep.subr.mxu0 0.0
        %493 = vmatpush2.msra.mxu0 0.0
        %494 = vmatprep.subr.mxu0 0.0
        %495 = vmatpush2.msra.mxu0 0.0
        %496 = vmatprep.subr.mxu0 0.0
        %497 = vmatpush2.msra.mxu0 0.0
        %498 = vmatprep.subr.mxu0 0.0
        %499 = vmatpush2.msra.mxu0 0.0
        %500 = vmatprep.subr.mxu0 0.0
        %501 = vmatpush2.msra.mxu0 0.0
        %502 = vmatprep.subr.mxu0 0.0
        %503 = vmatpush2.msra.mxu0 0.0
        %504 = vmatprep.subr.mxu0 0.0
        %505 = vmatpush2.msra.mxu0 0.0
        %506 = vmatprep.subr.mxu0 0.0
        %507 = vmatpush2.msra.mxu0 0.0
        %508 = vmatprep.subr.mxu0 0.0
        %509 = vmatpush2.msra.mxu0 0.0
        %510 = vmatprep.subr.mxu0 0.0
        %511 = vmatpush2.msra.mxu0 0.0
        %512 = vmatprep.mubr.f32.mxu0 0.0
        %513 = vmatmul.mubr.f32.gmra.mxu0 %v439
        %v514 = vpop.f32.mrf.mxu0
        %v515 = vadd.f32 0.0, %v514
        %v516 = vpop.f32.mrf.mxu0
        %v517 = vadd.f32 0.0, %v516
        %518 = vdwg.mxu0
        %519 = vmatprep.subr.mxu0 0.0
        %520 = vmatpush1.msra.mxu0 0.0
        %521 = vmatprep.subr.mxu0 0.0
        %522 = vmatpush1.msra.mxu0 0.0
        %523 = vmatprep.subr.mxu0 0.0
        %524 = vmatpush1.msra.mxu0 0.0
        %525 = vmatprep.subr.mxu0 0.0
        %526 = vmatpush1.msra.mxu0 0.0
        %527 = vmatprep.subr.mxu0 0.0
        %528 = vmatpush1.msra.mxu0 0.0
        %529 = vmatprep.subr.mxu0 0.0
        %530 = vmatpush1.msra.mxu0 0.0
        %531 = vmatprep.subr.mxu0 0.0
        %532 = vmatpush1.msra.mxu0 0.0
        %533 = vmatprep.subr.mxu0 0.0
        %534 = vmatpush1.msra.mxu0 0.0
        %535 = vmatprep.subr.mxu0 0.0
        %536 = vmatpush1.msra.mxu0 0.0
        %537 = vmatprep.subr.mxu0 0.0
        %538 = vmatpush1.msra.mxu0 0.0
        %539 = vmatprep.subr.mxu0 0.0
        %540 = vmatpush1.msra.mxu0 0.0
        %541 = vmatprep.subr.mxu0 0.0
        %542 = vmatpush1.msra.mxu0 0.0
        %543 = vmatprep.subr.mxu0 0.0
        %544 = vmatpush1.msra.mxu0 0.0
        %545 = vmatprep.subr.mxu0 0.0
        %546 = vmatpush1.msra.mxu0 0.0
        %547 = vmatprep.subr.mxu0 0.0
        %548 = vmatpush1.msra.mxu0 0.0
        %549 = vmatprep.subr.mxu0 0.0
        %550 = vmatpush1.msra.mxu0 %v446
        %551 = vmatprep.subr.mxu0 0.0
        %552 = vmatpush2.msra.mxu0 0.0
        %553 = vmatprep.subr.mxu0 0.0
        %554 = vmatpush2.msra.mxu0 0.0
        %555 = vmatprep.subr.mxu0 0.0
        %556 = vmatpush2.msra.mxu0 0.0
        %557 = vmatprep.subr.mxu0 0.0
        %558 = vmatpush2.msra.mxu0 0.0
        %559 = vmatprep.subr.mxu0 0.0
        %560 = vmatpush2.msra.mxu0 0.0
        %561 = vmatprep.subr.mxu0 0.0
        %562 = vmatpush2.msra.mxu0 0.0
        %563 = vmatprep.subr.mxu0 0.0
        %564 = vmatpush2.msra.mxu0 0.0
        %565 = vmatprep.subr.mxu0 0.0
        %566 = vmatpush2.msra.mxu0 0.0
        %567 = vmatprep.subr.mxu0 0.0
        %568 = vmatpush2.msra.mxu0 0.0
        %569 = vmatprep.subr.mxu0 0.0
        %570 = vmatpush2.msra.mxu0 0.0
        %571 = vmatprep.subr.mxu0 0.0
        %572 = vmatpush2.msra.mxu0 0.0
        %573 = vmatprep.subr.mxu0 0.0
        %574 = vmatpush2.msra.mxu0 0.0
        %575 = vmatprep.subr.mxu0 0.0
        %576 = vmatpush2.msra.mxu0 0.0
        %577 = vmatprep.subr.mxu0 0.0
        %578 = vmatpush2.msra.mxu0 0.0
        %579 = vmatprep.subr.mxu0 0.0
        %580 = vmatpush2.msra.mxu0 0.0
        %581 = vmatprep.subr.mxu0 0.0
        %582 = vmatpush2.msra.mxu0 0.0
        %583 = vmatprep.mubr.f32.mxu0 0.0
        %584 = vmatmul.mubr.f32.gmra.mxu0 %v439
        %v585 = vpop.f32.mrf.mxu0
        %v586 = vadd.f32 0.0, %v585
        %v587 = vpop.f32.mrf.mxu0
        %588 = vdwg.mxu0
        %v590 = vsel %vm437, %v406, 0
        %v592 = vsel %vm441, %v407, 0
        %v594 = vsel %vm441, %v427, 0
        %v596 = vsel %vm441, %v408, 0
        %598 = vmatprep.subr.mxu0 0.0
        %599 = vmatpush1.msra.mxu0 0.0
        %600 = vmatprep.subr.mxu0 0.0
        %601 = vmatpush1.msra.mxu0 0.0
        %602 = vmatprep.subr.mxu0 0.0
        %603 = vmatpush1.msra.mxu0 0.0
        %604 = vmatprep.subr.mxu0 0.0
        %605 = vmatpush1.msra.mxu0 0.0
        %606 = vmatprep.subr.mxu0 0.0
        %607 = vmatpush1.msra.mxu0 0.0
        %608 = vmatprep.subr.mxu0 0.0
        %609 = vmatpush1.msra.mxu0 0.0
        %610 = vmatprep.subr.mxu0 0.0
        %611 = vmatpush1.msra.mxu0 0.0
        %612 = vmatprep.subr.mxu0 0.0
        %613 = vmatpush1.msra.mxu0 0.0
        %614 = vmatprep.subr.mxu0 0.0
        %615 = vmatpush1.msra.mxu0 0.0
        %616 = vmatprep.subr.mxu0 0.0
        %617 = vmatpush1.msra.mxu0 0.0
        %618 = vmatprep.subr.mxu0 0.0
        %619 = vmatpush1.msra.mxu0 0.0
        %620 = vmatprep.subr.mxu0 0.0
        %621 = vmatpush1.msra.mxu0 0.0
        %622 = vmatprep.subr.mxu0 0.0
        %623 = vmatpush1.msra.mxu0 0.0
        %624 = vmatprep.subr.mxu0 0.0
        %625 = vmatpush1.msra.mxu0 0.0
        %626 = vmatprep.subr.mxu0 0.0
        %627 = vmatpush1.msra.mxu0 0.0
        %628 = vmatprep.subr.mxu0 %v594
        %629 = vmatpush1.msra.mxu0 %v592
        %630 = vmatprep.subr.mxu0 0.0
        %631 = vmatpush2.msra.mxu0 0.0
        %632 = vmatprep.subr.mxu0 0.0
        %633 = vmatpush2.msra.mxu0 0.0
        %634 = vmatprep.subr.mxu0 0.0
        %635 = vmatpush2.msra.mxu0 0.0
        %636 = vmatprep.subr.mxu0 0.0
        %637 = vmatpush2.msra.mxu0 0.0
        %638 = vmatprep.subr.mxu0 0.0
        %639 = vmatpush2.msra.mxu0 0.0
        %640 = vmatprep.subr.mxu0 0.0
        %641 = vmatpush2.msra.mxu0 0.0
        %642 = vmatprep.subr.mxu0 0.0
        %643 = vmatpush2.msra.mxu0 0.0
        %644 = vmatprep.subr.mxu0 0.0
        %645 = vmatpush2.msra.mxu0 0.0
        %646 = vmatprep.subr.mxu0 0.0
        %647 = vmatpush2.msra.mxu0 0.0
        %648 = vmatprep.subr.mxu0 0.0
        %649 = vmatpush2.msra.mxu0 0.0
        %650 = vmatprep.subr.mxu0 0.0
        %651 = vmatpush2.msra.mxu0 0.0
        %652 = vmatprep.subr.mxu0 0.0
        %653 = vmatpush2.msra.mxu0 0.0
        %654 = vmatprep.subr.mxu0 0.0
        %655 = vmatpush2.msra.mxu0 0.0
        %656 = vmatprep.subr.mxu0 0.0
        %657 = vmatpush2.msra.mxu0 0.0
        %658 = vmatprep.subr.mxu0 0.0
        %659 = vmatpush2.msra.mxu0 0.0
        %660 = vmatprep.subr.mxu0 0.0
        %661 = vmatpush2.msra.mxu0 0.0
        %662 = vmatprep.mubr.f32.mxu0 0.0
        %663 = vmatmul.mubr.f32.gmra.mxu0 %v590
        %v664 = vpop.f32.mrf.mxu0
        %v665 = vadd.f32 %v515, %v664
        %v666 = vpop.f32.mrf.mxu0
        %v667 = vadd.f32 %v517, %v666
        %668 = vdwg.mxu0
        %669 = vmatprep.subr.mxu0 0.0
        %670 = vmatpush1.msra.mxu0 0.0
        %671 = vmatprep.subr.mxu0 0.0
        %672 = vmatpush1.msra.mxu0 0.0
        %673 = vmatprep.subr.mxu0 0.0
        %674 = vmatpush1.msra.mxu0 0.0
        %675 = vmatprep.subr.mxu0 0.0
        %676 = vmatpush1.msra.mxu0 0.0
        %677 = vmatprep.subr.mxu0 0.0
        %678 = vmatpush1.msra.mxu0 0.0
        %679 = vmatprep.subr.mxu0 0.0
        %680 = vmatpush1.msra.mxu0 0.0
        %681 = vmatprep.subr.mxu0 0.0
        %682 = vmatpush1.msra.mxu0 0.0
        %683 = vmatprep.subr.mxu0 0.0
        %684 = vmatpush1.msra.mxu0 0.0
        %685 = vmatprep.subr.mxu0 0.0
        %686 = vmatpush1.msra.mxu0 0.0
        %687 = vmatprep.subr.mxu0 0.0
        %688 = vmatpush1.msra.mxu0 0.0
        %689 = vmatprep.subr.mxu0 0.0
        %690 = vmatpush1.msra.mxu0 0.0
        %691 = vmatprep.subr.mxu0 0.0
        %692 = vmatpush1.msra.mxu0 0.0
        %693 = vmatprep.subr.mxu0 0.0
        %694 = vmatpush1.msra.mxu0 0.0
        %695 = vmatprep.subr.mxu0 0.0
        %696 = vmatpush1.msra.mxu0 0.0
        %697 = vmatprep.subr.mxu0 0.0
        %698 = vmatpush1.msra.mxu0 0.0
        %699 = vmatprep.subr.mxu0 0.0
        %700 = vmatpush1.msra.mxu0 %v596
        %701 = vmatprep.subr.mxu0 0.0
        %702 = vmatpush2.msra.mxu0 0.0
        %703 = vmatprep.subr.mxu0 0.0
        %704 = vmatpush2.msra.mxu0 0.0
        %705 = vmatprep.subr.mxu0 0.0
        %706 = vmatpush2.msra.mxu0 0.0
        %707 = vmatprep.subr.mxu0 0.0
        %708 = vmatpush2.msra.mxu0 0.0
        %709 = vmatprep.subr.mxu0 0.0
        %710 = vmatpush2.msra.mxu0 0.0
        %711 = vmatprep.subr.mxu0 0.0
        %712 = vmatpush2.msra.mxu0 0.0
        %713 = vmatprep.subr.mxu0 0.0
        %714 = vmatpush2.msra.mxu0 0.0
        %715 = vmatprep.subr.mxu0 0.0
        %716 = vmatpush2.msra.mxu0 0.0
        %717 = vmatprep.subr.mxu0 0.0
        %718 = vmatpush2.msra.mxu0 0.0
        %719 = vmatprep.subr.mxu0 0.0
        %720 = vmatpush2.msra.mxu0 0.0
        %721 = vmatprep.subr.mxu0 0.0
        %722 = vmatpush2.msra.mxu0 0.0
        %723 = vmatprep.subr.mxu0 0.0
        %724 = vmatpush2.msra.mxu0 0.0
        %725 = vmatprep.subr.mxu0 0.0
        %726 = vmatpush2.msra.mxu0 0.0
        %727 = vmatprep.subr.mxu0 0.0
        %728 = vmatpush2.msra.mxu0 0.0
        %729 = vmatprep.subr.mxu0 0.0
        %730 = vmatpush2.msra.mxu0 0.0
        %731 = vmatprep.subr.mxu0 0.0
        %732 = vmatpush2.msra.mxu0 0.0
        %733 = vmatprep.mubr.f32.mxu0 0.0
        %734 = vmatmul.mubr.f32.gmra.mxu0 %v590
        %v735 = vpop.f32.mrf.mxu0
        %v736 = vadd.f32 %v586, %v735
        %v737 = vpop.f32.mrf.mxu0
        %738 = vdwg.mxu0
        %s739 = scalar_lea.vmem %s219, 16
        %v740 = vld [vmem:[%s739] sm:$0xff]
        %v741 = vmul.f32 %v383, %v740
        %v742 = vadd.f32 %v741, 0.0
        %s743 = scalar_lea.vmem %s219, 88
        %v744 = vld [vmem:[%s743] sm:$0xff]
        %v745 = vmul.f32 %v390, %v744
        %v746 = vadd.f32 %v742, %v745
        %s747 = scalar_lea.vmem %s219, 160
        %v748 = vld [vmem:[%s747] sm:$0xff]
        %v749 = vmul.f32 %v397, %v748
        %v750 = vadd.f32 %v746, %v749
        %s751 = scalar_lea.vmem %s219, 232
        %v752 = vld [vmem:[%s751] sm:$0xff]
        %v753 = vmul.f32 %v404, %v752
        %v754 = vadd.f32 %v750, %v753
        %v755 = vld [vmem:[#allocation2] sm:$0xff]
        %v756 = vld [vmem:[#allocation2 + $0x8] sm:$0xf]
        %v759 = vcombine.high %v755, %v755
        %760 = vrot.lane.b32.xlu0 %v755, 126
        %v761 = vpop.permute.xlu0 %760
        %762 = vrot.lane.b32.xlu0 %v759, 126
        %v763 = vpop.permute.xlu0 %762
        %764 = vrot.lane.b32.xlu0 %v756, 126
        %v765 = vpop.permute.xlu0 %764
        %vm766 = vcmask 1031168
        %v767 = vsel %vm766, %v761, %v763
        %v768 = vsel %vm766, %v763, %v765
        %v770 = vsel %vm437, %v754, 0
        %v772 = vsel %vm441, %v767, 0
        %v774 = vsel %vm441, %v768, 0
        %v776 = vsel %vm441, %v765, 0
        %778 = vmatprep.subr.mxu0 0.0
        %779 = vmatpush1.msra.mxu0 0.0
        %780 = vmatprep.subr.mxu0 0.0
        %781 = vmatpush1.msra.mxu0 0.0
        %782 = vmatprep.subr.mxu0 0.0
        %783 = vmatpush1.msra.mxu0 0.0
        %784 = vmatprep.subr.mxu0 0.0
        %785 = vmatpush1.msra.mxu0 0.0
        %786 = vmatprep.subr.mxu0 0.0
        %787 = vmatpush1.msra.mxu0 0.0
        %788 = vmatprep.subr.mxu0 0.0
        %789 = vmatpush1.msra.mxu0 0.0
        %790 = vmatprep.subr.mxu0 0.0
        %791 = vmatpush1.msra.mxu0 0.0
        %792 = vmatprep.subr.mxu0 0.0
        %793 = vmatpush1.msra.mxu0 0.0
        %794 = vmatprep.subr.mxu0 0.0
        %795 = vmatpush1.msra.mxu0 0.0
        %796 = vmatprep.subr.mxu0 0.0
        %797 = vmatpush1.msra.mxu0 0.0
        %798 = vmatprep.subr.mxu0 0.0
        %799 = vmatpush1.msra.mxu0 0.0
        %800 = vmatprep.subr.mxu0 0.0
        %801 = vmatpush1.msra.mxu0 0.0
        %802 = vmatprep.subr.mxu0 0.0
        %803 = vmatpush1.msra.mxu0 0.0
        %804 = vmatprep.subr.mxu0 0.0
        %805 = vmatpush1.msra.mxu0 0.0
        %806 = vmatprep.subr.mxu0 0.0
        %807 = vmatpush1.msra.mxu0 0.0
        %808 = vmatprep.subr.mxu0 %v774
        %809 = vmatpush1.msra.mxu0 %v772
        %810 = vmatprep.subr.mxu0 0.0
        %811 = vmatpush2.msra.mxu0 0.0
        %812 = vmatprep.subr.mxu0 0.0
        %813 = vmatpush2.msra.mxu0 0.0
        %814 = vmatprep.subr.mxu0 0.0
        %815 = vmatpush2.msra.mxu0 0.0
        %816 = vmatprep.subr.mxu0 0.0
        %817 = vmatpush2.msra.mxu0 0.0
        %818 = vmatprep.subr.mxu0 0.0
        %819 = vmatpush2.msra.mxu0 0.0
        %820 = vmatprep.subr.mxu0 0.0
        %821 = vmatpush2.msra.mxu0 0.0
        %822 = vmatprep.subr.mxu0 0.0
        %823 = vmatpush2.msra.mxu0 0.0
        %824 = vmatprep.subr.mxu0 0.0
        %825 = vmatpush2.msra.mxu0 0.0
        %826 = vmatprep.subr.mxu0 0.0
        %827 = vmatpush2.msra.mxu0 0.0
        %828 = vmatprep.subr.mxu0 0.0
        %829 = vmatpush2.msra.mxu0 0.0
        %830 = vmatprep.subr.mxu0 0.0
        %831 = vmatpush2.msra.mxu0 0.0
        %832 = vmatprep.subr.mxu0 0.0
        %833 = vmatpush2.msra.mxu0 0.0
        %834 = vmatprep.subr.mxu0 0.0
        %835 = vmatpush2.msra.mxu0 0.0
        %836 = vmatprep.subr.mxu0 0.0
        %837 = vmatpush2.msra.mxu0 0.0
        %838 = vmatprep.subr.mxu0 0.0
        %839 = vmatpush2.msra.mxu0 0.0
        %840 = vmatprep.subr.mxu0 0.0
        %841 = vmatpush2.msra.mxu0 0.0
        %842 = vmatprep.mubr.f32.mxu0 0.0
        %843 = vmatmul.mubr.f32.gmra.mxu0 %v770
        %v844 = vpop.f32.mrf.mxu0
        %v845 = vadd.f32 0.0, %v844
        %v846 = vpop.f32.mrf.mxu0
        %v847 = vadd.f32 0.0, %v846
        %848 = vdwg.mxu0
        %849 = vmatprep.subr.mxu0 0.0
        %850 = vmatpush1.msra.mxu0 0.0
        %851 = vmatprep.subr.mxu0 0.0
        %852 = vmatpush1.msra.mxu0 0.0
        %853 = vmatprep.subr.mxu0 0.0
        %854 = vmatpush1.msra.mxu0 0.0
        %855 = vmatprep.subr.mxu0 0.0
        %856 = vmatpush1.msra.mxu0 0.0
        %857 = vmatprep.subr.mxu0 0.0
        %858 = vmatpush1.msra.mxu0 0.0
        %859 = vmatprep.subr.mxu0 0.0
        %860 = vmatpush1.msra.mxu0 0.0
        %861 = vmatprep.subr.mxu0 0.0
        %862 = vmatpush1.msra.mxu0 0.0
        %863 = vmatprep.subr.mxu0 0.0
        %864 = vmatpush1.msra.mxu0 0.0
        %865 = vmatprep.subr.mxu0 0.0
        %866 = vmatpush1.msra.mxu0 0.0
        %867 = vmatprep.subr.mxu0 0.0
        %868 = vmatpush1.msra.mxu0 0.0
        %869 = vmatprep.subr.mxu0 0.0
        %870 = vmatpush1.msra.mxu0 0.0
        %871 = vmatprep.subr.mxu0 0.0
        %872 = vmatpush1.msra.mxu0 0.0
        %873 = vmatprep.subr.mxu0 0.0
        %874 = vmatpush1.msra.mxu0 0.0
        %875 = vmatprep.subr.mxu0 0.0
        %876 = vmatpush1.msra.mxu0 0.0
        %877 = vmatprep.subr.mxu0 0.0
        %878 = vmatpush1.msra.mxu0 0.0
        %879 = vmatprep.subr.mxu0 0.0
        %880 = vmatpush1.msra.mxu0 %v776
        %881 = vmatprep.subr.mxu0 0.0
        %882 = vmatpush2.msra.mxu0 0.0
        %883 = vmatprep.subr.mxu0 0.0
        %884 = vmatpush2.msra.mxu0 0.0
        %885 = vmatprep.subr.mxu0 0.0
        %886 = vmatpush2.msra.mxu0 0.0
        %887 = vmatprep.subr.mxu0 0.0
        %888 = vmatpush2.msra.mxu0 0.0
        %889 = vmatprep.subr.mxu0 0.0
        %890 = vmatpush2.msra.mxu0 0.0
        %891 = vmatprep.subr.mxu0 0.0
        %892 = vmatpush2.msra.mxu0 0.0
        %893 = vmatprep.subr.mxu0 0.0
        %894 = vmatpush2.msra.mxu0 0.0
        %895 = vmatprep.subr.mxu0 0.0
        %896 = vmatpush2.msra.mxu0 0.0
        %897 = vmatprep.subr.mxu0 0.0
        %898 = vmatpush2.msra.mxu0 0.0
        %899 = vmatprep.subr.mxu0 0.0
        %900 = vmatpush2.msra.mxu0 0.0
        %901 = vmatprep.subr.mxu0 0.0
        %902 = vmatpush2.msra.mxu0 0.0
        %903 = vmatprep.subr.mxu0 0.0
        %904 = vmatpush2.msra.mxu0 0.0
        %905 = vmatprep.subr.mxu0 0.0
        %906 = vmatpush2.msra.mxu0 0.0
        %907 = vmatprep.subr.mxu0 0.0
        %908 = vmatpush2.msra.mxu0 0.0
        %909 = vmatprep.subr.mxu0 0.0
        %910 = vmatpush2.msra.mxu0 0.0
        %911 = vmatprep.subr.mxu0 0.0
        %912 = vmatpush2.msra.mxu0 0.0
        %913 = vmatprep.mubr.f32.mxu0 0.0
        %914 = vmatmul.mubr.f32.gmra.mxu0 %v770
        %v915 = vpop.f32.mrf.mxu0
        %v916 = vadd.f32 0.0, %v915
        %v917 = vpop.f32.mrf.mxu0
        %918 = vdwg.mxu0
        %v919 = vadd.f32 %v665, %v845
        %v920 = vadd.f32 %v667, %v847
        %v921 = vadd.f32 %v736, %v916
        %s922 = scalar_lea.vmem %s219, 24
        %v923 = vld [vmem:[%s922] sm:$0xff]
        %v924 = vmul.f32 %v383, %v923
        %v925 = vadd.f32 %v924, 0.0
        %s926 = scalar_lea.vmem %s219, 96
        %v927 = vld [vmem:[%s926] sm:$0xff]
        %v928 = vmul.f32 %v390, %v927
        %v929 = vadd.f32 %v925, %v928
        %s930 = scalar_lea.vmem %s219, 168
        %v931 = vld [vmem:[%s930] sm:$0xff]
        %v932 = vmul.f32 %v397, %v931
        %v933 = vadd.f32 %v929, %v932
        %s934 = scalar_lea.vmem %s219, 240
        %v935 = vld [vmem:[%s934] sm:$0xff]
        %v936 = vmul.f32 %v404, %v935
        %v937 = vadd.f32 %v933, %v936
        %v938 = vld [vmem:[#allocation2] sm:$0xff]
        %v939 = vld [vmem:[#allocation2 + $0x8] sm:$0xf]
        %v942 = vcombine.high %v938, %v938
        %943 = vrot.lane.b32.xlu0 %v938, 110
        %v944 = vpop.permute.xlu0 %943
        %945 = vrot.lane.b32.xlu0 %v942, 110
        %v946 = vpop.permute.xlu0 %945
        %947 = vrot.lane.b32.xlu0 %v939, 110
        %v948 = vpop.permute.xlu0 %947
        %vm949 = vcmask 900096
        %v950 = vsel %vm949, %v944, %v946
        %v951 = vsel %vm949, %v946, %v948
        %v953 = vsel %vm437, %v937, 0
        %v955 = vsel %vm441, %v950, 0
        %v957 = vsel %vm441, %v951, 0
        %v959 = vsel %vm441, %v948, 0
        %961 = vmatprep.subr.mxu0 0.0
        %962 = vmatpush1.msra.mxu0 0.0
        %963 = vmatprep.subr.mxu0 0.0
        %964 = vmatpush1.msra.mxu0 0.0
        %965 = vmatprep.subr.mxu0 0.0
        %966 = vmatpush1.msra.mxu0 0.0
        %967 = vmatprep.subr.mxu0 0.0
        %968 = vmatpush1.msra.mxu0 0.0
        %969 = vmatprep.subr.mxu0 0.0
        %970 = vmatpush1.msra.mxu0 0.0
        %971 = vmatprep.subr.mxu0 0.0
        %972 = vmatpush1.msra.mxu0 0.0
        %973 = vmatprep.subr.mxu0 0.0
        %974 = vmatpush1.msra.mxu0 0.0
        %975 = vmatprep.subr.mxu0 0.0
        %976 = vmatpush1.msra.mxu0 0.0
        %977 = vmatprep.subr.mxu0 0.0
        %978 = vmatpush1.msra.mxu0 0.0
        %979 = vmatprep.subr.mxu0 0.0
        %980 = vmatpush1.msra.mxu0 0.0
        %981 = vmatprep.subr.mxu0 0.0
        %982 = vmatpush1.msra.mxu0 0.0
        %983 = vmatprep.subr.mxu0 0.0
        %984 = vmatpush1.msra.mxu0 0.0
        %985 = vmatprep.subr.mxu0 0.0
        %986 = vmatpush1.msra.mxu0 0.0
        %987 = vmatprep.subr.mxu0 0.0
        %988 = vmatpush1.msra.mxu0 0.0
        %989 = vmatprep.subr.mxu0 0.0
        %990 = vmatpush1.msra.mxu0 0.0
        %991 = vmatprep.subr.mxu0 %v957
        %992 = vmatpush1.msra.mxu0 %v955
        %993 = vmatprep.subr.mxu0 0.0
        %994 = vmatpush2.msra.mxu0 0.0
        %995 = vmatprep.subr.mxu0 0.0
        %996 = vmatpush2.msra.mxu0 0.0
        %997 = vmatprep.subr.mxu0 0.0
        %998 = vmatpush2.msra.mxu0 0.0
        %999 = vmatprep.subr.mxu0 0.0
        %1000 = vmatpush2.msra.mxu0 0.0
        %1001 = vmatprep.subr.mxu0 0.0
        %1002 = vmatpush2.msra.mxu0 0.0
        %1003 = vmatprep.subr.mxu0 0.0
        %1004 = vmatpush2.msra.mxu0 0.0
        %1005 = vmatprep.subr.mxu0 0.0
        %1006 = vmatpush2.msra.mxu0 0.0
        %1007 = vmatprep.subr.mxu0 0.0
        %1008 = vmatpush2.msra.mxu0 0.0
        %1009 = vmatprep.subr.mxu0 0.0
        %1010 = vmatpush2.msra.mxu0 0.0
        %1011 = vmatprep.subr.mxu0 0.0
        %1012 = vmatpush2.msra.mxu0 0.0
        %1013 = vmatprep.subr.mxu0 0.0
        %1014 = vmatpush2.msra.mxu0 0.0
        %1015 = vmatprep.subr.mxu0 0.0
        %1016 = vmatpush2.msra.mxu0 0.0
        %1017 = vmatprep.subr.mxu0 0.0
        %1018 = vmatpush2.msra.mxu0 0.0
        %1019 = vmatprep.subr.mxu0 0.0
        %1020 = vmatpush2.msra.mxu0 0.0
        %1021 = vmatprep.subr.mxu0 0.0
        %1022 = vmatpush2.msra.mxu0 0.0
        %1023 = vmatprep.subr.mxu0 0.0
        %1024 = vmatpush2.msra.mxu0 0.0
        %1025 = vmatprep.mubr.f32.mxu0 0.0
        %1026 = vmatmul.mubr.f32.gmra.mxu0 %v953
        %v1027 = vpop.f32.mrf.mxu0
        %v1028 = vadd.f32 0.0, %v1027
        %v1029 = vpop.f32.mrf.mxu0
        %v1030 = vadd.f32 0.0, %v1029
        %1031 = vdwg.mxu0
        %1032 = vmatprep.subr.mxu0 0.0
        %1033 = vmatpush1.msra.mxu0 0.0
        %1034 = vmatprep.subr.mxu0 0.0
        %1035 = vmatpush1.msra.mxu0 0.0
        %1036 = vmatprep.subr.mxu0 0.0
        %1037 = vmatpush1.msra.mxu0 0.0
        %1038 = vmatprep.subr.mxu0 0.0
        %1039 = vmatpush1.msra.mxu0 0.0
        %1040 = vmatprep.subr.mxu0 0.0
        %1041 = vmatpush1.msra.mxu0 0.0
        %1042 = vmatprep.subr.mxu0 0.0
        %1043 = vmatpush1.msra.mxu0 0.0
        %1044 = vmatprep.subr.mxu0 0.0
        %1045 = vmatpush1.msra.mxu0 0.0
        %1046 = vmatprep.subr.mxu0 0.0
        %1047 = vmatpush1.msra.mxu0 0.0
        %1048 = vmatprep.subr.mxu0 0.0
        %1049 = vmatpush1.msra.mxu0 0.0
        %1050 = vmatprep.subr.mxu0 0.0
        %1051 = vmatpush1.msra.mxu0 0.0
        %1052 = vmatprep.subr.mxu0 0.0
        %1053 = vmatpush1.msra.mxu0 0.0
        %1054 = vmatprep.subr.mxu0 0.0
        %1055 = vmatpush1.msra.mxu0 0.0
        %1056 = vmatprep.subr.mxu0 0.0
        %1057 = vmatpush1.msra.mxu0 0.0
        %1058 = vmatprep.subr.mxu0 0.0
        %1059 = vmatpush1.msra.mxu0 0.0
        %1060 = vmatprep.subr.mxu0 0.0
        %1061 = vmatpush1.msra.mxu0 0.0
        %1062 = vmatprep.subr.mxu0 0.0
        %1063 = vmatpush1.msra.mxu0 %v959
        %1064 = vmatprep.subr.mxu0 0.0
        %1065 = vmatpush2.msra.mxu0 0.0
        %1066 = vmatprep.subr.mxu0 0.0
        %1067 = vmatpush2.msra.mxu0 0.0
        %1068 = vmatprep.subr.mxu0 0.0
        %1069 = vmatpush2.msra.mxu0 0.0
        %1070 = vmatprep.subr.mxu0 0.0
        %1071 = vmatpush2.msra.mxu0 0.0
        %1072 = vmatprep.subr.mxu0 0.0
        %1073 = vmatpush2.msra.mxu0 0.0
        %1074 = vmatprep.subr.mxu0 0.0
        %1075 = vmatpush2.msra.mxu0 0.0
        %1076 = vmatprep.subr.mxu0 0.0
        %1077 = vmatpush2.msra.mxu0 0.0
        %1078 = vmatprep.subr.mxu0 0.0
        %1079 = vmatpush2.msra.mxu0 0.0
        %1080 = vmatprep.subr.mxu0 0.0
        %1081 = vmatpush2.msra.mxu0 0.0
        %1082 = vmatprep.subr.mxu0 0.0
        %1083 = vmatpush2.msra.mxu0 0.0
        %1084 = vmatprep.subr.mxu0 0.0
        %1085 = vmatpush2.msra.mxu0 0.0
        %1086 = vmatprep.subr.mxu0 0.0
        %1087 = vmatpush2.msra.mxu0 0.0
        %1088 = vmatprep.subr.mxu0 0.0
        %1089 = vmatpush2.msra.mxu0 0.0
        %1090 = vmatprep.subr.mxu0 0.0
        %1091 = vmatpush2.msra.mxu0 0.0
        %1092 = vmatprep.subr.mxu0 0.0
        %1093 = vmatpush2.msra.mxu0 0.0
        %1094 = vmatprep.subr.mxu0 0.0
        %1095 = vmatpush2.msra.mxu0 0.0
        %1096 = vmatprep.mubr.f32.mxu0 0.0
        %1097 = vmatmul.mubr.f32.gmra.mxu0 %v953
        %v1098 = vpop.f32.mrf.mxu0
        %v1099 = vadd.f32 0.0, %v1098
        %v1100 = vpop.f32.mrf.mxu0
        %1101 = vdwg.mxu0
        %v1102 = vadd.f32 %v919, %v1028
        %v1103 = vadd.f32 %v920, %v1030
        %v1104 = vadd.f32 %v921, %v1099
        %s1105 = scalar_lea.vmem %s219, 32
        %v1106 = vld [vmem:[%s1105] sm:$0xff]
        %v1107 = vmul.f32 %v383, %v1106
        %v1108 = vadd.f32 %v1107, 0.0
        %s1109 = scalar_lea.vmem %s219, 104
        %v1110 = vld [vmem:[%s1109] sm:$0xff]
        %v1111 = vmul.f32 %v390, %v1110
        %v1112 = vadd.f32 %v1108, %v1111
        %s1113 = scalar_lea.vmem %s219, 176
        %v1114 = vld [vmem:[%s1113] sm:$0xff]
        %v1115 = vmul.f32 %v397, %v1114
        %v1116 = vadd.f32 %v1112, %v1115
        %s1117 = scalar_lea.vmem %s219, 248
        %v1118 = vld [vmem:[%s1117] sm:$0xff]
        %v1119 = vmul.f32 %v404, %v1118
        %v1120 = vadd.f32 %v1116, %v1119
        %v1121 = vld [vmem:[#allocation2] sm:$0xff]
        %v1122 = vld [vmem:[#allocation2 + $0x8] sm:$0xf]
        %v1125 = vcombine.high %v1121, %v1121
        %1126 = vrot.lane.b32.xlu0 %v1121, 109
        %v1127 = vpop.permute.xlu0 %1126
        %1128 = vrot.lane.b32.xlu0 %v1125, 109
        %v1129 = vpop.permute.xlu0 %1128
        %1130 = vrot.lane.b32.xlu0 %v1122, 109
        %v1131 = vpop.permute.xlu0 %1130
        %vm1132 = vcmask 891904
        %v1133 = vsel %vm1132, %v1127, %v1129
        %v1134 = vsel %vm1132, %v1129, %v1131
        %v1136 = vsel %vm437, %v1120, 0
        %v1138 = vsel %vm441, %v1133, 0
        %v1140 = vsel %vm441, %v1134, 0
        %v1142 = vsel %vm441, %v1131, 0
        %1144 = vmatprep.subr.mxu0 0.0
        %1145 = vmatpush1.msra.mxu0 0.0
        %1146 = vmatprep.subr.mxu0 0.0
        %1147 = vmatpush1.msra.mxu0 0.0
        %1148 = vmatprep.subr.mxu0 0.0
        %1149 = vmatpush1.msra.mxu0 0.0
        %1150 = vmatprep.subr.mxu0 0.0
        %1151 = vmatpush1.msra.mxu0 0.0
        %1152 = vmatprep.subr.mxu0 0.0
        %1153 = vmatpush1.msra.mxu0 0.0
        %1154 = vmatprep.subr.mxu0 0.0
        %1155 = vmatpush1.msra.mxu0 0.0
        %1156 = vmatprep.subr.mxu0 0.0
        %1157 = vmatpush1.msra.mxu0 0.0
        %1158 = vmatprep.subr.mxu0 0.0
        %1159 = vmatpush1.msra.mxu0 0.0
        %1160 = vmatprep.subr.mxu0 0.0
        %1161 = vmatpush1.msra.mxu0 0.0
        %1162 = vmatprep.subr.mxu0 0.0
        %1163 = vmatpush1.msra.mxu0 0.0
        %1164 = vmatprep.subr.mxu0 0.0
        %1165 = vmatpush1.msra.mxu0 0.0
        %1166 = vmatprep.subr.mxu0 0.0
        %1167 = vmatpush1.msra.mxu0 0.0
        %1168 = vmatprep.subr.mxu0 0.0
        %1169 = vmatpush1.msra.mxu0 0.0
        %1170 = vmatprep.subr.mxu0 0.0
        %1171 = vmatpush1.msra.mxu0 0.0
        %1172 = vmatprep.subr.mxu0 0.0
        %1173 = vmatpush1.msra.mxu0 0.0
        %1174 = vmatprep.subr.mxu0 %v1140
        %1175 = vmatpush1.msra.mxu0 %v1138
        %1176 = vmatprep.subr.mxu0 0.0
        %1177 = vmatpush2.msra.mxu0 0.0
        %1178 = vmatprep.subr.mxu0 0.0
        %1179 = vmatpush2.msra.mxu0 0.0
        %1180 = vmatprep.subr.mxu0 0.0
        %1181 = vmatpush2.msra.mxu0 0.0
        %1182 = vmatprep.subr.mxu0 0.0
        %1183 = vmatpush2.msra.mxu0 0.0
        %1184 = vmatprep.subr.mxu0 0.0
        %1185 = vmatpush2.msra.mxu0 0.0
        %1186 = vmatprep.subr.mxu0 0.0
        %1187 = vmatpush2.msra.mxu0 0.0
        %1188 = vmatprep.subr.mxu0 0.0
        %1189 = vmatpush2.msra.mxu0 0.0
        %1190 = vmatprep.subr.mxu0 0.0
        %1191 = vmatpush2.msra.mxu0 0.0
        %1192 = vmatprep.subr.mxu0 0.0
        %1193 = vmatpush2.msra.mxu0 0.0
        %1194 = vmatprep.subr.mxu0 0.0
        %1195 = vmatpush2.msra.mxu0 0.0
        %1196 = vmatprep.subr.mxu0 0.0
        %1197 = vmatpush2.msra.mxu0 0.0
        %1198 = vmatprep.subr.mxu0 0.0
        %1199 = vmatpush2.msra.mxu0 0.0
        %1200 = vmatprep.subr.mxu0 0.0
        %1201 = vmatpush2.msra.mxu0 0.0
        %1202 = vmatprep.subr.mxu0 0.0
        %1203 = vmatpush2.msra.mxu0 0.0
        %1204 = vmatprep.subr.mxu0 0.0
        %1205 = vmatpush2.msra.mxu0 0.0
        %1206 = vmatprep.subr.mxu0 0.0
        %1207 = vmatpush2.msra.mxu0 0.0
        %1208 = vmatprep.mubr.f32.mxu0 0.0
        %1209 = vmatmul.mubr.f32.gmra.mxu0 %v1136
        %v1210 = vpop.f32.mrf.mxu0
        %v1211 = vadd.f32 0.0, %v1210
        %v1212 = vpop.f32.mrf.mxu0
        %v1213 = vadd.f32 0.0, %v1212
        %1214 = vdwg.mxu0
        %1215 = vmatprep.subr.mxu0 0.0
        %1216 = vmatpush1.msra.mxu0 0.0
        %1217 = vmatprep.subr.mxu0 0.0
        %1218 = vmatpush1.msra.mxu0 0.0
        %1219 = vmatprep.subr.mxu0 0.0
        %1220 = vmatpush1.msra.mxu0 0.0
        %1221 = vmatprep.subr.mxu0 0.0
        %1222 = vmatpush1.msra.mxu0 0.0
        %1223 = vmatprep.subr.mxu0 0.0
        %1224 = vmatpush1.msra.mxu0 0.0
        %1225 = vmatprep.subr.mxu0 0.0
        %1226 = vmatpush1.msra.mxu0 0.0
        %1227 = vmatprep.subr.mxu0 0.0
        %1228 = vmatpush1.msra.mxu0 0.0
        %1229 = vmatprep.subr.mxu0 0.0
        %1230 = vmatpush1.msra.mxu0 0.0
        %1231 = vmatprep.subr.mxu0 0.0
        %1232 = vmatpush1.msra.mxu0 0.0
        %1233 = vmatprep.subr.mxu0 0.0
        %1234 = vmatpush1.msra.mxu0 0.0
        %1235 = vmatprep.subr.mxu0 0.0
        %1236 = vmatpush1.msra.mxu0 0.0
        %1237 = vmatprep.subr.mxu0 0.0
        %1238 = vmatpush1.msra.mxu0 0.0
        %1239 = vmatprep.subr.mxu0 0.0
        %1240 = vmatpush1.msra.mxu0 0.0
        %1241 = vmatprep.subr.mxu0 0.0
        %1242 = vmatpush1.msra.mxu0 0.0
        %1243 = vmatprep.subr.mxu0 0.0
        %1244 = vmatpush1.msra.mxu0 0.0
        %1245 = vmatprep.subr.mxu0 0.0
        %1246 = vmatpush1.msra.mxu0 %v1142
        %1247 = vmatprep.subr.mxu0 0.0
        %1248 = vmatpush2.msra.mxu0 0.0
        %1249 = vmatprep.subr.mxu0 0.0
        %1250 = vmatpush2.msra.mxu0 0.0
        %1251 = vmatprep.subr.mxu0 0.0
        %1252 = vmatpush2.msra.mxu0 0.0
        %1253 = vmatprep.subr.mxu0 0.0
        %1254 = vmatpush2.msra.mxu0 0.0
        %1255 = vmatprep.subr.mxu0 0.0
        %1256 = vmatpush2.msra.mxu0 0.0
        %1257 = vmatprep.subr.mxu0 0.0
        %1258 = vmatpush2.msra.mxu0 0.0
        %1259 = vmatprep.subr.mxu0 0.0
        %1260 = vmatpush2.msra.mxu0 0.0
        %1261 = vmatprep.subr.mxu0 0.0
        %1262 = vmatpush2.msra.mxu0 0.0
        %1263 = vmatprep.subr.mxu0 0.0
        %1264 = vmatpush2.msra.mxu0 0.0
        %1265 = vmatprep.subr.mxu0 0.0
        %1266 = vmatpush2.msra.mxu0 0.0
        %1267 = vmatprep.subr.mxu0 0.0
        %1268 = vmatpush2.msra.mxu0 0.0
        %1269 = vmatprep.subr.mxu0 0.0
        %1270 = vmatpush2.msra.mxu0 0.0
        %1271 = vmatprep.subr.mxu0 0.0
        %1272 = vmatpush2.msra.mxu0 0.0
        %1273 = vmatprep.subr.mxu0 0.0
        %1274 = vmatpush2.msra.mxu0 0.0
        %1275 = vmatprep.subr.mxu0 0.0
        %1276 = vmatpush2.msra.mxu0 0.0
        %1277 = vmatprep.subr.mxu0 0.0
        %1278 = vmatpush2.msra.mxu0 0.0
        %1279 = vmatprep.mubr.f32.mxu0 0.0
        %1280 = vmatmul.mubr.f32.gmra.mxu0 %v1136
        %v1281 = vpop.f32.mrf.mxu0
        %v1282 = vadd.f32 0.0, %v1281
        %v1283 = vpop.f32.mrf.mxu0
        %1284 = vdwg.mxu0
        %v1285 = vadd.f32 %v1102, %v1211
        %v1286 = vadd.f32 %v1103, %v1213
        %v1287 = vadd.f32 %v1104, %v1282
        %s1288 = scalar_lea.vmem %s219, 40
        %v1289 = vld [vmem:[%s1288] sm:$0xff]
        %v1290 = vmul.f32 %v383, %v1289
        %v1291 = vadd.f32 %v1290, 0.0
        %s1292 = scalar_lea.vmem %s219, 112
        %v1293 = vld [vmem:[%s1292] sm:$0xff]
        %v1294 = vmul.f32 %v390, %v1293
        %v1295 = vadd.f32 %v1291, %v1294
        %s1296 = scalar_lea.vmem %s219, 184
        %v1297 = vld [vmem:[%s1296] sm:$0xff]
        %v1298 = vmul.f32 %v397, %v1297
        %v1299 = vadd.f32 %v1295, %v1298
        %s1300 = scalar_lea.vmem %s219, 256
        %v1301 = vld [vmem:[%s1300] sm:$0xff]
        %v1302 = vmul.f32 %v404, %v1301
        %v1303 = vadd.f32 %v1299, %v1302
        %v1304 = vld [vmem:[#allocation2] sm:$0xff]
        %v1305 = vld [vmem:[#allocation2 + $0x8] sm:$0xf]
        %v1308 = vcombine.high %v1304, %v1304
        %1309 = vrot.lane.b32.xlu0 %v1304, 108
        %v1310 = vpop.permute.xlu0 %1309
        %1311 = vrot.lane.b32.xlu0 %v1308, 108
        %v1312 = vpop.permute.xlu0 %1311
        %1313 = vrot.lane.b32.xlu0 %v1305, 108
        %v1314 = vpop.permute.xlu0 %1313
        %vm1315 = vcmask 883712
        %v1316 = vsel %vm1315, %v1310, %v1312
        %v1317 = vsel %vm1315, %v1312, %v1314
        %v1319 = vsel %vm437, %v1303, 0
        %v1321 = vsel %vm441, %v1316, 0
        %v1323 = vsel %vm441, %v1317, 0
        %v1325 = vsel %vm441, %v1314, 0
        %1327 = vmatprep.subr.mxu0 0.0
        %1328 = vmatpush1.msra.mxu0 0.0
        %1329 = vmatprep.subr.mxu0 0.0
        %1330 = vmatpush1.msra.mxu0 0.0
        %1331 = vmatprep.subr.mxu0 0.0
        %1332 = vmatpush1.msra.mxu0 0.0
        %1333 = vmatprep.subr.mxu0 0.0
        %1334 = vmatpush1.msra.mxu0 0.0
        %1335 = vmatprep.subr.mxu0 0.0
        %1336 = vmatpush1.msra.mxu0 0.0
        %1337 = vmatprep.subr.mxu0 0.0
        %1338 = vmatpush1.msra.mxu0 0.0
        %1339 = vmatprep.subr.mxu0 0.0
        %1340 = vmatpush1.msra.mxu0 0.0
        %1341 = vmatprep.subr.mxu0 0.0
        %1342 = vmatpush1.msra.mxu0 0.0
        %1343 = vmatprep.subr.mxu0 0.0
        %1344 = vmatpush1.msra.mxu0 0.0
        %1345 = vmatprep.subr.mxu0 0.0
        %1346 = vmatpush1.msra.mxu0 0.0
        %1347 = vmatprep.subr.mxu0 0.0
        %1348 = vmatpush1.msra.mxu0 0.0
        %1349 = vmatprep.subr.mxu0 0.0
        %1350 = vmatpush1.msra.mxu0 0.0
        %1351 = vmatprep.subr.mxu0 0.0
        %1352 = vmatpush1.msra.mxu0 0.0
        %1353 = vmatprep.subr.mxu0 0.0
        %1354 = vmatpush1.msra.mxu0 0.0
        %1355 = vmatprep.subr.mxu0 0.0
        %1356 = vmatpush1.msra.mxu0 0.0
        %1357 = vmatprep.subr.mxu0 %v1323
        %1358 = vmatpush1.msra.mxu0 %v1321
        %1359 = vmatprep.subr.mxu0 0.0
        %1360 = vmatpush2.msra.mxu0 0.0
        %1361 = vmatprep.subr.mxu0 0.0
        %1362 = vmatpush2.msra.mxu0 0.0
        %1363 = vmatprep.subr.mxu0 0.0
        %1364 = vmatpush2.msra.mxu0 0.0
        %1365 = vmatprep.subr.mxu0 0.0
        %1366 = vmatpush2.msra.mxu0 0.0
        %1367 = vmatprep.subr.mxu0 0.0
        %1368 = vmatpush2.msra.mxu0 0.0
        %1369 = vmatprep.subr.mxu0 0.0
        %1370 = vmatpush2.msra.mxu0 0.0
        %1371 = vmatprep.subr.mxu0 0.0
        %1372 = vmatpush2.msra.mxu0 0.0
        %1373 = vmatprep.subr.mxu0 0.0
        %1374 = vmatpush2.msra.mxu0 0.0
        %1375 = vmatprep.subr.mxu0 0.0
        %1376 = vmatpush2.msra.mxu0 0.0
        %1377 = vmatprep.subr.mxu0 0.0
        %1378 = vmatpush2.msra.mxu0 0.0
        %1379 = vmatprep.subr.mxu0 0.0
        %1380 = vmatpush2.msra.mxu0 0.0
        %1381 = vmatprep.subr.mxu0 0.0
        %1382 = vmatpush2.msra.mxu0 0.0
        %1383 = vmatprep.subr.mxu0 0.0
        %1384 = vmatpush2.msra.mxu0 0.0
        %1385 = vmatprep.subr.mxu0 0.0
        %1386 = vmatpush2.msra.mxu0 0.0
        %1387 = vmatprep.subr.mxu0 0.0
        %1388 = vmatpush2.msra.mxu0 0.0
        %1389 = vmatprep.subr.mxu0 0.0
        %1390 = vmatpush2.msra.mxu0 0.0
        %1391 = vmatprep.mubr.f32.mxu0 0.0
        %1392 = vmatmul.mubr.f32.gmra.mxu0 %v1319
        %v1393 = vpop.f32.mrf.mxu0
        %v1394 = vadd.f32 0.0, %v1393
        %v1395 = vpop.f32.mrf.mxu0
        %v1396 = vadd.f32 0.0, %v1395
        %1397 = vdwg.mxu0
        %1398 = vmatprep.subr.mxu0 0.0
        %1399 = vmatpush1.msra.mxu0 0.0
        %1400 = vmatprep.subr.mxu0 0.0
        %1401 = vmatpush1.msra.mxu0 0.0
        %1402 = vmatprep.subr.mxu0 0.0
        %1403 = vmatpush1.msra.mxu0 0.0
        %1404 = vmatprep.subr.mxu0 0.0
        %1405 = vmatpush1.msra.mxu0 0.0
        %1406 = vmatprep.subr.mxu0 0.0
        %1407 = vmatpush1.msra.mxu0 0.0
        %1408 = vmatprep.subr.mxu0 0.0
        %1409 = vmatpush1.msra.mxu0 0.0
        %1410 = vmatprep.subr.mxu0 0.0
        %1411 = vmatpush1.msra.mxu0 0.0
        %1412 = vmatprep.subr.mxu0 0.0
        %1413 = vmatpush1.msra.mxu0 0.0
        %1414 = vmatprep.subr.mxu0 0.0
        %1415 = vmatpush1.msra.mxu0 0.0
        %1416 = vmatprep.subr.mxu0 0.0
        %1417 = vmatpush1.msra.mxu0 0.0
        %1418 = vmatprep.subr.mxu0 0.0
        %1419 = vmatpush1.msra.mxu0 0.0
        %1420 = vmatprep.subr.mxu0 0.0
        %1421 = vmatpush1.msra.mxu0 0.0
        %1422 = vmatprep.subr.mxu0 0.0
        %1423 = vmatpush1.msra.mxu0 0.0
        %1424 = vmatprep.subr.mxu0 0.0
        %1425 = vmatpush1.msra.mxu0 0.0
        %1426 = vmatprep.subr.mxu0 0.0
        %1427 = vmatpush1.msra.mxu0 0.0
        %1428 = vmatprep.subr.mxu0 0.0
        %1429 = vmatpush1.msra.mxu0 %v1325
        %1430 = vmatprep.subr.mxu0 0.0
        %1431 = vmatpush2.msra.mxu0 0.0
        %1432 = vmatprep.subr.mxu0 0.0
        %1433 = vmatpush2.msra.mxu0 0.0
        %1434 = vmatprep.subr.mxu0 0.0
        %1435 = vmatpush2.msra.mxu0 0.0
        %1436 = vmatprep.subr.mxu0 0.0
        %1437 = vmatpush2.msra.mxu0 0.0
        %1438 = vmatprep.subr.mxu0 0.0
        %1439 = vmatpush2.msra.mxu0 0.0
        %1440 = vmatprep.subr.mxu0 0.0
        %1441 = vmatpush2.msra.mxu0 0.0
        %1442 = vmatprep.subr.mxu0 0.0
        %1443 = vmatpush2.msra.mxu0 0.0
        %1444 = vmatprep.subr.mxu0 0.0
        %1445 = vmatpush2.msra.mxu0 0.0
        %1446 = vmatprep.subr.mxu0 0.0
        %1447 = vmatpush2.msra.mxu0 0.0
        %1448 = vmatprep.subr.mxu0 0.0
        %1449 = vmatpush2.msra.mxu0 0.0
        %1450 = vmatprep.subr.mxu0 0.0
        %1451 = vmatpush2.msra.mxu0 0.0
        %1452 = vmatprep.subr.mxu0 0.0
        %1453 = vmatpush2.msra.mxu0 0.0
        %1454 = vmatprep.subr.mxu0 0.0
        %1455 = vmatpush2.msra.mxu0 0.0
        %1456 = vmatprep.subr.mxu0 0.0
        %1457 = vmatpush2.msra.mxu0 0.0
        %1458 = vmatprep.subr.mxu0 0.0
        %1459 = vmatpush2.msra.mxu0 0.0
        %1460 = vmatprep.subr.mxu0 0.0
        %1461 = vmatpush2.msra.mxu0 0.0
        %1462 = vmatprep.mubr.f32.mxu0 0.0
        %1463 = vmatmul.mubr.f32.gmra.mxu0 %v1319
        %v1464 = vpop.f32.mrf.mxu0
        %v1465 = vadd.f32 0.0, %v1464
        %v1466 = vpop.f32.mrf.mxu0
        %1467 = vdwg.mxu0
        %v1468 = vadd.f32 %v1285, %v1394
        %v1469 = vadd.f32 %v1286, %v1396
        %v1470 = vadd.f32 %v1287, %v1465
        %s1471 = scalar_lea.vmem %s219, 48
        %v1472 = vld [vmem:[%s1471] sm:$0xff]
        %v1473 = vmul.f32 %v383, %v1472
        %v1474 = vadd.f32 %v1473, 0.0
        %s1475 = scalar_lea.vmem %s219, 120
        %v1476 = vld [vmem:[%s1475] sm:$0xff]
        %v1477 = vmul.f32 %v390, %v1476
        %v1478 = vadd.f32 %v1474, %v1477
        %s1479 = scalar_lea.vmem %s219, 192
        %v1480 = vld [vmem:[%s1479] sm:$0xff]
        %v1481 = vmul.f32 %v397, %v1480
        %v1482 = vadd.f32 %v1478, %v1481
        %s1483 = scalar_lea.vmem %s219, 264
        %v1484 = vld [vmem:[%s1483] sm:$0xff]
        %v1485 = vmul.f32 %v404, %v1484
        %v1486 = vadd.f32 %v1482, %v1485
        %v1487 = vld [vmem:[#allocation2] sm:$0xff]
        %v1488 = vld [vmem:[#allocation2 + $0x8] sm:$0xf]
        %v1491 = vcombine.high %v1487, %v1487
        %1492 = vrot.lane.b32.xlu0 %v1487, 92
        %v1493 = vpop.permute.xlu0 %1492
        %1494 = vrot.lane.b32.xlu0 %v1491, 92
        %v1495 = vpop.permute.xlu0 %1494
        %1496 = vrot.lane.b32.xlu0 %v1488, 92
        %v1497 = vpop.permute.xlu0 %1496
        %vm1498 = vcmask 752640
        %v1499 = vsel %vm1498, %v1493, %v1495
        %v1500 = vsel %vm1498, %v1495, %v1497
        %v1502 = vsel %vm437, %v1486, 0
        %v1504 = vsel %vm441, %v1499, 0
        %v1506 = vsel %vm441, %v1500, 0
        %v1508 = vsel %vm441, %v1497, 0
        %1510 = vmatprep.subr.mxu0 0.0
        %1511 = vmatpush1.msra.mxu0 0.0
        %1512 = vmatprep.subr.mxu0 0.0
        %1513 = vmatpush1.msra.mxu0 0.0
        %1514 = vmatprep.subr.mxu0 0.0
        %1515 = vmatpush1.msra.mxu0 0.0
        %1516 = vmatprep.subr.mxu0 0.0
        %1517 = vmatpush1.msra.mxu0 0.0
        %1518 = vmatprep.subr.mxu0 0.0
        %1519 = vmatpush1.msra.mxu0 0.0
        %1520 = vmatprep.subr.mxu0 0.0
        %1521 = vmatpush1.msra.mxu0 0.0
        %1522 = vmatprep.subr.mxu0 0.0
        %1523 = vmatpush1.msra.mxu0 0.0
        %1524 = vmatprep.subr.mxu0 0.0
        %1525 = vmatpush1.msra.mxu0 0.0
        %1526 = vmatprep.subr.mxu0 0.0
        %1527 = vmatpush1.msra.mxu0 0.0
        %1528 = vmatprep.subr.mxu0 0.0
        %1529 = vmatpush1.msra.mxu0 0.0
        %1530 = vmatprep.subr.mxu0 0.0
        %1531 = vmatpush1.msra.mxu0 0.0
        %1532 = vmatprep.subr.mxu0 0.0
        %1533 = vmatpush1.msra.mxu0 0.0
        %1534 = vmatprep.subr.mxu0 0.0
        %1535 = vmatpush1.msra.mxu0 0.0
        %1536 = vmatprep.subr.mxu0 0.0
        %1537 = vmatpush1.msra.mxu0 0.0
        %1538 = vmatprep.subr.mxu0 0.0
        %1539 = vmatpush1.msra.mxu0 0.0
        %1540 = vmatprep.subr.mxu0 %v1506
        %1541 = vmatpush1.msra.mxu0 %v1504
        %1542 = vmatprep.subr.mxu0 0.0
        %1543 = vmatpush2.msra.mxu0 0.0
        %1544 = vmatprep.subr.mxu0 0.0
        %1545 = vmatpush2.msra.mxu0 0.0
        %1546 = vmatprep.subr.mxu0 0.0
        %1547 = vmatpush2.msra.mxu0 0.0
        %1548 = vmatprep.subr.mxu0 0.0
        %1549 = vmatpush2.msra.mxu0 0.0
        %1550 = vmatprep.subr.mxu0 0.0
        %1551 = vmatpush2.msra.mxu0 0.0
        %1552 = vmatprep.subr.mxu0 0.0
        %1553 = vmatpush2.msra.mxu0 0.0
        %1554 = vmatprep.subr.mxu0 0.0
        %1555 = vmatpush2.msra.mxu0 0.0
        %1556 = vmatprep.subr.mxu0 0.0
        %1557 = vmatpush2.msra.mxu0 0.0
        %1558 = vmatprep.subr.mxu0 0.0
        %1559 = vmatpush2.msra.mxu0 0.0
        %1560 = vmatprep.subr.mxu0 0.0
        %1561 = vmatpush2.msra.mxu0 0.0
        %1562 = vmatprep.subr.mxu0 0.0
        %1563 = vmatpush2.msra.mxu0 0.0
        %1564 = vmatprep.subr.mxu0 0.0
        %1565 = vmatpush2.msra.mxu0 0.0
        %1566 = vmatprep.subr.mxu0 0.0
        %1567 = vmatpush2.msra.mxu0 0.0
        %1568 = vmatprep.subr.mxu0 0.0
        %1569 = vmatpush2.msra.mxu0 0.0
        %1570 = vmatprep.subr.mxu0 0.0
        %1571 = vmatpush2.msra.mxu0 0.0
        %1572 = vmatprep.subr.mxu0 0.0
        %1573 = vmatpush2.msra.mxu0 0.0
        %1574 = vmatprep.mubr.f32.mxu0 0.0
        %1575 = vmatmul.mubr.f32.gmra.mxu0 %v1502
        %v1576 = vpop.f32.mrf.mxu0
        %v1577 = vadd.f32 0.0, %v1576
        %v1578 = vpop.f32.mrf.mxu0
        %v1579 = vadd.f32 0.0, %v1578
        %1580 = vdwg.mxu0
        %1581 = vmatprep.subr.mxu0 0.0
        %1582 = vmatpush1.msra.mxu0 0.0
        %1583 = vmatprep.subr.mxu0 0.0
        %1584 = vmatpush1.msra.mxu0 0.0
        %1585 = vmatprep.subr.mxu0 0.0
        %1586 = vmatpush1.msra.mxu0 0.0
        %1587 = vmatprep.subr.mxu0 0.0
        %1588 = vmatpush1.msra.mxu0 0.0
        %1589 = vmatprep.subr.mxu0 0.0
        %1590 = vmatpush1.msra.mxu0 0.0
        %1591 = vmatprep.subr.mxu0 0.0
        %1592 = vmatpush1.msra.mxu0 0.0
        %1593 = vmatprep.subr.mxu0 0.0
        %1594 = vmatpush1.msra.mxu0 0.0
        %1595 = vmatprep.subr.mxu0 0.0
        %1596 = vmatpush1.msra.mxu0 0.0
        %1597 = vmatprep.subr.mxu0 0.0
        %1598 = vmatpush1.msra.mxu0 0.0
        %1599 = vmatprep.subr.mxu0 0.0
        %1600 = vmatpush1.msra.mxu0 0.0
        %1601 = vmatprep.subr.mxu0 0.0
        %1602 = vmatpush1.msra.mxu0 0.0
        %1603 = vmatprep.subr.mxu0 0.0
        %1604 = vmatpush1.msra.mxu0 0.0
        %1605 = vmatprep.subr.mxu0 0.0
        %1606 = vmatpush1.msra.mxu0 0.0
        %1607 = vmatprep.subr.mxu0 0.0
        %1608 = vmatpush1.msra.mxu0 0.0
        %1609 = vmatprep.subr.mxu0 0.0
        %1610 = vmatpush1.msra.mxu0 0.0
        %1611 = vmatprep.subr.mxu0 0.0
        %1612 = vmatpush1.msra.mxu0 %v1508
        %1613 = vmatprep.subr.mxu0 0.0
        %1614 = vmatpush2.msra.mxu0 0.0
        %1615 = vmatprep.subr.mxu0 0.0
        %1616 = vmatpush2.msra.mxu0 0.0
        %1617 = vmatprep.subr.mxu0 0.0
        %1618 = vmatpush2.msra.mxu0 0.0
        %1619 = vmatprep.subr.mxu0 0.0
        %1620 = vmatpush2.msra.mxu0 0.0
        %1621 = vmatprep.subr.mxu0 0.0
        %1622 = vmatpush2.msra.mxu0 0.0
        %1623 = vmatprep.subr.mxu0 0.0
        %1624 = vmatpush2.msra.mxu0 0.0
        %1625 = vmatprep.subr.mxu0 0.0
        %1626 = vmatpush2.msra.mxu0 0.0
        %1627 = vmatprep.subr.mxu0 0.0
        %1628 = vmatpush2.msra.mxu0 0.0
        %1629 = vmatprep.subr.mxu0 0.0
        %1630 = vmatpush2.msra.mxu0 0.0
        %1631 = vmatprep.subr.mxu0 0.0
        %1632 = vmatpush2.msra.mxu0 0.0
        %1633 = vmatprep.subr.mxu0 0.0
        %1634 = vmatpush2.msra.mxu0 0.0
        %1635 = vmatprep.subr.mxu0 0.0
        %1636 = vmatpush2.msra.mxu0 0.0
        %1637 = vmatprep.subr.mxu0 0.0
        %1638 = vmatpush2.msra.mxu0 0.0
        %1639 = vmatprep.subr.mxu0 0.0
        %1640 = vmatpush2.msra.mxu0 0.0
        %1641 = vmatprep.subr.mxu0 0.0
        %1642 = vmatpush2.msra.mxu0 0.0
        %1643 = vmatprep.subr.mxu0 0.0
        %1644 = vmatpush2.msra.mxu0 0.0
        %1645 = vmatprep.mubr.f32.mxu0 0.0
        %1646 = vmatmul.mubr.f32.gmra.mxu0 %v1502
        %v1647 = vpop.f32.mrf.mxu0
        %v1648 = vadd.f32 0.0, %v1647
        %v1649 = vpop.f32.mrf.mxu0
        %1650 = vdwg.mxu0
        %v1651 = vadd.f32 %v1468, %v1577
        %v1652 = vadd.f32 %v1469, %v1579
        %v1653 = vadd.f32 %v1470, %v1648
        %s1654 = scalar_lea.vmem %s219, 56
        %v1655 = vld [vmem:[%s1654] sm:$0xff]
        %v1656 = vmul.f32 %v383, %v1655
        %v1657 = vadd.f32 %v1656, 0.0
        %s1658 = scalar_lea.vmem %s219, 128
        %v1659 = vld [vmem:[%s1658] sm:$0xff]
        %v1660 = vmul.f32 %v390, %v1659
        %v1661 = vadd.f32 %v1657, %v1660
        %s1662 = scalar_lea.vmem %s219, 200
        %v1663 = vld [vmem:[%s1662] sm:$0xff]
        %v1664 = vmul.f32 %v397, %v1663
        %v1665 = vadd.f32 %v1661, %v1664
        %s1666 = scalar_lea.vmem %s219, 272
        %v1667 = vld [vmem:[%s1666] sm:$0xff]
        %v1668 = vmul.f32 %v404, %v1667
        %v1669 = vadd.f32 %v1665, %v1668
        %v1670 = vld [vmem:[#allocation2] sm:$0xff]
        %v1671 = vld [vmem:[#allocation2 + $0x8] sm:$0xf]
        %v1674 = vcombine.high %v1670, %v1670
        %1675 = vrot.lane.b32.xlu0 %v1670, 91
        %v1676 = vpop.permute.xlu0 %1675
        %1677 = vrot.lane.b32.xlu0 %v1674, 91
        %v1678 = vpop.permute.xlu0 %1677
        %1679 = vrot.lane.b32.xlu0 %v1671, 91
        %v1680 = vpop.permute.xlu0 %1679
        %vm1681 = vcmask 744448
        %v1682 = vsel %vm1681, %v1676, %v1678
        %v1683 = vsel %vm1681, %v1678, %v1680
        %v1685 = vsel %vm437, %v1669, 0
        %v1687 = vsel %vm441, %v1682, 0
        %v1689 = vsel %vm441, %v1683, 0
        %v1691 = vsel %vm441, %v1680, 0
        %1693 = vmatprep.subr.mxu0 0.0
        %1694 = vmatpush1.msra.mxu0 0.0
        %1695 = vmatprep.subr.mxu0 0.0
        %1696 = vmatpush1.msra.mxu0 0.0
        %1697 = vmatprep.subr.mxu0 0.0
        %1698 = vmatpush1.msra.mxu0 0.0
        %1699 = vmatprep.subr.mxu0 0.0
        %1700 = vmatpush1.msra.mxu0 0.0
        %1701 = vmatprep.subr.mxu0 0.0
        %1702 = vmatpush1.msra.mxu0 0.0
        %1703 = vmatprep.subr.mxu0 0.0
        %1704 = vmatpush1.msra.mxu0 0.0
        %1705 = vmatprep.subr.mxu0 0.0
        %1706 = vmatpush1.msra.mxu0 0.0
        %1707 = vmatprep.subr.mxu0 0.0
        %1708 = vmatpush1.msra.mxu0 0.0
        %1709 = vmatprep.subr.mxu0 0.0
        %1710 = vmatpush1.msra.mxu0 0.0
        %1711 = vmatprep.subr.mxu0 0.0
        %1712 = vmatpush1.msra.mxu0 0.0
        %1713 = vmatprep.subr.mxu0 0.0
        %1714 = vmatpush1.msra.mxu0 0.0
        %1715 = vmatprep.subr.mxu0 0.0
        %1716 = vmatpush1.msra.mxu0 0.0
        %1717 = vmatprep.subr.mxu0 0.0
        %1718 = vmatpush1.msra.mxu0 0.0
        %1719 = vmatprep.subr.mxu0 0.0
        %1720 = vmatpush1.msra.mxu0 0.0
        %1721 = vmatprep.subr.mxu0 0.0
        %1722 = vmatpush1.msra.mxu0 0.0
        %1723 = vmatprep.subr.mxu0 %v1689
        %1724 = vmatpush1.msra.mxu0 %v1687
        %1725 = vmatprep.subr.mxu0 0.0
        %1726 = vmatpush2.msra.mxu0 0.0
        %1727 = vmatprep.subr.mxu0 0.0
        %1728 = vmatpush2.msra.mxu0 0.0
        %1729 = vmatprep.subr.mxu0 0.0
        %1730 = vmatpush2.msra.mxu0 0.0
        %1731 = vmatprep.subr.mxu0 0.0
        %1732 = vmatpush2.msra.mxu0 0.0
        %1733 = vmatprep.subr.mxu0 0.0
        %1734 = vmatpush2.msra.mxu0 0.0
        %1735 = vmatprep.subr.mxu0 0.0
        %1736 = vmatpush2.msra.mxu0 0.0
        %1737 = vmatprep.subr.mxu0 0.0
        %1738 = vmatpush2.msra.mxu0 0.0
        %1739 = vmatprep.subr.mxu0 0.0
        %1740 = vmatpush2.msra.mxu0 0.0
        %1741 = vmatprep.subr.mxu0 0.0
        %1742 = vmatpush2.msra.mxu0 0.0
        %1743 = vmatprep.subr.mxu0 0.0
        %1744 = vmatpush2.msra.mxu0 0.0
        %1745 = vmatprep.subr.mxu0 0.0
        %1746 = vmatpush2.msra.mxu0 0.0
        %1747 = vmatprep.subr.mxu0 0.0
        %1748 = vmatpush2.msra.mxu0 0.0
        %1749 = vmatprep.subr.mxu0 0.0
        %1750 = vmatpush2.msra.mxu0 0.0
        %1751 = vmatprep.subr.mxu0 0.0
        %1752 = vmatpush2.msra.mxu0 0.0
        %1753 = vmatprep.subr.mxu0 0.0
        %1754 = vmatpush2.msra.mxu0 0.0
        %1755 = vmatprep.subr.mxu0 0.0
        %1756 = vmatpush2.msra.mxu0 0.0
        %1757 = vmatprep.mubr.f32.mxu0 0.0
        %1758 = vmatmul.mubr.f32.gmra.mxu0 %v1685
        %v1759 = vpop.f32.mrf.mxu0
        %v1760 = vadd.f32 0.0, %v1759
        %v1761 = vpop.f32.mrf.mxu0
        %v1762 = vadd.f32 0.0, %v1761
        %1763 = vdwg.mxu0
        %1764 = vmatprep.subr.mxu0 0.0
        %1765 = vmatpush1.msra.mxu0 0.0
        %1766 = vmatprep.subr.mxu0 0.0
        %1767 = vmatpush1.msra.mxu0 0.0
        %1768 = vmatprep.subr.mxu0 0.0
        %1769 = vmatpush1.msra.mxu0 0.0
        %1770 = vmatprep.subr.mxu0 0.0
        %1771 = vmatpush1.msra.mxu0 0.0
        %1772 = vmatprep.subr.mxu0 0.0
        %1773 = vmatpush1.msra.mxu0 0.0
        %1774 = vmatprep.subr.mxu0 0.0
        %1775 = vmatpush1.msra.mxu0 0.0
        %1776 = vmatprep.subr.mxu0 0.0
        %1777 = vmatpush1.msra.mxu0 0.0
        %1778 = vmatprep.subr.mxu0 0.0
        %1779 = vmatpush1.msra.mxu0 0.0
        %1780 = vmatprep.subr.mxu0 0.0
        %1781 = vmatpush1.msra.mxu0 0.0
        %1782 = vmatprep.subr.mxu0 0.0
        %1783 = vmatpush1.msra.mxu0 0.0
        %1784 = vmatprep.subr.mxu0 0.0
        %1785 = vmatpush1.msra.mxu0 0.0
        %1786 = vmatprep.subr.mxu0 0.0
        %1787 = vmatpush1.msra.mxu0 0.0
        %1788 = vmatprep.subr.mxu0 0.0
        %1789 = vmatpush1.msra.mxu0 0.0
        %1790 = vmatprep.subr.mxu0 0.0
        %1791 = vmatpush1.msra.mxu0 0.0
        %1792 = vmatprep.subr.mxu0 0.0
        %1793 = vmatpush1.msra.mxu0 0.0
        %1794 = vmatprep.subr.mxu0 0.0
        %1795 = vmatpush1.msra.mxu0 %v1691
        %1796 = vmatprep.subr.mxu0 0.0
        %1797 = vmatpush2.msra.mxu0 0.0
        %1798 = vmatprep.subr.mxu0 0.0
        %1799 = vmatpush2.msra.mxu0 0.0
        %1800 = vmatprep.subr.mxu0 0.0
        %1801 = vmatpush2.msra.mxu0 0.0
        %1802 = vmatprep.subr.mxu0 0.0
        %1803 = vmatpush2.msra.mxu0 0.0
        %1804 = vmatprep.subr.mxu0 0.0
        %1805 = vmatpush2.msra.mxu0 0.0
        %1806 = vmatprep.subr.mxu0 0.0
        %1807 = vmatpush2.msra.mxu0 0.0
        %1808 = vmatprep.subr.mxu0 0.0
        %1809 = vmatpush2.msra.mxu0 0.0
        %1810 = vmatprep.subr.mxu0 0.0
        %1811 = vmatpush2.msra.mxu0 0.0
        %1812 = vmatprep.subr.mxu0 0.0
        %1813 = vmatpush2.msra.mxu0 0.0
        %1814 = vmatprep.subr.mxu0 0.0
        %1815 = vmatpush2.msra.mxu0 0.0
        %1816 = vmatprep.subr.mxu0 0.0
        %1817 = vmatpush2.msra.mxu0 0.0
        %1818 = vmatprep.subr.mxu0 0.0
        %1819 = vmatpush2.msra.mxu0 0.0
        %1820 = vmatprep.subr.mxu0 0.0
        %1821 = vmatpush2.msra.mxu0 0.0
        %1822 = vmatprep.subr.mxu0 0.0
        %1823 = vmatpush2.msra.mxu0 0.0
        %1824 = vmatprep.subr.mxu0 0.0
        %1825 = vmatpush2.msra.mxu0 0.0
        %1826 = vmatprep.subr.mxu0 0.0
        %1827 = vmatpush2.msra.mxu0 0.0
        %1828 = vmatprep.mubr.f32.mxu0 0.0
        %1829 = vmatmul.mubr.f32.gmra.mxu0 %v1685
        %v1830 = vpop.f32.mrf.mxu0
        %v1831 = vadd.f32 0.0, %v1830
        %v1832 = vpop.f32.mrf.mxu0
        %1833 = vdwg.mxu0
        %v1834 = vadd.f32 %v1651, %v1760
        %v1835 = vadd.f32 %v1652, %v1762
        %v1836 = vadd.f32 %v1653, %v1831
        %s1837 = scalar_lea.vmem %s219, 64
        %v1838 = vld [vmem:[%s1837] sm:$0xff]
        %v1839 = vmul.f32 %v383, %v1838
        %v1840 = vadd.f32 %v1839, 0.0
        %s1841 = scalar_lea.vmem %s219, 136
        %v1842 = vld [vmem:[%s1841] sm:$0xff]
        %v1843 = vmul.f32 %v390, %v1842
        %v1844 = vadd.f32 %v1840, %v1843
        %s1845 = scalar_lea.vmem %s219, 208
        %v1846 = vld [vmem:[%s1845] sm:$0xff]
        %v1847 = vmul.f32 %v397, %v1846
        %v1848 = vadd.f32 %v1844, %v1847
        %s1849 = scalar_lea.vmem %s219, 280
        %v1850 = vld [vmem:[%s1849] sm:$0xff]
        %v1851 = vmul.f32 %v404, %v1850
        %v1852 = vadd.f32 %v1848, %v1851
        %v1853 = vld [vmem:[#allocation2] sm:$0xff]
        %v1854 = vld [vmem:[#allocation2 + $0x8] sm:$0xf]
        %v1857 = vcombine.high %v1853, %v1853
        %1858 = vrot.lane.b32.xlu0 %v1853, 90
        %v1859 = vpop.permute.xlu0 %1858
        %1860 = vrot.lane.b32.xlu0 %v1857, 90
        %v1861 = vpop.permute.xlu0 %1860
        %1862 = vrot.lane.b32.xlu0 %v1854, 90
        %v1863 = vpop.permute.xlu0 %1862
        %vm1864 = vcmask 736256
        %v1865 = vsel %vm1864, %v1859, %v1861
        %v1866 = vsel %vm1864, %v1861, %v1863
        %v1868 = vsel %vm437, %v1852, 0
        %v1870 = vsel %vm441, %v1865, 0
        %v1872 = vsel %vm441, %v1866, 0
        %v1874 = vsel %vm441, %v1863, 0
        %1876 = vmatprep.subr.mxu0 0.0
        %1877 = vmatpush1.msra.mxu0 0.0
        %1878 = vmatprep.subr.mxu0 0.0
        %1879 = vmatpush1.msra.mxu0 0.0
        %1880 = vmatprep.subr.mxu0 0.0
        %1881 = vmatpush1.msra.mxu0 0.0
        %1882 = vmatprep.subr.mxu0 0.0
        %1883 = vmatpush1.msra.mxu0 0.0
        %1884 = vmatprep.subr.mxu0 0.0
        %1885 = vmatpush1.msra.mxu0 0.0
        %1886 = vmatprep.subr.mxu0 0.0
        %1887 = vmatpush1.msra.mxu0 0.0
        %1888 = vmatprep.subr.mxu0 0.0
        %1889 = vmatpush1.msra.mxu0 0.0
        %1890 = vmatprep.subr.mxu0 0.0
        %1891 = vmatpush1.msra.mxu0 0.0
        %1892 = vmatprep.subr.mxu0 0.0
        %1893 = vmatpush1.msra.mxu0 0.0
        %1894 = vmatprep.subr.mxu0 0.0
        %1895 = vmatpush1.msra.mxu0 0.0
        %1896 = vmatprep.subr.mxu0 0.0
        %1897 = vmatpush1.msra.mxu0 0.0
        %1898 = vmatprep.subr.mxu0 0.0
        %1899 = vmatpush1.msra.mxu0 0.0
        %1900 = vmatprep.subr.mxu0 0.0
        %1901 = vmatpush1.msra.mxu0 0.0
        %1902 = vmatprep.subr.mxu0 0.0
        %1903 = vmatpush1.msra.mxu0 0.0
        %1904 = vmatprep.subr.mxu0 0.0
        %1905 = vmatpush1.msra.mxu0 0.0
        %1906 = vmatprep.subr.mxu0 %v1872
        %1907 = vmatpush1.msra.mxu0 %v1870
        %1908 = vmatprep.subr.mxu0 0.0
        %1909 = vmatpush2.msra.mxu0 0.0
        %1910 = vmatprep.subr.mxu0 0.0
        %1911 = vmatpush2.msra.mxu0 0.0
        %1912 = vmatprep.subr.mxu0 0.0
        %1913 = vmatpush2.msra.mxu0 0.0
        %1914 = vmatprep.subr.mxu0 0.0
        %1915 = vmatpush2.msra.mxu0 0.0
        %1916 = vmatprep.subr.mxu0 0.0
        %1917 = vmatpush2.msra.mxu0 0.0
        %1918 = vmatprep.subr.mxu0 0.0
        %1919 = vmatpush2.msra.mxu0 0.0
        %1920 = vmatprep.subr.mxu0 0.0
        %1921 = vmatpush2.msra.mxu0 0.0
        %1922 = vmatprep.subr.mxu0 0.0
        %1923 = vmatpush2.msra.mxu0 0.0
        %1924 = vmatprep.subr.mxu0 0.0
        %1925 = vmatpush2.msra.mxu0 0.0
        %1926 = vmatprep.subr.mxu0 0.0
        %1927 = vmatpush2.msra.mxu0 0.0
        %1928 = vmatprep.subr.mxu0 0.0
        %1929 = vmatpush2.msra.mxu0 0.0
        %1930 = vmatprep.subr.mxu0 0.0
        %1931 = vmatpush2.msra.mxu0 0.0
        %1932 = vmatprep.subr.mxu0 0.0
        %1933 = vmatpush2.msra.mxu0 0.0
        %1934 = vmatprep.subr.mxu0 0.0
        %1935 = vmatpush2.msra.mxu0 0.0
        %1936 = vmatprep.subr.mxu0 0.0
        %1937 = vmatpush2.msra.mxu0 0.0
        %1938 = vmatprep.subr.mxu0 0.0
        %1939 = vmatpush2.msra.mxu0 0.0
        %1940 = vmatprep.mubr.f32.mxu0 0.0
        %1941 = vmatmul.mubr.f32.gmra.mxu0 %v1868
        %v1942 = vpop.f32.mrf.mxu0
        %v1943 = vadd.f32 0.0, %v1942
        %v1944 = vpop.f32.mrf.mxu0
        %v1945 = vadd.f32 0.0, %v1944
        %1946 = vdwg.mxu0
        %1947 = vmatprep.subr.mxu0 0.0
        %1948 = vmatpush1.msra.mxu0 0.0
        %1949 = vmatprep.subr.mxu0 0.0
        %1950 = vmatpush1.msra.mxu0 0.0
        %1951 = vmatprep.subr.mxu0 0.0
        %1952 = vmatpush1.msra.mxu0 0.0
        %1953 = vmatprep.subr.mxu0 0.0
        %1954 = vmatpush1.msra.mxu0 0.0
        %1955 = vmatprep.subr.mxu0 0.0
        %1956 = vmatpush1.msra.mxu0 0.0
        %1957 = vmatprep.subr.mxu0 0.0
        %1958 = vmatpush1.msra.mxu0 0.0
        %1959 = vmatprep.subr.mxu0 0.0
        %1960 = vmatpush1.msra.mxu0 0.0
        %1961 = vmatprep.subr.mxu0 0.0
        %1962 = vmatpush1.msra.mxu0 0.0
        %1963 = vmatprep.subr.mxu0 0.0
        %1964 = vmatpush1.msra.mxu0 0.0
        %1965 = vmatprep.subr.mxu0 0.0
        %1966 = vmatpush1.msra.mxu0 0.0
        %1967 = vmatprep.subr.mxu0 0.0
        %1968 = vmatpush1.msra.mxu0 0.0
        %1969 = vmatprep.subr.mxu0 0.0
        %1970 = vmatpush1.msra.mxu0 0.0
        %1971 = vmatprep.subr.mxu0 0.0
        %1972 = vmatpush1.msra.mxu0 0.0
        %1973 = vmatprep.subr.mxu0 0.0
        %1974 = vmatpush1.msra.mxu0 0.0
        %1975 = vmatprep.subr.mxu0 0.0
        %1976 = vmatpush1.msra.mxu0 0.0
        %1977 = vmatprep.subr.mxu0 0.0
        %1978 = vmatpush1.msra.mxu0 %v1874
        %1979 = vmatprep.subr.mxu0 0.0
        %1980 = vmatpush2.msra.mxu0 0.0
        %1981 = vmatprep.subr.mxu0 0.0
        %1982 = vmatpush2.msra.mxu0 0.0
        %1983 = vmatprep.subr.mxu0 0.0
        %1984 = vmatpush2.msra.mxu0 0.0
        %1985 = vmatprep.subr.mxu0 0.0
        %1986 = vmatpush2.msra.mxu0 0.0
        %1987 = vmatprep.subr.mxu0 0.0
        %1988 = vmatpush2.msra.mxu0 0.0
        %1989 = vmatprep.subr.mxu0 0.0
        %1990 = vmatpush2.msra.mxu0 0.0
        %1991 = vmatprep.subr.mxu0 0.0
        %1992 = vmatpush2.msra.mxu0 0.0
        %1993 = vmatprep.subr.mxu0 0.0
        %1994 = vmatpush2.msra.mxu0 0.0
        %1995 = vmatprep.subr.mxu0 0.0
        %1996 = vmatpush2.msra.mxu0 0.0
        %1997 = vmatprep.subr.mxu0 0.0
        %1998 = vmatpush2.msra.mxu0 0.0
        %1999 = vmatprep.subr.mxu0 0.0
        %2000 = vmatpush2.msra.mxu0 0.0
        %2001 = vmatprep.subr.mxu0 0.0
        %2002 = vmatpush2.msra.mxu0 0.0
        %2003 = vmatprep.subr.mxu0 0.0
        %2004 = vmatpush2.msra.mxu0 0.0
        %2005 = vmatprep.subr.mxu0 0.0
        %2006 = vmatpush2.msra.mxu0 0.0
        %2007 = vmatprep.subr.mxu0 0.0
        %2008 = vmatpush2.msra.mxu0 0.0
        %2009 = vmatprep.subr.mxu0 0.0
        %2010 = vmatpush2.msra.mxu0 0.0
        %2011 = vmatprep.mubr.f32.mxu0 0.0
        %2012 = vmatmul.mubr.f32.gmra.mxu0 %v1868
        %v2013 = vpop.f32.mrf.mxu0
        %v2014 = vadd.f32 0.0, %v2013
        %v2015 = vpop.f32.mrf.mxu0
        %2016 = vdwg.mxu0
        %v2017 = vadd.f32 %v1834, %v1943
        %v2018 = vadd.f32 %v1835, %v1945
        %v2019 = vadd.f32 %v1836, %v2014
        %v2020 = vld [vmem:[%s223] sm:$0xff]
        %v2021 = vmul.f32 %v383, %v2020
        %v2022 = vadd.f32 %v2021, 0.0
        %s2023 = scalar_lea.vmem %s223, 8
        %v2024 = vld [vmem:[%s2023] sm:$0xff]
        %v2025 = vmul.f32 %v390, %v2024
        %v2026 = vadd.f32 %v2022, %v2025
        %s2027 = scalar_lea.vmem %s223, 16
        %v2028 = vld [vmem:[%s2027] sm:$0xff]
        %v2029 = vmul.f32 %v397, %v2028
        %v2030 = vadd.f32 %v2026, %v2029
        %s2031 = scalar_lea.vmem %s223, 24
        %v2032 = vld [vmem:[%s2031] sm:$0xff]
        %v2033 = vmul.f32 %v404, %v2032
        %v2034 = vadd.f32 %v2030, %v2033
        %2036 = vset.pattern.permute.xlu0 0
        %2037 = vperm.xlu0 %2036, %v2034
        %v2038 = vpop.permute.xlu0 %2037
        %v2040 = vadd.f32 %v2017, %v2038
        %v2041 = vadd.f32 %v2018, %v2038
        %v2042 = vadd.f32 %v2019, %v2038
        %2043 = vst [vmem:[%s210] sm:$0xff] %v2040
        %2044 = vst [vmem:[%s210 + $0x8] sm:$0xff] %v2041
        %vm2045 = vcmask 261120
        %2046 = vst.msk [vmem:[%s210 + $0x10] sm:$0xff] %vm2045, %v2042
        %s2047 = sand.u32 %s124, 1
        %s2048 = scalar_lea.sflag [#allocation6], %s2047
        %s2049 = sand.u32 %s124, 1
        %s2050 = smul.addr %s2049, 24
        %s2051 = scalar_lea.vmem [#allocation5], %s2050
        // Predicated region
        $region33: #{tpu_custom_call.1} parent=31 // pred_check
          %p2052 = pneg %p134
        $region34: #{tpu_custom_call.1} parent=31 // pred_check_branch
          %2054 = sbr.rel (%p2052) target = $region36
        $region35: #{tpu_custom_call.1} parent=31 // pred_region
          %s2056 = ssub.s32 384, 384
          %2057 = vsyncadd %s2048, %s2056
          %s2058 = smul.addr %s29, 3
          %s2059 = smul.addr %s28, 3
          %s2060 = sadd.s32 %s2058, %s2059
          %s2061 = smul.addr %s2060, 128
          %s2062 = scalar_lea.hbm %s4, %s2061
          %s2064 = sshll.u32 %s2051, 4
          %s2065 = int_to_ptr.vmem [resolvable:$true] %s2064
          %2067 = dma.vmem_to_hbm [thread:$0]  %s2065, 384, %s2062, %s2048
        $region36: #{tpu_custom_call.1} parent=31 // pred_fallthru
          _
      $region32: #{tpu_custom_call.1} parent=5 // pred_fallthru
        _
      %p2068 = scmp.le.s32.totalorder 2, %s19
      // Predicated region
      $region37: #{tpu_custom_call.1} parent=5 // pred_check
        %p2069 = pneg %p2068
      $region38: #{tpu_custom_call.1} parent=5 // pred_check_branch
        %2071 = sbr.rel (%p2069) target = $region40
      $region39: #{tpu_custom_call.1} parent=5 // pred_region
        %s2072 = ssub.s32 %s19, 2
        // Predicated region
        $region41: #{tpu_custom_call.1} parent=39 // pred_check
          %p2073 = pneg %p140
        $region42: #{tpu_custom_call.1} parent=39 // pred_check_branch
          %2075 = sbr.rel (%p2073) target = $region44
        $region43: #{tpu_custom_call.1} parent=39 // pred_region
          %s2076 = sand.u32 %s125, 1
          %s2077 = scalar_lea.sflag [#allocation6], %s2076
          %s2078 = sand.u32 %s125, 1
          %s2079 = smul.addr %s2078, 24
          %s2080 = scalar_lea.vmem [#allocation5], %s2079
          %2081 = dma.done %s2077, 384
        $region44: #{tpu_custom_call.1} parent=39 // pred_fallthru
          _
      $region40: #{tpu_custom_call.1} parent=5 // pred_fallthru
        _
    $region6: #{tpu_custom_call.1} parent=1 // loop_footer
      %s23 = sadd.s32 1, %s19
    $region7: #{tpu_custom_call.1} parent=1 // loop_footer_branch
      %18 = sbr.rel target = $region3
    $region8: #{tpu_custom_call.1} parent=1 // loop_exit
      _
    %2082 = vsyncpa [#allocation6], 1
    %s2083 = scalar_lea.sflag [#allocation6], 1
    %2084 = vsyncpa %s2083, 1

</llo_original>
